<compile_context>
chip_gen: v5e
topology: v5e:2x2
jax: 0.10.0
libtpu: 0.0.40
codegen_flags: <defaults>
</compile_context>

<pallas_src>
import jax
import jax.numpy as jnp
from jax.experimental import pallas as pl
from jax.experimental.pallas import tpu as pltpu


# --------------------------------------------------------------------------- #
# Kernel
# --------------------------------------------------------------------------- #
def cfr_kernel(adj_ref, tt_ref, x_ref, t_ref,
               w0_ref, b0_ref, w1_ref, b1_ref,
               wh_ref, bh_ref, wo_ref, bo_ref,
               out_ref, agg_ref):
    nhid = w1_ref.shape[1]
    k = pl.program_id(1)

    # --- K-tiled fused adjacency pass: agg += adj_blk @ [t | 1] ------------- #
    @pl.when(k == 0)
    def _init():
        agg_ref[...] = jnp.zeros_like(agg_ref)

    adj_blk = adj_ref[...]
    if jnp.issubdtype(adj_blk.dtype, jnp.integer):
        # int8 MXU path (v5e/v6e): exact int32 accumulation of 0/1 products.
        part = jnp.dot(adj_blk, tt_ref[...],
                       preferred_element_type=jnp.int32).astype(jnp.float32)
    else:
        # bf16 / fp8 / f32 path, f32 accumulation (exact for 0/1 entries).
        part = jnp.dot(adj_blk, tt_ref[...], preferred_element_type=jnp.float32)
    agg_ref[...] += part

    # --- Per-row-tile compute once the aggregation is complete -------------- #
    @pl.when(k == pl.num_programs(1) - 1)
    def _finalize():
        agg = agg_ref[...]
        # Exact division (navg is a user-visible output). Zero-degree rows
        # divide by zero exactly like the PyTorch reference does.
        navg = agg[:, 0:1] / agg[:, 1:2]

        # Representation MLP (n_in = 2 Linear layers; eval-mode dropout = id),
        # low-precision inputs with f32 accumulation.
        cdt = w1_ref.dtype
        h = jnp.dot(x_ref[...], w0_ref[...], preferred_element_type=jnp.float32)
        h = jnp.maximum(h + b0_ref[...], 0.0)                       # (TM, nhid)
        rep = jnp.dot(h.astype(cdt), w1_ref[...],
                      preferred_element_type=jnp.float32)
        rep = jnp.maximum(rep + b1_ref[...], 0.0)                   # (TM, nhid)

        # Fused heads: rep @ [W00 | W10 | Wpp]  -> (TM, 2*nhid + 1)
        heads = jnp.dot(rep.astype(cdt), wh_ref[...],
                        preferred_element_type=jnp.float32) + bh_ref[...]
        hid2 = jnp.maximum(heads[:, 0:2 * nhid], 0.0)               # [y00 | y10]
        p1 = jax.nn.sigmoid(heads[:, 2 * nhid:2 * nhid + 1])        # (TM, 1)

        # Fused scalar output heads via block_diag(w01, w11): one (2*nhid, 2)
        # matmul instead of two separate 1-wide matmuls.
        y01 = jnp.dot(hid2, wo_ref[...],
                      preferred_element_type=jnp.float32) + bo_ref[...]
        y = jax.nn.sigmoid(jnp.where(t_ref[...] > 0.0,
                                     y01[:, 1:2], y01[:, 0:1]))     # (TM, 1)

        # Single lane-dense store (last dim padded to a multiple of 128):
        # [rep | p1 | y | navg | zero-pad]
        pad = out_ref.shape[1] - (nhid + 3)
        pieces = [rep, p1, y, navg]
        if pad:
            pieces.append(jnp.zeros((rep.shape[0], pad), jnp.float32))
        out_ref[...] = jnp.concatenate(pieces, axis=1)


# --------------------------------------------------------------------------- #
# Wrapper helpers
# --------------------------------------------------------------------------- #
def _round_up(a, b):
    return ((a + b - 1) // b) * b


def _tpu_vmem_capacity_bytes():
    try:
        cap = getattr(pltpu.get_tpu_info(), "vmem_capacity_bytes", None)
        if cap:
            return int(cap)
    except Exception:
        pass
    return 64 << 20   # conservative fallback: v7x has the smallest VMEM (64 MiB)


def _adj_stream_dtype():
    """Generation-correct 1-byte dtype for streaming a 0/1 adjacency."""
    try:
        kind = jax.devices()[0].device_kind.lower()
    except Exception:
        return jnp.bfloat16
    if "v7" in kind or "tpu7" in kind:
        return jnp.float8_e4m3fn        # v7x MXU: fp8, no integer path
    if "v5" in kind or "v6" in kind:
        return jnp.int8                 # int8 MXU path on v5e/v5p/v6e
    return jnp.bfloat16                 # safe everywhere (0/1 exact)


def prepare_adjacency(adj, dtype=None, *, check_binary=True):
    """One-time cast of the adjacency to the streaming dtype.

    Call this ONCE and reuse the result across forward calls: cfr_forward never
    casts adj per call, so repeated forwards pay no extra HBM pass.
    """
    if dtype is None:
        dtype = _adj_stream_dtype()
    if check_binary and jnp.dtype(dtype).itemsize < 4:
        # Low-precision streaming is only exact for 0/1 adjacency entries.
        if not bool(jnp.all((adj == 0) | (adj == 1))):
            raise ValueError(
                "prepare_adjacency: non-binary adjacency; pass dtype=jnp.float32 "
                "(or accept quantization explicitly).")
    return adj.astype(dtype)


def _choose_tiles(N, adj_itemsize, vmem_usable_bytes):
    """Pick (tile_m, tile_k) so the double-buffered adj stream (the dominant
    VMEM consumer) fits in ~half the usable, generation-specific VMEM."""
    adj_budget = vmem_usable_bytes // 2
    tile_m = min(_round_up(N, 8), 1024)
    tile_k = min(_round_up(N, 128), 8192)

    def over():
        return 2 * tile_m * tile_k * adj_itemsize > adj_budget

    while tile_k > 512 and over():
        tile_k = max(128, (tile_k // 2) // 128 * 128)
    while tile_m > 128 and over():
        tile_m = max(8, (tile_m // 2) // 8 * 8)
    while tile_k > 128 and over():
        tile_k = max(128, (tile_k // 2) // 128 * 128)
    return tile_m, tile_k


# --------------------------------------------------------------------------- #
# Forward wrapper
# --------------------------------------------------------------------------- #
def cfr_forward(adj, x, t, params, *, tile_m=None, tile_k=None,
                mlp_dtype=jnp.bfloat16):
    """Pallas implementation of CFR.forward (eval mode, Z=None).

    `adj` is streamed in its stored dtype (no per-call cast); use
    prepare_adjacency() once to drop it to 1 byte/element.
    """
    N = adj.shape[0]
    nfeat = x.shape[1]
    nhid = params["w_gc0"].shape[1]
    out_w = _round_up(nhid + 3, 128)          # lane-dense packed output width

    adj_itemsize = jnp.dtype(adj.dtype).itemsize
    vmem_cap = _tpu_vmem_capacity_bytes()
    vmem_usable = int(0.85 * vmem_cap)        # ~15% headroom for compiler scratch

    auto_m, auto_k = _choose_tiles(N, adj_itemsize, vmem_usable)
    if tile_m is None:
        tile_m = auto_m
    if tile_k is None:
        tile_k = auto_k

    M_pad = _round_up(N, tile_m)
    K_pad = _round_up(N, tile_k)
    grid = (M_pad // tile_m, K_pad // tile_k)

    # Zero-pad only when N is not a tile multiple (zero adj columns/rows are
    # exact for both adj@t and rowsum; padded node rows are sliced off below).
    if M_pad != N or K_pad != N:
        adj_s = jnp.zeros((M_pad, K_pad), adj.dtype).at[:N, :N].set(adj)
    else:
        adj_s = adj

    t_f = t.reshape(N).astype(jnp.float32)
    # [t | 1] rhs in the same dtype as adj so the aggregation matmul is uniform.
    # TODO(synk): a continuous (non 0/1) treatment dose would be quantized by a
    # sub-32-bit adj dtype; pass a float32 adjacency in that case.
    tt = (jnp.zeros((K_pad, 2), jnp.float32)
          .at[:N, 0].set(t_f)
          .at[:N, 1].set(1.0)
          .astype(adj.dtype))
    if M_pad != N:
        x_s = jnp.zeros((M_pad, nfeat), mlp_dtype).at[:N].set(x.astype(mlp_dtype))
        t_col = jnp.zeros((M_pad, 1), jnp.float32).at[:N, 0].set(t_f)
    else:
        x_s = x.astype(mlp_dtype)
        t_col = t_f.reshape(N, 1)

    # MLP / head weights in low precision (f32 accumulation), biases f32.
    w0 = params["w_gc0"].astype(mlp_dtype)
    b0 = params["b_gc0"].astype(jnp.float32)
    w1 = params["w_gc1"].astype(mlp_dtype)
    b1 = params["b_gc1"].astype(jnp.float32)
    w_heads = jnp.concatenate(
        [params["w00"], params["w10"], params["wpp"]], axis=1).astype(mlp_dtype)
    b_heads = jnp.concatenate(
        [params["b00"], params["b10"], params["bpp"]], axis=1).astype(jnp.float32)
    # Fused scalar heads: block_diag(w01, w11) -> (2*nhid, 2), biases [b01|b11].
    zcol = jnp.zeros_like(params["w01"])
    w_out = jnp.concatenate(
        [jnp.concatenate([params["w01"], zcol], axis=1),
         jnp.concatenate([zcol, params["w11"]], axis=1)], axis=0
    ).astype(jnp.float32)
    b_out = jnp.concatenate([params["b01"], params["b11"]], axis=1).astype(jnp.float32)

    # VMEM budget: double-buffered streams + resident weights + accumulator.
    mlp_itemsize = jnp.dtype(mlp_dtype).itemsize
    per_step = (
        2 * tile_m * tile_k * adj_itemsize          # adj tile (double-buffered)
        + 2 * tile_k * 2 * adj_itemsize             # [t|1] tile
        + 2 * tile_m * nfeat * mlp_itemsize         # x tile
        + 2 * tile_m * 4                            # t column tile
        + 2 * tile_m * out_w * 4                    # packed output slab
        + tile_m * 2 * 4                            # agg scratch
        + 2 * mlp_itemsize * (nfeat * nhid + nhid * nhid + nhid * (2 * nhid + 1))
        + 4 * (4 * nhid + 1 + 4 * nhid + 2 + 128)   # f32 biases + block-diag head
    )
    vmem_limit = int(min(max(int(1.25 * per_step), 32 << 20), vmem_usable))

    # TODO(synk): constant-index weight blocks could use pipeline_mode=
    # pl.Buffered(1) to reclaim their double buffers on 64 MiB (v7x) parts.
    out = pl.pallas_call(
        cfr_kernel,
        out_shape=jax.ShapeDtypeStruct((M_pad, out_w), jnp.float32),
        grid_spec=pltpu.PrefetchScalarGridSpec(
            num_scalar_prefetch=0,
            grid=grid,
            in_specs=[
                pl.BlockSpec((tile_m, tile_k), lambda i, k: (i, k)),      # adj
                pl.BlockSpec((tile_k, 2), lambda i, k: (k, 0)),           # [t | 1]
                pl.BlockSpec((tile_m, nfeat), lambda i, k: (i, 0)),       # x
                pl.BlockSpec((tile_m, 1), lambda i, k: (i, 0)),           # t column
                pl.BlockSpec((nfeat, nhid), lambda i, k: (0, 0)),         # W0
                pl.BlockSpec((1, nhid), lambda i, k: (0, 0)),             # b0
                pl.BlockSpec((nhid, nhid), lambda i, k: (0, 0)),          # W1
                pl.BlockSpec((1, nhid), lambda i, k: (0, 0)),             # b1
                pl.BlockSpec((nhid, 2 * nhid + 1), lambda i, k: (0, 0)),  # [W00|W10|Wpp]
                pl.BlockSpec((1, 2 * nhid + 1), lambda i, k: (0, 0)),     # [b00|b10|bpp]
                pl.BlockSpec((2 * nhid, 2), lambda i, k: (0, 0)),         # blkdiag(w01,w11)
                pl.BlockSpec((1, 2), lambda i, k: (0, 0)),                # [b01|b11]
            ],
            out_specs=pl.BlockSpec((tile_m, out_w), lambda i, k: (i, 0)),
            scratch_shapes=[pltpu.VMEM((tile_m, 2), jnp.float32)],        # agg
        ),
        compiler_params=pltpu.CompilerParams(
            dimension_semantics=("parallel", "arbitrary"),
            vmem_limit_bytes=vmem_limit,
        ),
    )(adj_s, tt, x_s, t_col,
      w0, b0, w1, b1, w_heads, b_heads, w_out, b_out)

    rep = out[:N, 0:nhid]
    p1 = out[:N, nhid]
    y = out[:N, nhid + 1]
    navg = out[:N, nhid + 2]
    # matches torch return: (p1, -1, y, rep, neighborAverageT)
    return p1, -1, y, rep, navg


# --------------------------------------------------------------------------- #
# Parameters + pure-JAX reference
# --------------------------------------------------------------------------- #
def init_params(key, nfeat, nhid):
    ks = jax.random.split(key, 11)
    s = 0.1
    return {
        # self.gc: Linear(nfeat, nhid), Linear(nhid, nhid)   (n_in = 2)
        "w_gc0": s * jax.random.normal(ks[0], (nfeat, nhid), jnp.float32),
        "b_gc0": s * jax.random.normal(ks[1], (1, nhid), jnp.float32),
        "w_gc1": s * jax.random.normal(ks[2], (nhid, nhid), jnp.float32),
        "b_gc1": s * jax.random.normal(ks[3], (1, nhid), jnp.float32),
        # out_t00[-1] / out_t10[-1]: Linear(nhid, nhid)
        "w00": s * jax.random.normal(ks[4], (nhid, nhid), jnp.float32),
        "b00": s * jax.random.normal(ks[5], (1, nhid), jnp.float32),
        "w10": s * jax.random.normal(ks[6], (nhid, nhid), jnp.float32),
        "b10": s * jax.random.normal(ks[7], (1, nhid), jnp.float32),
        # out_t01 / out_t11: Linear(nhid, 1)
        "w01": s * jax.random.normal(ks[8], (nhid, 1), jnp.float32),
        "b01": jnp.full((1, 1), 0.05, jnp.float32),
        "w11": s * jax.random.normal(ks[9], (nhid, 1), jnp.float32),
        "b11": jnp.full((1, 1), -0.05, jnp.float32),
        # pp: Linear(nhid, 1)
        "wpp": s * jax.random.normal(ks[10], (nhid, 1), jnp.float32),
        "bpp": jnp.full((1, 1), 0.01, jnp.float32),
    }


def reference_forward(adj, x, t, params):
    """Pure-JAX reference mirroring the PyTorch CFR.forward (eval mode)."""
    neighbors = jnp.sum(adj, axis=1)
    navg = (adj @ t) / neighbors
    rep = jax.nn.relu(x @ params["w_gc0"] + params["b_gc0"][0])
    rep = jax.nn.relu(rep @ params["w_gc1"] + params["b_gc1"][0])
    y00 = jax.nn.relu(rep @ params["w00"] + params["b00"][0])
    y10 = jax.nn.relu(rep @ params["w10"] + params["b10"][0])
    y0 = (y00 @ params["w01"] + params["b01"][0]).reshape(-1)
    y1 = (y10 @ params["w11"] + params["b11"][0]).reshape(-1)
    y = jax.nn.sigmoid(jnp.where(t > 0, y1, y0))
    p1 = jax.nn.sigmoid(rep @ params["wpp"] + params["bpp"][0]).reshape(-1)
    return p1, -1, y, rep, navg


# --------------------------------------------------------------------------- #
# Demo / self-test
# --------------------------------------------------------------------------- #
if __name__ == "__main__":
    N, nfeat, nhid = 256, 16, 32

    key = jax.random.PRNGKey(0)
    k_adj, k_x, k_t, k_p = jax.random.split(key, 4)

    # symmetric random 0/1 adjacency with self-loops (row sums strictly > 0)
    raw = (jax.random.uniform(k_adj, (N, N)) > 0.8).astype(jnp.float32)
    adj = jnp.minimum(jnp.maximum(raw, raw.T) + jnp.eye(N, dtype=jnp.float32), 1.0)
    x = jax.random.normal(k_x, (N, nfeat), jnp.float32)
    t = (jax.random.uniform(k_t, (N,)) > 0.5).astype(jnp.float32)
    params = init_params(k_p, nfeat, nhid)

    # One-time cast to the generation-correct 1-byte streaming dtype
    # (int8 on v5e/v6e, fp8 on v7x, bf16 otherwise); reused across calls.
    adj_stream = prepare_adjacency(adj)

    def run(a):
        # tile_m/tile_k chosen to exercise both grid axes (2x2 grid) and the
        # K-accumulator at this small size.
        return cfr_forward(a, x, t, params, tile_m=128, tile_k=128)

    try:
        p1, neg1, y, rep, navg = run(adj_stream)
        jax.block_until_ready((p1, y, rep, navg))
    except Exception:
        # TODO(synk): low-precision MXU path unavailable on this chip/toolchain;
        # fall back to bf16 adjacency (still exact for 0/1 entries).
        p1, neg1, y, rep, navg = run(adj.astype(jnp.bfloat16))
        jax.block_until_ready((p1, y, rep, navg))

    # correctness check against pure-JAX reference
    rp1, _, ry, rrep, rnavg = reference_forward(adj, x, t, params)
    assert jnp.allclose(navg, rnavg, rtol=1e-5, atol=1e-5)          # exact path
    assert jnp.allclose(rep, rrep, rtol=2e-2, atol=5e-3)            # bf16 MLP
    assert jnp.allclose(p1, rp1, rtol=2e-2, atol=5e-3)
    assert jnp.allclose(y, ry, rtol=2e-2, atol=5e-3)
    assert neg1 == -1

    print("KERNEL_OK")
</pallas_src>

<mosaic_0001>
module attributes {stable_mosaic.version = 11 : i64} {
  func.func @cfr_kernel(%arg0: i32, %arg1: i32, %arg2: memref<128x128xbf16, #tpu.memory_space<vmem>>, %arg3: memref<128x2xbf16, #tpu.memory_space<vmem>>, %arg4: memref<128x16xbf16, #tpu.memory_space<vmem>>, %arg5: memref<128x1xf32, #tpu.memory_space<vmem>>, %arg6: memref<16x32xbf16, #tpu.memory_space<vmem>>, %arg7: memref<1x32xf32, #tpu.memory_space<vmem>>, %arg8: memref<32x32xbf16, #tpu.memory_space<vmem>>, %arg9: memref<1x32xf32, #tpu.memory_space<vmem>>, %arg10: memref<32x65xbf16, #tpu.memory_space<vmem>>, %arg11: memref<1x65xf32, #tpu.memory_space<vmem>>, %arg12: memref<64x2xf32, #tpu.memory_space<vmem>>, %arg13: memref<1x2xf32, #tpu.memory_space<vmem>>, %arg14: memref<128x128xf32, #tpu.memory_space<vmem>>, %arg15: memref<128x2xf32, #tpu.memory_space<vmem>>) attributes {dimension_semantics = [#tpu.dimension_semantics<parallel>, #tpu.dimension_semantics<arbitrary>], iteration_bounds = array<i64: 2, 2>, scalar_prefetch = 0 : i64, scratch_operands = 1 : i64, tpu.core_type = #tpu.core_type<tc>, window_params = [{transform_indices = @transform_0, window_bounds = array<i64: 128, 128>}, {transform_indices = @transform_1, window_bounds = array<i64: 128, 2>}, {transform_indices = @transform_2, window_bounds = array<i64: 128, 16>}, {transform_indices = @transform_3, window_bounds = array<i64: 128, 1>}, {pipeline_mode = #tpu.pipeline_mode<synchronous>, transform_indices = @transform_4, window_bounds = array<i64: 16, 32>}, {pipeline_mode = #tpu.pipeline_mode<synchronous>, transform_indices = @transform_5, window_bounds = array<i64: 1, 32>}, {pipeline_mode = #tpu.pipeline_mode<synchronous>, transform_indices = @transform_6, window_bounds = array<i64: 32, 32>}, {pipeline_mode = #tpu.pipeline_mode<synchronous>, transform_indices = @transform_7, window_bounds = array<i64: 1, 32>}, {pipeline_mode = #tpu.pipeline_mode<synchronous>, transform_indices = @transform_8, window_bounds = array<i64: 32, 65>}, {pipeline_mode = #tpu.pipeline_mode<synchronous>, transform_indices = @transform_9, window_bounds = array<i64: 1, 65>}, {pipeline_mode = #tpu.pipeline_mode<synchronous>, transform_indices = @transform_10, window_bounds = array<i64: 64, 2>}, {pipeline_mode = #tpu.pipeline_mode<synchronous>, transform_indices = @transform_11, window_bounds = array<i64: 1, 2>}, {transform_indices = @transform_12, window_bounds = array<i64: 128, 128>}]} {
    %c0_i32 = arith.constant 0 : i32
    %0 = arith.cmpi eq, %arg1, %c0_i32 : i32
    %1 = arith.extui %0 : i1 to i32
    %c0_i32_0 = arith.constant 0 : i32
    %2 = arith.cmpi ne, %1, %c0_i32_0 : i32
    scf.if %2 {
      %cst_9 = arith.constant 0.000000e+00 : f32
      %12 = vector.broadcast %cst_9 : f32 to vector<128x2xf32>
      %c0_10 = arith.constant 0 : index
      %c0_11 = arith.constant 0 : index
      %13 = vector.load %arg15[%c0_10, %c0_11] : memref<128x2xf32, #tpu.memory_space<vmem>>, vector<128x2xf32>
      tpu.vector_store %arg15[%c0_10, %c0_11], %12 {strides = array<i32>} : memref<128x2xf32, #tpu.memory_space<vmem>>, vector<128x2xf32>,
    } else {
    }
    %c0 = arith.constant 0 : index
    %c0_1 = arith.constant 0 : index
    %3 = vector.load %arg2[%c0, %c0_1] : memref<128x128xbf16, #tpu.memory_space<vmem>>, vector<128x128xbf16>
    %c0_2 = arith.constant 0 : index
    %c0_3 = arith.constant 0 : index
    %4 = vector.load %arg3[%c0_2, %c0_3] : memref<128x2xbf16, #tpu.memory_space<vmem>>, vector<128x2xbf16>
    %cst = arith.constant dense<0.000000e+00> : vector<128x2xf32>
    %5 = tpu.matmul %3, %4, %cst {dimension_numbers = #tpu.dot_dimension_numbers<[1], [0], [0], [1], [0, 0, 1, 1], [], []>} : vector<128x128xbf16>, vector<128x2xbf16>, vector<128x2xf32> -> vector<128x2xf32>
    %c0_4 = arith.constant 0 : index
    %c0_5 = arith.constant 0 : index
    %6 = vector.load %arg15[%c0_4, %c0_5] : memref<128x2xf32, #tpu.memory_space<vmem>>, vector<128x2xf32>
    %7 = arith.addf %6, %5 : vector<128x2xf32>
    %c0_6 = arith.constant 0 : index
    %c0_7 = arith.constant 0 : index
    %8 = vector.load %arg15[%c0_6, %c0_7] : memref<128x2xf32, #tpu.memory_space<vmem>>, vector<128x2xf32>
    tpu.vector_store %arg15[%c0_6, %c0_7], %7 {strides = array<i32>} : memref<128x2xf32, #tpu.memory_space<vmem>>, vector<128x2xf32>,
    %c1_i32 = arith.constant 1 : i32
    %9 = arith.cmpi eq, %arg1, %c1_i32 : i32
    %10 = arith.extui %9 : i1 to i32
    %c0_i32_8 = arith.constant 0 : i32
    %11 = arith.cmpi ne, %10, %c0_i32_8 : i32
    scf.if %11 {
      %c0_9 = arith.constant 0 : index
      %c0_10 = arith.constant 0 : index
      %12 = vector.load %arg15[%c0_9, %c0_10] : memref<128x2xf32, #tpu.memory_space<vmem>>, vector<128x2xf32>
      %13 = vector.extract_strided_slice %12 {offsets = [0, 0], sizes = [128, 1], strides = [1, 1]} : vector<128x2xf32> to vector<128x1xf32>
      %14 = vector.extract_strided_slice %12 {offsets = [0, 1], sizes = [128, 1], strides = [1, 1]} : vector<128x2xf32> to vector<128x1xf32>
      %15 = arith.divf %13, %14 : vector<128x1xf32>
      %c0_11 = arith.constant 0 : index
      %c0_12 = arith.constant 0 : index
      %16 = vector.load %arg4[%c0_11, %c0_12] : memref<128x16xbf16, #tpu.memory_space<vmem>>, vector<128x16xbf16>
      %c0_13 = arith.constant 0 : index
      %c0_14 = arith.constant 0 : index
      %17 = vector.load %arg6[%c0_13, %c0_14] : memref<16x32xbf16, #tpu.memory_space<vmem>>, vector<16x32xbf16>
      %cst_15 = arith.constant dense<0.000000e+00> : vector<128x32xf32>
      %18 = tpu.matmul %16, %17, %cst_15 {dimension_numbers = #tpu.dot_dimension_numbers<[1], [0], [0], [1], [0, 0, 1, 1], [], []>} : vector<128x16xbf16>, vector<16x32xbf16>, vector<128x32xf32> -> vector<128x32xf32>
      %c0_16 = arith.constant 0 : index
      %c0_17 = arith.constant 0 : index
      %19 = vector.load %arg7[%c0_16, %c0_17] : memref<1x32xf32, #tpu.memory_space<vmem>>, vector<1x32xf32>
      %20 = vector.broadcast %19 : vector<1x32xf32> to vector<128x32xf32>
      %21 = arith.addf %18, %20 : vector<128x32xf32>
      %cst_18 = arith.constant 0.000000e+00 : f32
      %22 = vector.broadcast %cst_18 : f32 to vector<128x32xf32>
      %23 = arith.maximumf %21, %22 : vector<128x32xf32>
      %24 = arith.truncf %23 : vector<128x32xf32> to vector<128x32xbf16>
      %c0_19 = arith.constant 0 : index
      %c0_20 = arith.constant 0 : index
      %25 = vector.load %arg8[%c0_19, %c0_20] : memref<32x32xbf16, #tpu.memory_space<vmem>>, vector<32x32xbf16>
      %cst_21 = arith.constant dense<0.000000e+00> : vector<128x32xf32>
      %26 = tpu.matmul %24, %25, %cst_21 {dimension_numbers = #tpu.dot_dimension_numbers<[1], [0], [0], [1], [0, 0, 1, 1], [], []>} : vector<128x32xbf16>, vector<32x32xbf16>, vector<128x32xf32> -> vector<128x32xf32>
      %c0_22 = arith.constant 0 : index
      %c0_23 = arith.constant 0 : index
      %27 = vector.load %arg9[%c0_22, %c0_23] : memref<1x32xf32, #tpu.memory_space<vmem>>, vector<1x32xf32>
      %28 = vector.broadcast %27 : vector<1x32xf32> to vector<128x32xf32>
      %29 = arith.addf %26, %28 : vector<128x32xf32>
      %cst_24 = arith.constant 0.000000e+00 : f32
      %30 = vector.broadcast %cst_24 : f32 to vector<128x32xf32>
      %31 = arith.maximumf %29, %30 : vector<128x32xf32>
      %32 = arith.truncf %31 : vector<128x32xf32> to vector<128x32xbf16>
      %c0_25 = arith.constant 0 : index
      %c0_26 = arith.constant 0 : index
      %33 = vector.load %arg10[%c0_25, %c0_26] : memref<32x65xbf16, #tpu.memory_space<vmem>>, vector<32x65xbf16>
      %cst_27 = arith.constant dense<0.000000e+00> : vector<128x65xf32>
      %34 = tpu.matmul %32, %33, %cst_27 {dimension_numbers = #tpu.dot_dimension_numbers<[1], [0], [0], [1], [0, 0, 1, 1], [], []>} : vector<128x32xbf16>, vector<32x65xbf16>, vector<128x65xf32> -> vector<128x65xf32>
      %c0_28 = arith.constant 0 : index
      %c0_29 = arith.constant 0 : index
      %35 = vector.load %arg11[%c0_28, %c0_29] : memref<1x65xf32, #tpu.memory_space<vmem>>, vector<1x65xf32>
      %36 = vector.broadcast %35 : vector<1x65xf32> to vector<128x65xf32>
      %37 = arith.addf %34, %36 : vector<128x65xf32>
      %38 = vector.extract_strided_slice %37 {offsets = [0, 0], sizes = [128, 64], strides = [1, 1]} : vector<128x65xf32> to vector<128x64xf32>
      %cst_30 = arith.constant 0.000000e+00 : f32
      %39 = vector.broadcast %cst_30 : f32 to vector<128x64xf32>
      %40 = arith.maximumf %38, %39 : vector<128x64xf32>
      %41 = vector.extract_strided_slice %37 {offsets = [0, 64], sizes = [128, 1], strides = [1, 1]} : vector<128x65xf32> to vector<128x1xf32>
      %42 = arith.negf %41 : vector<128x1xf32>
      %43 = math.exp %42 : vector<128x1xf32>
      %cst_31 = arith.constant 1.000000e+00 : f32
      %44 = vector.broadcast %cst_31 : f32 to vector<128x1xf32>
      %45 = arith.addf %44, %43 : vector<128x1xf32>
      %46 = arith.divf %44, %45 : vector<128x1xf32>
      %c0_32 = arith.constant 0 : index
      %c0_33 = arith.constant 0 : index
      %47 = vector.load %arg12[%c0_32, %c0_33] : memref<64x2xf32, #tpu.memory_space<vmem>>, vector<64x2xf32>
      %cst_34 = arith.constant dense<0.000000e+00> : vector<128x2xf32>
      %48 = tpu.matmul %40, %47, %cst_34 {dimension_numbers = #tpu.dot_dimension_numbers<[1], [0], [0], [1], [0, 0, 1, 1], [], []>} : vector<128x64xf32>, vector<64x2xf32>, vector<128x2xf32> -> vector<128x2xf32>
      %c0_35 = arith.constant 0 : index
      %c0_36 = arith.constant 0 : index
      %49 = vector.load %arg13[%c0_35, %c0_36] : memref<1x2xf32, #tpu.memory_space<vmem>>, vector<1x2xf32>
      %50 = vector.broadcast %49 : vector<1x2xf32> to vector<128x2xf32>
      %51 = arith.addf %48, %50 : vector<128x2xf32>
      %c0_37 = arith.constant 0 : index
      %c0_38 = arith.constant 0 : index
      %52 = vector.load %arg5[%c0_37, %c0_38] : memref<128x1xf32, #tpu.memory_space<vmem>>, vector<128x1xf32>
      %cst_39 = arith.constant 0.000000e+00 : f32
      %53 = vector.broadcast %cst_39 : f32 to vector<128x1xf32>
      %54 = arith.cmpf ogt, %52, %53 : vector<128x1xf32>
      %55 = vector.extract_strided_slice %51 {offsets = [0, 1], sizes = [128, 1], strides = [1, 1]} : vector<128x2xf32> to vector<128x1xf32>
      %56 = vector.extract_strided_slice %51 {offsets = [0, 0], sizes = [128, 1], strides = [1, 1]} : vector<128x2xf32> to vector<128x1xf32>
      %57 = arith.select %54, %55, %56 : vector<128x1xi1>, vector<128x1xf32>
      %58 = arith.negf %57 : vector<128x1xf32>
      %59 = math.exp %58 : vector<128x1xf32>
      %cst_40 = arith.constant 1.000000e+00 : f32
      %60 = vector.broadcast %cst_40 : f32 to vector<128x1xf32>
      %61 = arith.addf %60, %59 : vector<128x1xf32>
      %62 = arith.divf %60, %61 : vector<128x1xf32>
      %cst_41 = arith.constant 0.000000e+00 : f32
      %63 = vector.broadcast %cst_41 : f32 to vector<128x93xf32>
      %64 = tpu.concatenate %31, %46, %62, %15, %63 in 1 : vector<128x32xf32>, vector<128x1xf32>, vector<128x1xf32>, vector<128x1xf32>, vector<128x93xf32> -> vector<128x128xf32>
      %c0_42 = arith.constant 0 : index
      %c0_43 = arith.constant 0 : index
      %65 = vector.load %arg14[%c0_42, %c0_43] : memref<128x128xf32, #tpu.memory_space<vmem>>, vector<128x128xf32>
      tpu.vector_store %arg14[%c0_42, %c0_43], %64 {strides = array<i32>} : memref<128x128xf32, #tpu.memory_space<vmem>>, vector<128x128xf32>,
    } else {
    }
    return
  }
  func.func @transform_0(%arg0: i32, %arg1: i32) -> (i32, i32) {
    %c0_i32 = arith.constant 0 : i32
    return %arg0, %arg1 : i32, i32
  }
  func.func @transform_1(%arg0: i32, %arg1: i32) -> (i32, i32) {
    %c0_i32 = arith.constant 0 : i32
    %c0_i32_0 = arith.constant 0 : i32
    return %arg1, %c0_i32 : i32, i32
  }
  func.func @transform_2(%arg0: i32, %arg1: i32) -> (i32, i32) {
    %c0_i32 = arith.constant 0 : i32
    %c0_i32_0 = arith.constant 0 : i32
    return %arg0, %c0_i32 : i32, i32
  }
  func.func @transform_3(%arg0: i32, %arg1: i32) -> (i32, i32) {
    %c0_i32 = arith.constant 0 : i32
    %c0_i32_0 = arith.constant 0 : i32
    return %arg0, %c0_i32 : i32, i32
  }
  func.func @transform_4(%arg0: i32, %arg1: i32) -> (i32, i32) {
    %c0_i32 = arith.constant 0 : i32
    %c0_i32_0 = arith.constant 0 : i32
    %c0_i32_1 = arith.constant 0 : i32
    return %c0_i32, %c0_i32_0 : i32, i32
  }
  func.func @transform_5(%arg0: i32, %arg1: i32) -> (i32, i32) {
    %c0_i32 = arith.constant 0 : i32
    %c0_i32_0 = arith.constant 0 : i32
    %c0_i32_1 = arith.constant 0 : i32
    return %c0_i32, %c0_i32_0 : i32, i32
  }
  func.func @transform_6(%arg0: i32, %arg1: i32) -> (i32, i32) {
    %c0_i32 = arith.constant 0 : i32
    %c0_i32_0 = arith.constant 0 : i32
    %c0_i32_1 = arith.constant 0 : i32
    return %c0_i32, %c0_i32_0 : i32, i32
  }
  func.func @transform_7(%arg0: i32, %arg1: i32) -> (i32, i32) {
    %c0_i32 = arith.constant 0 : i32
    %c0_i32_0 = arith.constant 0 : i32
    %c0_i32_1 = arith.constant 0 : i32
    return %c0_i32, %c0_i32_0 : i32, i32
  }
  func.func @transform_8(%arg0: i32, %arg1: i32) -> (i32, i32) {
    %c0_i32 = arith.constant 0 : i32
    %c0_i32_0 = arith.constant 0 : i32
    %c0_i32_1 = arith.constant 0 : i32
    return %c0_i32, %c0_i32_0 : i32, i32
  }
  func.func @transform_9(%arg0: i32, %arg1: i32) -> (i32, i32) {
    %c0_i32 = arith.constant 0 : i32
    %c0_i32_0 = arith.constant 0 : i32
    %c0_i32_1 = arith.constant 0 : i32
    return %c0_i32, %c0_i32_0 : i32, i32
  }
  func.func @transform_10(%arg0: i32, %arg1: i32) -> (i32, i32) {
    %c0_i32 = arith.constant 0 : i32
    %c0_i32_0 = arith.constant 0 : i32
    %c0_i32_1 = arith.constant 0 : i32
    return %c0_i32, %c0_i32_0 : i32, i32
  }
  func.func @transform_11(%arg0: i32, %arg1: i32) -> (i32, i32) {
    %c0_i32 = arith.constant 0 : i32
    %c0_i32_0 = arith.constant 0 : i32
    %c0_i32_1 = arith.constant 0 : i32
    return %c0_i32, %c0_i32_0 : i32, i32
  }
  func.func @transform_12(%arg0: i32, %arg1: i32) -> (i32, i32) {
    %c0_i32 = arith.constant 0 : i32
    %c0_i32_0 = arith.constant 0 : i32
    return %arg0, %c0_i32 : i32, i32
  }
}

module attributes {stable_mosaic.version = 11 : i64} {
  func.func @cfr_kernel(%arg0: i32, %arg1: i32, %arg2: memref<128x128xbf16, #tpu.memory_space<vmem>>, %arg3: memref<128x2xbf16, #tpu.memory_space<vmem>>, %arg4: memref<128x16xbf16, #tpu.memory_space<vmem>>, %arg5: memref<128x1xf32, #tpu.memory_space<vmem>>, %arg6: memref<16x32xbf16, #tpu.memory_space<vmem>>, %arg7: memref<1x32xf32, #tpu.memory_space<vmem>>, %arg8: memref<32x32xbf16, #tpu.memory_space<vmem>>, %arg9: memref<1x32xf32, #tpu.memory_space<vmem>>, %arg10: memref<32x65xbf16, #tpu.memory_space<vmem>>, %arg11: memref<1x65xf32, #tpu.memory_space<vmem>>, %arg12: memref<64x2xf32, #tpu.memory_space<vmem>>, %arg13: memref<1x2xf32, #tpu.memory_space<vmem>>, %arg14: memref<128x128xf32, #tpu.memory_space<vmem>>, %arg15: memref<128x2xf32, #tpu.memory_space<vmem>>) attributes {dimension_semantics = [#tpu.dimension_semantics<parallel>, #tpu.dimension_semantics<arbitrary>], iteration_bounds = array<i64: 2, 2>, scalar_prefetch = 0 : i64, scratch_operands = 1 : i64, tpu.core_type = #tpu.core_type<tc>, window_params = [{transform_indices = @transform_0, window_bounds = array<i64: 128, 128>}, {transform_indices = @transform_1, window_bounds = array<i64: 128, 2>}, {transform_indices = @transform_2, window_bounds = array<i64: 128, 16>}, {transform_indices = @transform_3, window_bounds = array<i64: 128, 1>}, {pipeline_mode = #tpu.pipeline_mode<synchronous>, transform_indices = @transform_4, window_bounds = array<i64: 16, 32>}, {pipeline_mode = #tpu.pipeline_mode<synchronous>, transform_indices = @transform_5, window_bounds = array<i64: 1, 32>}, {pipeline_mode = #tpu.pipeline_mode<synchronous>, transform_indices = @transform_6, window_bounds = array<i64: 32, 32>}, {pipeline_mode = #tpu.pipeline_mode<synchronous>, transform_indices = @transform_7, window_bounds = array<i64: 1, 32>}, {pipeline_mode = #tpu.pipeline_mode<synchronous>, transform_indices = @transform_8, window_bounds = array<i64: 32, 65>}, {pipeline_mode = #tpu.pipeline_mode<synchronous>, transform_indices = @transform_9, window_bounds = array<i64: 1, 65>}, {pipeline_mode = #tpu.pipeline_mode<synchronous>, transform_indices = @transform_10, window_bounds = array<i64: 64, 2>}, {pipeline_mode = #tpu.pipeline_mode<synchronous>, transform_indices = @transform_11, window_bounds = array<i64: 1, 2>}, {transform_indices = @transform_12, window_bounds = array<i64: 128, 128>}]} {
    %c0_i32 = arith.constant 0 : i32
    %0 = arith.cmpi eq, %arg1, %c0_i32 : i32
    %1 = arith.extui %0 : i1 to i32
    %c0_i32_0 = arith.constant 0 : i32
    %2 = arith.cmpi ne, %1, %c0_i32_0 : i32
    scf.if %2 {
      %cst_9 = arith.constant 0.000000e+00 : f32
      %12 = vector.broadcast %cst_9 : f32 to vector<128x2xf32>
      %c0_10 = arith.constant 0 : index
      %c0_11 = arith.constant 0 : index
      %13 = vector.load %arg15[%c0_10, %c0_11] : memref<128x2xf32, #tpu.memory_space<vmem>>, vector<128x2xf32>
      tpu.vector_store %arg15[%c0_10, %c0_11], %12 {strides = array<i32>} : memref<128x2xf32, #tpu.memory_space<vmem>>, vector<128x2xf32>,
    } else {
    }
    %c0 = arith.constant 0 : index
    %c0_1 = arith.constant 0 : index
    %3 = vector.load %arg2[%c0, %c0_1] : memref<128x128xbf16, #tpu.memory_space<vmem>>, vector<128x128xbf16>
    %c0_2 = arith.constant 0 : index
    %c0_3 = arith.constant 0 : index
    %4 = vector.load %arg3[%c0_2, %c0_3] : memref<128x2xbf16, #tpu.memory_space<vmem>>, vector<128x2xbf16>
    %cst = arith.constant dense<0.000000e+00> : vector<128x2xf32>
    %5 = tpu.matmul %3, %4, %cst {dimension_numbers = #tpu.dot_dimension_numbers<[1], [0], [0], [1], [0, 0, 1, 1], [], []>} : vector<128x128xbf16>, vector<128x2xbf16>, vector<128x2xf32> -> vector<128x2xf32>
    %c0_4 = arith.constant 0 : index
    %c0_5 = arith.constant 0 : index
    %6 = vector.load %arg15[%c0_4, %c0_5] : memref<128x2xf32, #tpu.memory_space<vmem>>, vector<128x2xf32>
    %7 = arith.addf %6, %5 : vector<128x2xf32>
    %c0_6 = arith.constant 0 : index
    %c0_7 = arith.constant 0 : index
    %8 = vector.load %arg15[%c0_6, %c0_7] : memref<128x2xf32, #tpu.memory_space<vmem>>, vector<128x2xf32>
    tpu.vector_store %arg15[%c0_6, %c0_7], %7 {strides = array<i32>} : memref<128x2xf32, #tpu.memory_space<vmem>>, vector<128x2xf32>,
    %c1_i32 = arith.constant 1 : i32
    %9 = arith.cmpi eq, %arg1, %c1_i32 : i32
    %10 = arith.extui %9 : i1 to i32
    %c0_i32_8 = arith.constant 0 : i32
    %11 = arith.cmpi ne, %10, %c0_i32_8 : i32
    scf.if %11 {
      %c0_9 = arith.constant 0 : index
      %c0_10 = arith.constant 0 : index
      %12 = vector.load %arg15[%c0_9, %c0_10] : memref<128x2xf32, #tpu.memory_space<vmem>>, vector<128x2xf32>
      %13 = vector.extract_strided_slice %12 {offsets = [0, 0], sizes = [128, 1], strides = [1, 1]} : vector<128x2xf32> to vector<128x1xf32>
      %14 = vector.extract_strided_slice %12 {offsets = [0, 1], sizes = [128, 1], strides = [1, 1]} : vector<128x2xf32> to vector<128x1xf32>
      %15 = arith.divf %13, %14 : vector<128x1xf32>
      %c0_11 = arith.constant 0 : index
      %c0_12 = arith.constant 0 : index
      %16 = vector.load %arg4[%c0_11, %c0_12] : memref<128x16xbf16, #tpu.memory_space<vmem>>, vector<128x16xbf16>
      %c0_13 = arith.constant 0 : index
      %c0_14 = arith.constant 0 : index
      %17 = vector.load %arg6[%c0_13, %c0_14] : memref<16x32xbf16, #tpu.memory_space<vmem>>, vector<16x32xbf16>
      %cst_15 = arith.constant dense<0.000000e+00> : vector<128x32xf32>
      %18 = tpu.matmul %16, %17, %cst_15 {dimension_numbers = #tpu.dot_dimension_numbers<[1], [0], [0], [1], [0, 0, 1, 1], [], []>} : vector<128x16xbf16>, vector<16x32xbf16>, vector<128x32xf32> -> vector<128x32xf32>
      %c0_16 = arith.constant 0 : index
      %c0_17 = arith.constant 0 : index
      %19 = vector.load %arg7[%c0_16, %c0_17] : memref<1x32xf32, #tpu.memory_space<vmem>>, vector<1x32xf32>
      %20 = vector.broadcast %19 : vector<1x32xf32> to vector<128x32xf32>
      %21 = arith.addf %18, %20 : vector<128x32xf32>
      %cst_18 = arith.constant 0.000000e+00 : f32
      %22 = vector.broadcast %cst_18 : f32 to vector<128x32xf32>
      %23 = arith.maximumf %21, %22 : vector<128x32xf32>
      %24 = arith.truncf %23 : vector<128x32xf32> to vector<128x32xbf16>
      %c0_19 = arith.constant 0 : index
      %c0_20 = arith.constant 0 : index
      %25 = vector.load %arg8[%c0_19, %c0_20] : memref<32x32xbf16, #tpu.memory_space<vmem>>, vector<32x32xbf16>
      %cst_21 = arith.constant dense<0.000000e+00> : vector<128x32xf32>
      %26 = tpu.matmul %24, %25, %cst_21 {dimension_numbers = #tpu.dot_dimension_numbers<[1], [0], [0], [1], [0, 0, 1, 1], [], []>} : vector<128x32xbf16>, vector<32x32xbf16>, vector<128x32xf32> -> vector<128x32xf32>
      %c0_22 = arith.constant 0 : index
      %c0_23 = arith.constant 0 : index
      %27 = vector.load %arg9[%c0_22, %c0_23] : memref<1x32xf32, #tpu.memory_space<vmem>>, vector<1x32xf32>
      %28 = vector.broadcast %27 : vector<1x32xf32> to vector<128x32xf32>
      %29 = arith.addf %26, %28 : vector<128x32xf32>
      %cst_24 = arith.constant 0.000000e+00 : f32
      %30 = vector.broadcast %cst_24 : f32 to vector<128x32xf32>
      %31 = arith.maximumf %29, %30 : vector<128x32xf32>
      %32 = arith.truncf %31 : vector<128x32xf32> to vector<128x32xbf16>
      %c0_25 = arith.constant 0 : index
      %c0_26 = arith.constant 0 : index
      %33 = vector.load %arg10[%c0_25, %c0_26] : memref<32x65xbf16, #tpu.memory_space<vmem>>, vector<32x65xbf16>
      %cst_27 = arith.constant dense<0.000000e+00> : vector<128x65xf32>
      %34 = tpu.matmul %32, %33, %cst_27 {dimension_numbers = #tpu.dot_dimension_numbers<[1], [0], [0], [1], [0, 0, 1, 1], [], []>} : vector<128x32xbf16>, vector<32x65xbf16>, vector<128x65xf32> -> vector<128x65xf32>
      %c0_28 = arith.constant 0 : index
      %c0_29 = arith.constant 0 : index
      %35 = vector.load %arg11[%c0_28, %c0_29] : memref<1x65xf32, #tpu.memory_space<vmem>>, vector<1x65xf32>
      %36 = vector.broadcast %35 : vector<1x65xf32> to vector<128x65xf32>
      %37 = arith.addf %34, %36 : vector<128x65xf32>
      %38 = vector.extract_strided_slice %37 {offsets = [0, 0], sizes = [128, 64], strides = [1, 1]} : vector<128x65xf32> to vector<128x64xf32>
      %cst_30 = arith.constant 0.000000e+00 : f32
      %39 = vector.broadcast %cst_30 : f32 to vector<128x64xf32>
      %40 = arith.maximumf %38, %39 : vector<128x64xf32>
      %41 = vector.extract_strided_slice %37 {offsets = [0, 64], sizes = [128, 1], strides = [1, 1]} : vector<128x65xf32> to vector<128x1xf32>
      %42 = arith.negf %41 : vector<128x1xf32>
      %43 = math.exp %42 : vector<128x1xf32>
      %cst_31 = arith.constant 1.000000e+00 : f32
      %44 = vector.broadcast %cst_31 : f32 to vector<128x1xf32>
      %45 = arith.addf %44, %43 : vector<128x1xf32>
      %46 = arith.divf %44, %45 : vector<128x1xf32>
      %c0_32 = arith.constant 0 : index
      %c0_33 = arith.constant 0 : index
      %47 = vector.load %arg12[%c0_32, %c0_33] : memref<64x2xf32, #tpu.memory_space<vmem>>, vector<64x2xf32>
      %cst_34 = arith.constant dense<0.000000e+00> : vector<128x2xf32>
      %48 = tpu.matmul %40, %47, %cst_34 {dimension_numbers = #tpu.dot_dimension_numbers<[1], [0], [0], [1], [0, 0, 1, 1], [], []>} : vector<128x64xf32>, vector<64x2xf32>, vector<128x2xf32> -> vector<128x2xf32>
      %c0_35 = arith.constant 0 : index
      %c0_36 = arith.constant 0 : index
      %49 = vector.load %arg13[%c0_35, %c0_36] : memref<1x2xf32, #tpu.memory_space<vmem>>, vector<1x2xf32>
      %50 = vector.broadcast %49 : vector<1x2xf32> to vector<128x2xf32>
      %51 = arith.addf %48, %50 : vector<128x2xf32>
      %c0_37 = arith.constant 0 : index
      %c0_38 = arith.constant 0 : index
      %52 = vector.load %arg5[%c0_37, %c0_38] : memref<128x1xf32, #tpu.memory_space<vmem>>, vector<128x1xf32>
      %cst_39 = arith.constant 0.000000e+00 : f32
      %53 = vector.broadcast %cst_39 : f32 to vector<128x1xf32>
      %54 = arith.cmpf ogt, %52, %53 : vector<128x1xf32>
      %55 = vector.extract_strided_slice %51 {offsets = [0, 1], sizes = [128, 1], strides = [1, 1]} : vector<128x2xf32> to vector<128x1xf32>
      %56 = vector.extract_strided_slice %51 {offsets = [0, 0], sizes = [128, 1], strides = [1, 1]} : vector<128x2xf32> to vector<128x1xf32>
      %57 = arith.select %54, %55, %56 : vector<128x1xi1>, vector<128x1xf32>
      %58 = arith.negf %57 : vector<128x1xf32>
      %59 = math.exp %58 : vector<128x1xf32>
      %cst_40 = arith.constant 1.000000e+00 : f32
      %60 = vector.broadcast %cst_40 : f32 to vector<128x1xf32>
      %61 = arith.addf %60, %59 : vector<128x1xf32>
      %62 = arith.divf %60, %61 : vector<128x1xf32>
      %cst_41 = arith.constant 0.000000e+00 : f32
      %63 = vector.broadcast %cst_41 : f32 to vector<128x93xf32>
      %64 = tpu.concatenate %31, %46, %62, %15, %63 in 1 : vector<128x32xf32>, vector<128x1xf32>, vector<128x1xf32>, vector<128x1xf32>, vector<128x93xf32> -> vector<128x128xf32>
      %c0_42 = arith.constant 0 : index
      %c0_43 = arith.constant 0 : index
      %65 = vector.load %arg14[%c0_42, %c0_43] : memref<128x128xf32, #tpu.memory_space<vmem>>, vector<128x128xf32>
      tpu.vector_store %arg14[%c0_42, %c0_43], %64 {strides = array<i32>} : memref<128x128xf32, #tpu.memory_space<vmem>>, vector<128x128xf32>,
    } else {
    }
    return
  }
  func.func @transform_0(%arg0: i32, %arg1: i32) -> (i32, i32) {
    %c0_i32 = arith.constant 0 : i32
    return %arg0, %arg1 : i32, i32
  }
  func.func @transform_1(%arg0: i32, %arg1: i32) -> (i32, i32) {
    %c0_i32 = arith.constant 0 : i32
    %c0_i32_0 = arith.constant 0 : i32
    return %arg1, %c0_i32 : i32, i32
  }
  func.func @transform_2(%arg0: i32, %arg1: i32) -> (i32, i32) {
    %c0_i32 = arith.constant 0 : i32
    %c0_i32_0 = arith.constant 0 : i32
    return %arg0, %c0_i32 : i32, i32
  }
  func.func @transform_3(%arg0: i32, %arg1: i32) -> (i32, i32) {
    %c0_i32 = arith.constant 0 : i32
    %c0_i32_0 = arith.constant 0 : i32
    return %arg0, %c0_i32 : i32, i32
  }
  func.func @transform_4(%arg0: i32, %arg1: i32) -> (i32, i32) {
    %c0_i32 = arith.constant 0 : i32
    %c0_i32_0 = arith.constant 0 : i32
    %c0_i32_1 = arith.constant 0 : i32
    return %c0_i32, %c0_i32_0 : i32, i32
  }
  func.func @transform_5(%arg0: i32, %arg1: i32) -> (i32, i32) {
    %c0_i32 = arith.constant 0 : i32
    %c0_i32_0 = arith.constant 0 : i32
    %c0_i32_1 = arith.constant 0 : i32
    return %c0_i32, %c0_i32_0 : i32, i32
  }
  func.func @transform_6(%arg0: i32, %arg1: i32) -> (i32, i32) {
    %c0_i32 = arith.constant 0 : i32
    %c0_i32_0 = arith.constant 0 : i32
    %c0_i32_1 = arith.constant 0 : i32
    return %c0_i32, %c0_i32_0 : i32, i32
  }
  func.func @transform_7(%arg0: i32, %arg1: i32) -> (i32, i32) {
    %c0_i32 = arith.constant 0 : i32
    %c0_i32_0 = arith.constant 0 : i32
    %c0_i32_1 = arith.constant 0 : i32
    return %c0_i32, %c0_i32_0 : i32, i32
  }
  func.func @transform_8(%arg0: i32, %arg1: i32) -> (i32, i32) {
    %c0_i32 = arith.constant 0 : i32
    %c0_i32_0 = arith.constant 0 : i32
    %c0_i32_1 = arith.constant 0 : i32
    return %c0_i32, %c0_i32_0 : i32, i32
  }
  func.func @transform_9(%arg0: i32, %arg1: i32) -> (i32, i32) {
    %c0_i32 = arith.constant 0 : i32
    %c0_i32_0 = arith.constant 0 : i32
    %c0_i32_1 = arith.constant 0 : i32
    return %c0_i32, %c0_i32_0 : i32, i32
  }
  func.func @transform_10(%arg0: i32, %arg1: i32) -> (i32, i32) {
    %c0_i32 = arith.constant 0 : i32
    %c0_i32_0 = arith.constant 0 : i32
    %c0_i32_1 = arith.constant 0 : i32
    return %c0_i32, %c0_i32_0 : i32, i32
  }
  func.func @transform_11(%arg0: i32, %arg1: i32) -> (i32, i32) {
    %c0_i32 = arith.constant 0 : i32
    %c0_i32_0 = arith.constant 0 : i32
    %c0_i32_1 = arith.constant 0 : i32
    return %c0_i32, %c0_i32_0 : i32, i32
  }
  func.func @transform_12(%arg0: i32, %arg1: i32) -> (i32, i32) {
    %c0_i32 = arith.constant 0 : i32
    %c0_i32_0 = arith.constant 0 : i32
    return %arg0, %c0_i32 : i32, i32
  }
}

</mosaic_0001>

<llo_original>
// kernel: tpu_custom_call.1
$region0: #{tpu_custom_call.1}
  #allocation0 [shape = 'u32[]', space=smem, size = 0x4, offset = 0x4, fixed_abs, tag = 'smem constant byte address 0x4 - core index']
  #allocation1 [shape = 'u32[72,128]{1,0:T(1,128)}', space=vmem, size = 0x9000, scoped, tag = 'internal scratch']
  #allocation2 [shape = 'f32[128,2]{1,0:T(8,128)}', space=vmem, size = 0x10000, scoped, tag = 'scratch operand']
  %s0 = inlined_call_operand.vmem [shape: bf16[256,256], index: 0, kind: input, shape index: {}]
  %s1 = inlined_call_operand.vmem [shape: bf16[256,2], index: 1, kind: input, shape index: {}]
  %s2 = inlined_call_operand.vmem [shape: bf16[256,16], index: 2, kind: input, shape index: {}]
  %s3 = inlined_call_operand.vmem [shape: f32[256,1], index: 3, kind: input, shape index: {}]
  %s4 = inlined_call_operand.vmem [shape: bf16[16,32], index: 4, kind: input, shape index: {}]
  %s5 = inlined_call_operand.vmem [shape: f32[1,32], index: 5, kind: input, shape index: {}]
  %s6 = inlined_call_operand.vmem [shape: bf16[32,32], index: 6, kind: input, shape index: {}]
  %s7 = inlined_call_operand.vmem [shape: f32[1,32], index: 7, kind: input, shape index: {}]
  %s8 = inlined_call_operand.vmem [shape: bf16[32,65], index: 8, kind: input, shape index: {}]
  %s9 = inlined_call_operand.vmem [shape: f32[1,65], index: 9, kind: input, shape index: {}]
  %s10 = inlined_call_operand.vmem [shape: f32[64,2], index: 10, kind: input, shape index: {}]
  %s11 = inlined_call_operand.vmem [shape: f32[1,2], index: 11, kind: input, shape index: {}]
  %s12 = inlined_call_operand.hbm [shape: f32[256,128], index: 12, kind: output, shape index: {}]
  %s13 = sld [smem:[#allocation0]]
  $region130: #{tpu_custom_call.1} parent=0
    _
  %s15 = ssub.s32 1, %s13
  %s16 = scalar_select 0, %s15, %s13
  $region1: #{tpu_custom_call.1} parent=0
    #allocation3 [shape = 'u8[65536]{0}', space=vmem, size = 0x10000, scoped, tag = 'input window, operand 0']
    #allocation4 [shape = 'u8[131072]{0}', space=vmem, size = 0x20000, scoped, tag = 'output window, operand 0']
    #allocation5 [shape = 's32[2]{0}', space=sflag, size = 0x8, scoped, tag = 'scoped memory for tpu_custom_call.1']
    %17 = vsyncpa [#allocation5], 0
    %s18 = scalar_lea.sflag [#allocation5], 1
    %19 = vsyncpa %s18, 0
    loop: start=0, step=1, limit=6
    $region2: #{tpu_custom_call.1} parent=1 // loop_pre_header
      _
    $region3: #{tpu_custom_call.1} parent=1 // loop_header
      %s21 = sphi 0, %s25
      %p22 = scmp.ge.s32.totalorder %s21, 6
      %s28 = sphi 0, %s40
      %s29 = sphi 0, %s36
      %s30 = sphi 0, %s28
      %s31 = sphi 0, %s29
      %s32 = sphi 0, %s30
      %s33 = sphi 0, %s31
      %s45 = sphi 0, %s47
      %s48 = sphi 0, %s45
      %s49 = sphi 0, %s48
      %s65 = sphi 0, %s49
      %s71 = sphi 0, %s73
      %s74 = sphi 0, %s71
      %s75 = sphi 0, %s74
      %s91 = sphi 0, %s75
      %s97 = sphi 0, %s99
      %s100 = sphi 0, %s97
      %s101 = sphi 0, %s100
      %s117 = sphi 0, %s101
      %s123 = sphi 0, %s125
      %s126 = sphi 0, %s123
      %s127 = sphi 0, %s126
      %s143 = sphi 0, %s127
      %s147 = sphi 0, %s147
      %s149 = sphi 0, %s147
      %s150 = sphi 0, %s149
      %s164 = sphi 0, %s150
      %s168 = sphi 0, %s168
      %s170 = sphi 0, %s168
      %s171 = sphi 0, %s170
      %s185 = sphi 0, %s171
      %s189 = sphi 0, %s189
      %s191 = sphi 0, %s189
      %s192 = sphi 0, %s191
      %s206 = sphi 0, %s192
      %s210 = sphi 0, %s210
      %s212 = sphi 0, %s210
      %s213 = sphi 0, %s212
      %s227 = sphi 0, %s213
      %s231 = sphi 0, %s231
      %s233 = sphi 0, %s231
      %s234 = sphi 0, %s233
      %s248 = sphi 0, %s234
      %s252 = sphi 0, %s252
      %s254 = sphi 0, %s252
      %s255 = sphi 0, %s254
      %s269 = sphi 0, %s255
      %s273 = sphi 0, %s273
      %s275 = sphi 0, %s273
      %s276 = sphi 0, %s275
      %s290 = sphi 0, %s276
      %s294 = sphi 0, %s294
      %s296 = sphi 0, %s294
      %s297 = sphi 0, %s296
      %s311 = sphi 0, %s297
      %s317 = sphi 0, %s319
      %s320 = sphi 0, %s317
      %s321 = sphi 0, %s320
      %s337 = sphi 0, %s321
    $region4: #{tpu_custom_call.1} parent=1 // loop_header_branch
      %24 = sbr.rel (%p22) target = $region8
    $region5: #{tpu_custom_call.1} parent=1 // loop_body
      %s26 = ssub.s32 %s21, 1
      %s27 = ssub.s32 %s21, 2
      %s34 = sadd.s32 1, %s29
      %p35 = scmp.ge.s32.totalorder %s34, 2
      %s36 = scalar_select %p35, 0, %s34
      %s37 = sadd.s32 1, %s28
      %s38 = scalar_select %p35, %s37, %s28
      %p39 = scmp.ge.s32.totalorder %s38, 2
      %s40 = scalar_select %p39, 0, %s38
      %s41 = ssub.s32 %s28, %s40
      %s42 = ssub.s32 %s29, %s36
      %s43 = sor.u32 %s41, %s42
      %p44 = scmp.eq.s32.totalorder %s43, 0
      %s46 = sadd.s32 %s45, 1
      %s47 = scalar_select %p44, %s45, %s46
      %p50 = pneg %p44
      %p51 = scmp.eq.s32.totalorder %s21, 3
      %p52 = por %p50, %p51
      %p53 = scmp.ne.s32.totalorder %s45, %s48
      %p54 = scmp.eq.s32.totalorder %s21, 0
      %p55 = por %p53, %p54
      %p56 = scmp.ne.s32.totalorder %s45, %s48
      %p57 = scmp.eq.s32.totalorder %s26, 3
      %p58 = por %p56, %p57
      %p59 = scmp.ne.s32.totalorder %s48, %s49
      %p60 = scmp.eq.s32.totalorder %s26, 0
      %p61 = por %p59, %p60
      %p62 = scmp.ne.s32.totalorder %s48, %s49
      %p63 = scmp.eq.s32.totalorder %s27, 3
      %p64 = por %p62, %p63
      %p66 = scmp.ne.s32.totalorder %s49, %s65
      %p67 = scmp.eq.s32.totalorder %s27, 0
      %p68 = por %p66, %p67
      %s69 = ssub.s32 %s29, %s36
      %p70 = scmp.eq.s32.totalorder %s69, 0
      %s72 = sadd.s32 %s71, 1
      %s73 = scalar_select %p70, %s71, %s72
      %p76 = pneg %p70
      %p77 = scmp.eq.s32.totalorder %s21, 3
      %p78 = por %p76, %p77
      %p79 = scmp.ne.s32.totalorder %s71, %s74
      %p80 = scmp.eq.s32.totalorder %s21, 0
      %p81 = por %p79, %p80
      %p82 = scmp.ne.s32.totalorder %s71, %s74
      %p83 = scmp.eq.s32.totalorder %s26, 3
      %p84 = por %p82, %p83
      %p85 = scmp.ne.s32.totalorder %s74, %s75
      %p86 = scmp.eq.s32.totalorder %s26, 0
      %p87 = por %p85, %p86
      %p88 = scmp.ne.s32.totalorder %s74, %s75
      %p89 = scmp.eq.s32.totalorder %s27, 3
      %p90 = por %p88, %p89
      %p92 = scmp.ne.s32.totalorder %s75, %s91
      %p93 = scmp.eq.s32.totalorder %s27, 0
      %p94 = por %p92, %p93
      %s95 = ssub.s32 %s28, %s40
      %p96 = scmp.eq.s32.totalorder %s95, 0
      %s98 = sadd.s32 %s97, 1
      %s99 = scalar_select %p96, %s97, %s98
      %p102 = pneg %p96
      %p103 = scmp.eq.s32.totalorder %s21, 3
      %p104 = por %p102, %p103
      %p105 = scmp.ne.s32.totalorder %s97, %s100
      %p106 = scmp.eq.s32.totalorder %s21, 0
      %p107 = por %p105, %p106
      %p108 = scmp.ne.s32.totalorder %s97, %s100
      %p109 = scmp.eq.s32.totalorder %s26, 3
      %p110 = por %p108, %p109
      %p111 = scmp.ne.s32.totalorder %s100, %s101
      %p112 = scmp.eq.s32.totalorder %s26, 0
      %p113 = por %p111, %p112
      %p114 = scmp.ne.s32.totalorder %s100, %s101
      %p115 = scmp.eq.s32.totalorder %s27, 3
      %p116 = por %p114, %p115
      %p118 = scmp.ne.s32.totalorder %s101, %s117
      %p119 = scmp.eq.s32.totalorder %s27, 0
      %p120 = por %p118, %p119
      %s121 = ssub.s32 %s28, %s40
      %p122 = scmp.eq.s32.totalorder %s121, 0
      %s124 = sadd.s32 %s123, 1
      %s125 = scalar_select %p122, %s123, %s124
      %p128 = pneg %p122
      %p129 = scmp.eq.s32.totalorder %s21, 3
      %p130 = por %p128, %p129
      %p131 = scmp.ne.s32.totalorder %s123, %s126
      %p132 = scmp.eq.s32.totalorder %s21, 0
      %p133 = por %p131, %p132
      %p134 = scmp.ne.s32.totalorder %s123, %s126
      %p135 = scmp.eq.s32.totalorder %s26, 3
      %p136 = por %p134, %p135
      %p137 = scmp.ne.s32.totalorder %s126, %s127
      %p138 = scmp.eq.s32.totalorder %s26, 0
      %p139 = por %p137, %p138
      %p140 = scmp.ne.s32.totalorder %s126, %s127
      %p141 = scmp.eq.s32.totalorder %s27, 3
      %p142 = por %p140, %p141
      %p144 = scmp.ne.s32.totalorder %s127, %s143
      %p145 = scmp.eq.s32.totalorder %s27, 0
      %p146 = por %p144, %p145
      %s148 = sadd.s32 %s147, 1
      %p151 = scmp.eq.s32.totalorder %s21, 3
      %p152 = scmp.ne.s32.totalorder %s147, %s149
      %p153 = scmp.eq.s32.totalorder %s21, 0
      %p154 = por %p152, %p153
      %p155 = scmp.ne.s32.totalorder %s147, %s149
      %p156 = scmp.eq.s32.totalorder %s26, 3
      %p157 = por %p155, %p156
      %p158 = scmp.ne.s32.totalorder %s149, %s150
      %p159 = scmp.eq.s32.totalorder %s26, 0
      %p160 = por %p158, %p159
      %p161 = scmp.ne.s32.totalorder %s149, %s150
      %p162 = scmp.eq.s32.totalorder %s27, 3
      %p163 = por %p161, %p162
      %p165 = scmp.ne.s32.totalorder %s150, %s164
      %p166 = scmp.eq.s32.totalorder %s27, 0
      %p167 = por %p165, %p166
      %s169 = sadd.s32 %s168, 1
      %p172 = scmp.eq.s32.totalorder %s21, 3
      %p173 = scmp.ne.s32.totalorder %s168, %s170
      %p174 = scmp.eq.s32.totalorder %s21, 0
      %p175 = por %p173, %p174
      %p176 = scmp.ne.s32.totalorder %s168, %s170
      %p177 = scmp.eq.s32.totalorder %s26, 3
      %p178 = por %p176, %p177
      %p179 = scmp.ne.s32.totalorder %s170, %s171
      %p180 = scmp.eq.s32.totalorder %s26, 0
      %p181 = por %p179, %p180
      %p182 = scmp.ne.s32.totalorder %s170, %s171
      %p183 = scmp.eq.s32.totalorder %s27, 3
      %p184 = por %p182, %p183
      %p186 = scmp.ne.s32.totalorder %s171, %s185
      %p187 = scmp.eq.s32.totalorder %s27, 0
      %p188 = por %p186, %p187
      %s190 = sadd.s32 %s189, 1
      %p193 = scmp.eq.s32.totalorder %s21, 3
      %p194 = scmp.ne.s32.totalorder %s189, %s191
      %p195 = scmp.eq.s32.totalorder %s21, 0
      %p196 = por %p194, %p195
      %p197 = scmp.ne.s32.totalorder %s189, %s191
      %p198 = scmp.eq.s32.totalorder %s26, 3
      %p199 = por %p197, %p198
      %p200 = scmp.ne.s32.totalorder %s191, %s192
      %p201 = scmp.eq.s32.totalorder %s26, 0
      %p202 = por %p200, %p201
      %p203 = scmp.ne.s32.totalorder %s191, %s192
      %p204 = scmp.eq.s32.totalorder %s27, 3
      %p205 = por %p203, %p204
      %p207 = scmp.ne.s32.totalorder %s192, %s206
      %p208 = scmp.eq.s32.totalorder %s27, 0
      %p209 = por %p207, %p208
      %s211 = sadd.s32 %s210, 1
      %p214 = scmp.eq.s32.totalorder %s21, 3
      %p215 = scmp.ne.s32.totalorder %s210, %s212
      %p216 = scmp.eq.s32.totalorder %s21, 0
      %p217 = por %p215, %p216
      %p218 = scmp.ne.s32.totalorder %s210, %s212
      %p219 = scmp.eq.s32.totalorder %s26, 3
      %p220 = por %p218, %p219
      %p221 = scmp.ne.s32.totalorder %s212, %s213
      %p222 = scmp.eq.s32.totalorder %s26, 0
      %p223 = por %p221, %p222
      %p224 = scmp.ne.s32.totalorder %s212, %s213
      %p225 = scmp.eq.s32.totalorder %s27, 3
      %p226 = por %p224, %p225
      %p228 = scmp.ne.s32.totalorder %s213, %s227
      %p229 = scmp.eq.s32.totalorder %s27, 0
      %p230 = por %p228, %p229
      %s232 = sadd.s32 %s231, 1
      %p235 = scmp.eq.s32.totalorder %s21, 3
      %p236 = scmp.ne.s32.totalorder %s231, %s233
      %p237 = scmp.eq.s32.totalorder %s21, 0
      %p238 = por %p236, %p237
      %p239 = scmp.ne.s32.totalorder %s231, %s233
      %p240 = scmp.eq.s32.totalorder %s26, 3
      %p241 = por %p239, %p240
      %p242 = scmp.ne.s32.totalorder %s233, %s234
      %p243 = scmp.eq.s32.totalorder %s26, 0
      %p244 = por %p242, %p243
      %p245 = scmp.ne.s32.totalorder %s233, %s234
      %p246 = scmp.eq.s32.totalorder %s27, 3
      %p247 = por %p245, %p246
      %p249 = scmp.ne.s32.totalorder %s234, %s248
      %p250 = scmp.eq.s32.totalorder %s27, 0
      %p251 = por %p249, %p250
      %s253 = sadd.s32 %s252, 1
      %p256 = scmp.eq.s32.totalorder %s21, 3
      %p257 = scmp.ne.s32.totalorder %s252, %s254
      %p258 = scmp.eq.s32.totalorder %s21, 0
      %p259 = por %p257, %p258
      %p260 = scmp.ne.s32.totalorder %s252, %s254
      %p261 = scmp.eq.s32.totalorder %s26, 3
      %p262 = por %p260, %p261
      %p263 = scmp.ne.s32.totalorder %s254, %s255
      %p264 = scmp.eq.s32.totalorder %s26, 0
      %p265 = por %p263, %p264
      %p266 = scmp.ne.s32.totalorder %s254, %s255
      %p267 = scmp.eq.s32.totalorder %s27, 3
      %p268 = por %p266, %p267
      %p270 = scmp.ne.s32.totalorder %s255, %s269
      %p271 = scmp.eq.s32.totalorder %s27, 0
      %p272 = por %p270, %p271
      %s274 = sadd.s32 %s273, 1
      %p277 = scmp.eq.s32.totalorder %s21, 3
      %p278 = scmp.ne.s32.totalorder %s273, %s275
      %p279 = scmp.eq.s32.totalorder %s21, 0
      %p280 = por %p278, %p279
      %p281 = scmp.ne.s32.totalorder %s273, %s275
      %p282 = scmp.eq.s32.totalorder %s26, 3
      %p283 = por %p281, %p282
      %p284 = scmp.ne.s32.totalorder %s275, %s276
      %p285 = scmp.eq.s32.totalorder %s26, 0
      %p286 = por %p284, %p285
      %p287 = scmp.ne.s32.totalorder %s275, %s276
      %p288 = scmp.eq.s32.totalorder %s27, 3
      %p289 = por %p287, %p288
      %p291 = scmp.ne.s32.totalorder %s276, %s290
      %p292 = scmp.eq.s32.totalorder %s27, 0
      %p293 = por %p291, %p292
      %s295 = sadd.s32 %s294, 1
      %p298 = scmp.eq.s32.totalorder %s21, 3
      %p299 = scmp.ne.s32.totalorder %s294, %s296
      %p300 = scmp.eq.s32.totalorder %s21, 0
      %p301 = por %p299, %p300
      %p302 = scmp.ne.s32.totalorder %s294, %s296
      %p303 = scmp.eq.s32.totalorder %s26, 3
      %p304 = por %p302, %p303
      %p305 = scmp.ne.s32.totalorder %s296, %s297
      %p306 = scmp.eq.s32.totalorder %s26, 0
      %p307 = por %p305, %p306
      %p308 = scmp.ne.s32.totalorder %s296, %s297
      %p309 = scmp.eq.s32.totalorder %s27, 3
      %p310 = por %p308, %p309
      %p312 = scmp.ne.s32.totalorder %s297, %s311
      %p313 = scmp.eq.s32.totalorder %s27, 0
      %p314 = por %p312, %p313
      %s315 = ssub.s32 %s28, %s40
      %p316 = scmp.eq.s32.totalorder %s315, 0
      %s318 = sadd.s32 %s317, 1
      %s319 = scalar_select %p316, %s317, %s318
      %p322 = pneg %p316
      %p323 = scmp.eq.s32.totalorder %s21, 3
      %p324 = por %p322, %p323
      %p325 = scmp.ne.s32.totalorder %s317, %s320
      %p326 = scmp.eq.s32.totalorder %s21, 0
      %p327 = por %p325, %p326
      %p328 = scmp.ne.s32.totalorder %s317, %s320
      %p329 = scmp.eq.s32.totalorder %s26, 3
      %p330 = por %p328, %p329
      %p331 = scmp.ne.s32.totalorder %s320, %s321
      %p332 = scmp.eq.s32.totalorder %s26, 0
      %p333 = por %p331, %p332
      %p334 = scmp.ne.s32.totalorder %s320, %s321
      %p335 = scmp.eq.s32.totalorder %s27, 3
      %p336 = por %p334, %p335
      %p338 = scmp.ne.s32.totalorder %s321, %s337
      %p339 = scmp.eq.s32.totalorder %s27, 0
      %p340 = por %p338, %p339
      %p341 = scmp.le.s32.totalorder 1, %s21
      %p342 = scmp.lt.s32.totalorder %s21, 5
      %p343 = pnand %p341, %p342
      %p344 = pneg %p343
      // Predicated region
      $region9: #{tpu_custom_call.1} parent=5 // pred_check
        _
      $region10: #{tpu_custom_call.1} parent=5 // pred_check_branch
        %346 = sbr.rel (%p343) target = $region12
      $region11: #{tpu_custom_call.1} parent=5 // pred_region
        %s347 = ssub.s32 %s21, 1
        // Predicated region
        $region13: #{tpu_custom_call.1} parent=11 // pred_check
          %p348 = pneg %p160
        $region14: #{tpu_custom_call.1} parent=11 // pred_check_branch
          %350 = sbr.rel (%p348) target = $region16
        $region15: #{tpu_custom_call.1} parent=11 // pred_region
          _
        $region16: #{tpu_custom_call.1} parent=11 // pred_fallthru
          _
        // Predicated region
        $region17: #{tpu_custom_call.1} parent=11 // pred_check
          %p351 = pneg %p181
        $region18: #{tpu_custom_call.1} parent=11 // pred_check_branch
          %353 = sbr.rel (%p351) target = $region20
        $region19: #{tpu_custom_call.1} parent=11 // pred_region
          _
        $region20: #{tpu_custom_call.1} parent=11 // pred_fallthru
          _
        // Predicated region
        $region21: #{tpu_custom_call.1} parent=11 // pred_check
          %p354 = pneg %p202
        $region22: #{tpu_custom_call.1} parent=11 // pred_check_branch
          %356 = sbr.rel (%p354) target = $region24
        $region23: #{tpu_custom_call.1} parent=11 // pred_region
          _
        $region24: #{tpu_custom_call.1} parent=11 // pred_fallthru
          _
        // Predicated region
        $region25: #{tpu_custom_call.1} parent=11 // pred_check
          %p357 = pneg %p223
        $region26: #{tpu_custom_call.1} parent=11 // pred_check_branch
          %359 = sbr.rel (%p357) target = $region28
        $region27: #{tpu_custom_call.1} parent=11 // pred_region
          _
        $region28: #{tpu_custom_call.1} parent=11 // pred_fallthru
          _
        // Predicated region
        $region29: #{tpu_custom_call.1} parent=11 // pred_check
          %p360 = pneg %p244
        $region30: #{tpu_custom_call.1} parent=11 // pred_check_branch
          %362 = sbr.rel (%p360) target = $region32
        $region31: #{tpu_custom_call.1} parent=11 // pred_region
          _
        $region32: #{tpu_custom_call.1} parent=11 // pred_fallthru
          _
        // Predicated region
        $region33: #{tpu_custom_call.1} parent=11 // pred_check
          %p363 = pneg %p265
        $region34: #{tpu_custom_call.1} parent=11 // pred_check_branch
          %365 = sbr.rel (%p363) target = $region36
        $region35: #{tpu_custom_call.1} parent=11 // pred_region
          _
        $region36: #{tpu_custom_call.1} parent=11 // pred_fallthru
          _
        // Predicated region
        $region37: #{tpu_custom_call.1} parent=11 // pred_check
          %p366 = pneg %p286
        $region38: #{tpu_custom_call.1} parent=11 // pred_check_branch
          %368 = sbr.rel (%p366) target = $region40
        $region39: #{tpu_custom_call.1} parent=11 // pred_region
          _
        $region40: #{tpu_custom_call.1} parent=11 // pred_fallthru
          _
        // Predicated region
        $region41: #{tpu_custom_call.1} parent=11 // pred_check
          %p369 = pneg %p307
        $region42: #{tpu_custom_call.1} parent=11 // pred_check_branch
          %371 = sbr.rel (%p369) target = $region44
        $region43: #{tpu_custom_call.1} parent=11 // pred_region
          _
        $region44: #{tpu_custom_call.1} parent=11 // pred_fallthru
          _
      $region12: #{tpu_custom_call.1} parent=5 // pred_fallthru
        _
      %p372 = scmp.lt.s32.totalorder %s21, 4
      // Predicated region
      $region45: #{tpu_custom_call.1} parent=5 // pred_check
        %p373 = pneg %p372
      $region46: #{tpu_custom_call.1} parent=5 // pred_check_branch
        %375 = sbr.rel (%p373) target = $region48
      $region47: #{tpu_custom_call.1} parent=5 // pred_region
        // Predicated region
        $region49: #{tpu_custom_call.1} parent=47 // pred_check
          %p376 = pneg %p55
        $region50: #{tpu_custom_call.1} parent=47 // pred_check_branch
          %378 = sbr.rel (%p376) target = $region52
        $region51: #{tpu_custom_call.1} parent=47 // pred_region
          %s379 = sand.u32 %s45, 1
          %s380 = sand.u32 %s45, 1
          %s381 = smul.addr %s380, 64
          %s382 = scalar_lea.vmem [#allocation3], %s381
          %s383 = smul.u32 16, %s28
          %s384 = smul.addr %s383, 2
          %s385 = sadd.s32 %s29, %s384
          %s386 = smul.addr %s385, 4
          %s387 = scalar_lea.vmem %s0, %s386
          // Predicated region
          $region53: #{tpu_custom_call.1} parent=51 // pred_check
            _
          $region54: #{tpu_custom_call.1} parent=51 // pred_check_branch
            %389 = sbr.rel (0) target = $region56
          $region55: #{tpu_custom_call.1} parent=51 // pred_region
            // Predicated region
            $region57: #{tpu_custom_call.1} parent=55 // pred_check
              _
            $region58: #{tpu_custom_call.1} parent=55 // pred_check_branch
              %391 = sbr.rel target = $region60
            $region59: #{tpu_custom_call.1} parent=55 // pred_region
              // Predicated region
              $region72: #{tpu_custom_call.1} parent=59 // pred_check
                _
              $region73: #{tpu_custom_call.1} parent=59 // pred_check_branch
                %437 = sbr.rel (0) target = $region75
              $region74: #{tpu_custom_call.1} parent=59 // pred_region
                loop: start=0, step=1, limit=1
                $region76: #{tpu_custom_call.1} parent=74 // loop_pre_header
                  _
                $region77: #{tpu_custom_call.1} parent=74 // loop_header
                  %s439 = sphi 0, %s443
                  %p440 = scmp.ge.s32.totalorder %s439, 1
                  %s444 = sphi %s387, %s387
                  %s445 = sphi %s382, %s382
                $region78: #{tpu_custom_call.1} parent=74 // loop_header_branch
                  %442 = sbr.rel (%p440) target = $region82
                $region79: #{tpu_custom_call.1} parent=74 // loop_body
                  _
                $region80: #{tpu_custom_call.1} parent=74 // loop_footer
                  %s443 = sadd.s32 1, %s439
                $region81: #{tpu_custom_call.1} parent=74 // loop_footer_branch
                  %438 = sbr.rel target = $region77
                $region82: #{tpu_custom_call.1} parent=74 // loop_exit
                  _
                %s447 = ssub.s32 16, 1
                loop: start=0, step=1, limit=1
                $region83: #{tpu_custom_call.1} parent=74 // loop_pre_header
                  _
                $region84: #{tpu_custom_call.1} parent=74 // loop_header
                  %s449 = sphi 0, %s453
                  %p450 = scmp.ge.s32.totalorder %s449, 1
                  %s454 = sphi %s387, %s387
                  %s455 = sphi %s382, %s382
                $region85: #{tpu_custom_call.1} parent=74 // loop_header_branch
                  %452 = sbr.rel (%p450) target = $region89
                $region86: #{tpu_custom_call.1} parent=74 // loop_body
                  %v456 = vld [vmem:[%s454] sm:%s447]
                  %457 = vst [vmem:[%s455] sm:%s447] %v456
                  %v458 = vld [vmem:[%s454 + $0x8] sm:%s447]
                  %459 = vst [vmem:[%s455 + $0x4] sm:%s447] %v458
                  %v460 = vld [vmem:[%s454 + $0x10] sm:%s447]
                  %461 = vst [vmem:[%s455 + $0x8] sm:%s447] %v460
                  %v462 = vld [vmem:[%s454 + $0x18] sm:%s447]
                  %463 = vst [vmem:[%s455 + $0xc] sm:%s447] %v462
                  %v464 = vld [vmem:[%s454 + $0x20] sm:%s447]
                  %465 = vst [vmem:[%s455 + $0x10] sm:%s447] %v464
                  %v466 = vld [vmem:[%s454 + $0x28] sm:%s447]
                  %467 = vst [vmem:[%s455 + $0x14] sm:%s447] %v466
                  %v468 = vld [vmem:[%s454 + $0x30] sm:%s447]
                  %469 = vst [vmem:[%s455 + $0x18] sm:%s447] %v468
                  %v470 = vld [vmem:[%s454 + $0x38] sm:%s447]
                  %471 = vst [vmem:[%s455 + $0x1c] sm:%s447] %v470
                  %v472 = vld [vmem:[%s454 + $0x40] sm:%s447]
                  %473 = vst [vmem:[%s455 + $0x20] sm:%s447] %v472
                  %v474 = vld [vmem:[%s454 + $0x48] sm:%s447]
                  %475 = vst [vmem:[%s455 + $0x24] sm:%s447] %v474
                  %v476 = vld [vmem:[%s454 + $0x50] sm:%s447]
                  %477 = vst [vmem:[%s455 + $0x28] sm:%s447] %v476
                  %v478 = vld [vmem:[%s454 + $0x58] sm:%s447]
                  %479 = vst [vmem:[%s455 + $0x2c] sm:%s447] %v478
                  %v480 = vld [vmem:[%s454 + $0x60] sm:%s447]
                  %481 = vst [vmem:[%s455 + $0x30] sm:%s447] %v480
                  %v482 = vld [vmem:[%s454 + $0x68] sm:%s447]
                  %483 = vst [vmem:[%s455 + $0x34] sm:%s447] %v482
                  %v484 = vld [vmem:[%s454 + $0x70] sm:%s447]
                  %485 = vst [vmem:[%s455 + $0x38] sm:%s447] %v484
                  %v486 = vld [vmem:[%s454 + $0x78] sm:%s447]
                  %487 = vst [vmem:[%s455 + $0x3c] sm:%s447] %v486
                $region87: #{tpu_custom_call.1} parent=74 // loop_footer
                  %s453 = sadd.s32 1, %s449
                $region88: #{tpu_custom_call.1} parent=74 // loop_footer_branch
                  %448 = sbr.rel target = $region84
                $region89: #{tpu_custom_call.1} parent=74 // loop_exit
                  _
              $region75: #{tpu_custom_call.1} parent=59 // pred_fallthru
                _
            $region60: #{tpu_custom_call.1} parent=55 // pred_fallthru
              _
            // Predicated region
            $region61: #{tpu_custom_call.1} parent=55 // pred_check
              _
            $region62: #{tpu_custom_call.1} parent=55 // pred_check_branch
              %393 = sbr.rel (0) target = $region64
            $region63: #{tpu_custom_call.1} parent=55 // pred_region
              %s395 = ssub.s32 16, 1
              loop: start=0, step=1, limit=1
              $region65: #{tpu_custom_call.1} parent=63 // loop_pre_header
                _
              $region66: #{tpu_custom_call.1} parent=63 // loop_header
                %s397 = sphi 0, %s401
                %p398 = scmp.ge.s32.totalorder %s397, 1
                %s402 = sphi %s387, %s387
                %s403 = sphi %s382, %s382
              $region67: #{tpu_custom_call.1} parent=63 // loop_header_branch
                %400 = sbr.rel (%p398) target = $region71
              $region68: #{tpu_custom_call.1} parent=63 // loop_body
                %v404 = vld [vmem:[%s402] sm:%s395]
                %405 = vst [vmem:[%s403] sm:%s395] %v404
                %v406 = vld [vmem:[%s402 + $0x8] sm:%s395]
                %407 = vst [vmem:[%s403 + $0x4] sm:%s395] %v406
                %v408 = vld [vmem:[%s402 + $0x10] sm:%s395]
                %409 = vst [vmem:[%s403 + $0x8] sm:%s395] %v408
                %v410 = vld [vmem:[%s402 + $0x18] sm:%s395]
                %411 = vst [vmem:[%s403 + $0xc] sm:%s395] %v410
                %v412 = vld [vmem:[%s402 + $0x20] sm:%s395]
                %413 = vst [vmem:[%s403 + $0x10] sm:%s395] %v412
                %v414 = vld [vmem:[%s402 + $0x28] sm:%s395]
                %415 = vst [vmem:[%s403 + $0x14] sm:%s395] %v414
                %v416 = vld [vmem:[%s402 + $0x30] sm:%s395]
                %417 = vst [vmem:[%s403 + $0x18] sm:%s395] %v416
                %v418 = vld [vmem:[%s402 + $0x38] sm:%s395]
                %419 = vst [vmem:[%s403 + $0x1c] sm:%s395] %v418
                %v420 = vld [vmem:[%s402 + $0x40] sm:%s395]
                %421 = vst [vmem:[%s403 + $0x20] sm:%s395] %v420
                %v422 = vld [vmem:[%s402 + $0x48] sm:%s395]
                %423 = vst [vmem:[%s403 + $0x24] sm:%s395] %v422
                %v424 = vld [vmem:[%s402 + $0x50] sm:%s395]
                %425 = vst [vmem:[%s403 + $0x28] sm:%s395] %v424
                %v426 = vld [vmem:[%s402 + $0x58] sm:%s395]
                %427 = vst [vmem:[%s403 + $0x2c] sm:%s395] %v426
                %v428 = vld [vmem:[%s402 + $0x60] sm:%s395]
                %429 = vst [vmem:[%s403 + $0x30] sm:%s395] %v428
                %v430 = vld [vmem:[%s402 + $0x68] sm:%s395]
                %431 = vst [vmem:[%s403 + $0x34] sm:%s395] %v430
                %v432 = vld [vmem:[%s402 + $0x70] sm:%s395]
                %433 = vst [vmem:[%s403 + $0x38] sm:%s395] %v432
                %v434 = vld [vmem:[%s402 + $0x78] sm:%s395]
                %435 = vst [vmem:[%s403 + $0x3c] sm:%s395] %v434
              $region69: #{tpu_custom_call.1} parent=63 // loop_footer
                %s401 = sadd.s32 1, %s397
              $region70: #{tpu_custom_call.1} parent=63 // loop_footer_branch
                %396 = sbr.rel target = $region66
              $region71: #{tpu_custom_call.1} parent=63 // loop_exit
                _
            $region64: #{tpu_custom_call.1} parent=55 // pred_fallthru
              _
          $region56: #{tpu_custom_call.1} parent=51 // pred_fallthru
            _
          %488 = vnop
        $region52: #{tpu_custom_call.1} parent=47 // pred_fallthru
          _
        // Predicated region
        $region90: #{tpu_custom_call.1} parent=47 // pred_check
          %p489 = pneg %p81
        $region91: #{tpu_custom_call.1} parent=47 // pred_check_branch
          %491 = sbr.rel (%p489) target = $region93
        $region92: #{tpu_custom_call.1} parent=47 // pred_region
          %s492 = smul.u32 16, %s29
          %p493 = scmp.lt.s32.totalorder %s492, 31
          %s494 = scalar_select %p493, %s492, 31
          %s495 = smul.addr %s494, 4
          %s496 = scalar_lea.vmem %s1, %s495
          %s497 = smul.u32 16, %s29
        $region93: #{tpu_custom_call.1} parent=47 // pred_fallthru
          _
        // Predicated region
        $region94: #{tpu_custom_call.1} parent=47 // pred_check
          %p498 = pneg %p107
        $region95: #{tpu_custom_call.1} parent=47 // pred_check_branch
          %500 = sbr.rel (%p498) target = $region97
        $region96: #{tpu_custom_call.1} parent=47 // pred_region
          %s501 = smul.u32 16, %s28
          %p502 = scmp.lt.s32.totalorder %s501, 31
          %s503 = scalar_select %p502, %s501, 31
          %s504 = smul.addr %s503, 4
          %s505 = scalar_lea.vmem %s2, %s504
          %s506 = smul.u32 16, %s28
        $region97: #{tpu_custom_call.1} parent=47 // pred_fallthru
          _
        // Predicated region
        $region98: #{tpu_custom_call.1} parent=47 // pred_check
          %p507 = pneg %p133
        $region99: #{tpu_custom_call.1} parent=47 // pred_check_branch
          %509 = sbr.rel (%p507) target = $region101
        $region100: #{tpu_custom_call.1} parent=47 // pred_region
          %s510 = smul.u32 16, %s28
          %p511 = scmp.lt.s32.totalorder %s510, 31
          %s512 = scalar_select %p511, %s510, 31
          %s513 = smul.addr %s512, 8
          %s514 = scalar_lea.vmem %s3, %s513
          %s515 = smul.u32 16, %s28
        $region101: #{tpu_custom_call.1} parent=47 // pred_fallthru
          _
      $region48: #{tpu_custom_call.1} parent=5 // pred_fallthru
        _
      %p516 = scmp.le.s32.totalorder 1, %s21
      %p517 = scmp.lt.s32.totalorder %s21, 5
      %p518 = pnand %p516, %p517
      %p519 = pneg %p518
      // Predicated region
      $region102: #{tpu_custom_call.1} parent=5 // pred_check
        _
      $region103: #{tpu_custom_call.1} parent=5 // pred_check_branch
        %521 = sbr.rel (%p518) target = $region105
      $region104: #{tpu_custom_call.1} parent=5 // pred_region
        %s522 = ssub.s32 %s21, 1
        %s523 = sand.u32 %s48, 1
        %s524 = sand.u32 %s48, 1
        %s525 = smul.addr %s524, 64
        %s526 = scalar_lea.vmem [#allocation3], %s525
        // Predicated region
        $region106: #{tpu_custom_call.1} parent=104 // pred_check
          %p527 = pneg %p61
        $region107: #{tpu_custom_call.1} parent=104 // pred_check_branch
          %529 = sbr.rel (%p527) target = $region109
        $region108: #{tpu_custom_call.1} parent=104 // pred_region
          _
        $region109: #{tpu_custom_call.1} parent=104 // pred_fallthru
          _
        %s530 = sand.u32 %s48, 1
        %s531 = sand.u32 %s48, 1
        %s532 = smul.addr %s531, 64
        %s533 = scalar_lea.vmem [#allocation3], %s532
        %p534 = pneg %p61
        %p535 = pneg %p58
        %s536 = smul.u32 16, %s31
        %p537 = scmp.lt.s32.totalorder %s536, 31
        %s538 = scalar_select %p537, %s536, 31
        %s539 = smul.addr %s538, 4
        %s540 = scalar_lea.vmem %s1, %s539
        %p541 = pneg %p87
        %p542 = pneg %p84
        %s543 = smul.u32 16, %s30
        %p544 = scmp.lt.s32.totalorder %s543, 31
        %s545 = scalar_select %p544, %s543, 31
        %s546 = smul.addr %s545, 4
        %s547 = scalar_lea.vmem %s2, %s546
        %p548 = pneg %p113
        %p549 = pneg %p110
        %s550 = smul.u32 16, %s30
        %p551 = scmp.lt.s32.totalorder %s550, 31
        %s552 = scalar_select %p551, %s550, 31
        %s553 = smul.addr %s552, 8
        %s554 = scalar_lea.vmem %s3, %s553
        %p555 = pneg %p139
        %p556 = pneg %p136
        %p557 = pneg %p160
        %p558 = pneg %p157
        %p559 = pneg %p181
        %p560 = pneg %p178
        %p561 = pneg %p202
        %p562 = pneg %p199
        %p563 = pneg %p223
        %p564 = pneg %p220
        %p565 = pneg %p244
        %p566 = pneg %p241
        %p567 = pneg %p265
        %p568 = pneg %p262
        %p569 = pneg %p286
        %p570 = pneg %p283
        %p571 = pneg %p307
        %p572 = pneg %p304
        %p573 = pneg %p333
        %p574 = pneg %p330
        %s575 = sand.u32 %s320, 1
        %s576 = scalar_lea.sflag [#allocation5], %s575
        %s577 = sand.u32 %s320, 1
        %s578 = smul.addr %s577, 128
        %s579 = scalar_lea.vmem [#allocation4], %s578
        %s580 = smul.u32 16, %s30
        %s581 = smul.u32 16, %s31
        %p582 = scmp.lt.s32.totalorder %s581, 31
        %s583 = scalar_select %p582, %s581, 31
        %s584 = smul.addr %s583, 4
        %s585 = scalar_lea.vmem %s1, %s584
        %s586 = smul.u32 16, %s31
        %s587 = smul.u32 16, %s30
        %p588 = scmp.lt.s32.totalorder %s587, 31
        %s589 = scalar_select %p588, %s587, 31
        %s590 = smul.addr %s589, 4
        %s591 = scalar_lea.vmem %s2, %s590
        %s592 = smul.u32 16, %s30
        %s593 = smul.u32 16, %s30
        %p594 = scmp.lt.s32.totalorder %s593, 31
        %s595 = scalar_select %p594, %s593, 31
        %s596 = smul.addr %s595, 8
        %s597 = scalar_lea.vmem %s3, %s596
        %s598 = smul.u32 16, %s30
        %s599 = smul.u32 16, %s30
        %p601 = scmp.eq.s32.totalorder %s31, 0
        // Predicated region
        $region110: #{tpu_custom_call.1} parent=104 // pred_check
          %p602 = pneg %p601
        $region111: #{tpu_custom_call.1} parent=104 // pred_check_branch
          %604 = sbr.rel (%p602) target = $region113
        $region112: #{tpu_custom_call.1} parent=104 // pred_region
          %vm605 = vcmask 15360
          %606 = vst.msk [vmem:[#allocation2] sm:$0xff] %vm605, 0.0
          %607 = vst.msk [vmem:[#allocation2 + $0x8] sm:$0xff] %vm605, 0.0
          %608 = vst.msk [vmem:[#allocation2 + $0x10] sm:$0xff] %vm605, 0.0
          %609 = vst.msk [vmem:[#allocation2 + $0x18] sm:$0xff] %vm605, 0.0
          %610 = vst.msk [vmem:[#allocation2 + $0x20] sm:$0xff] %vm605, 0.0
          %611 = vst.msk [vmem:[#allocation2 + $0x28] sm:$0xff] %vm605, 0.0
          %612 = vst.msk [vmem:[#allocation2 + $0x30] sm:$0xff] %vm605, 0.0
          %613 = vst.msk [vmem:[#allocation2 + $0x38] sm:$0xff] %vm605, 0.0
          %614 = vst.msk [vmem:[#allocation2 + $0x40] sm:$0xff] %vm605, 0.0
          %615 = vst.msk [vmem:[#allocation2 + $0x48] sm:$0xff] %vm605, 0.0
          %616 = vst.msk [vmem:[#allocation2 + $0x50] sm:$0xff] %vm605, 0.0
          %617 = vst.msk [vmem:[#allocation2 + $0x58] sm:$0xff] %vm605, 0.0
          %618 = vst.msk [vmem:[#allocation2 + $0x60] sm:$0xff] %vm605, 0.0
          %619 = vst.msk [vmem:[#allocation2 + $0x68] sm:$0xff] %vm605, 0.0
          %620 = vst.msk [vmem:[#allocation2 + $0x70] sm:$0xff] %vm605, 0.0
          %621 = vst.msk [vmem:[#allocation2 + $0x78] sm:$0xff] %vm605, 0.0
        $region113: #{tpu_custom_call.1} parent=104 // pred_fallthru
          _
        %v622 = vld [vmem:[%s526] sm:$0xf]
        %v623 = vld [vmem:[%s526 + $0x4] sm:$0xf]
        %v624 = vld [vmem:[%s526 + $0x8] sm:$0xf]
        %v625 = vld [vmem:[%s526 + $0xc] sm:$0xf]
        %v626 = vld [vmem:[%s526 + $0x10] sm:$0xf]
        %v627 = vld [vmem:[%s526 + $0x14] sm:$0xf]
        %v628 = vld [vmem:[%s526 + $0x18] sm:$0xf]
        %v629 = vld [vmem:[%s526 + $0x1c] sm:$0xf]
        %v630 = vld [vmem:[%s526 + $0x20] sm:$0xf]
        %v631 = vld [vmem:[%s526 + $0x24] sm:$0xf]
        %v632 = vld [vmem:[%s526 + $0x28] sm:$0xf]
        %v633 = vld [vmem:[%s526 + $0x2c] sm:$0xf]
        %v634 = vld [vmem:[%s526 + $0x30] sm:$0xf]
        %v635 = vld [vmem:[%s526 + $0x34] sm:$0xf]
        %v636 = vld [vmem:[%s526 + $0x38] sm:$0xf]
        %v637 = vld [vmem:[%s526 + $0x3c] sm:$0xf]
        %v638 = vld [vmem:[%s585] sm:$0xf]
        %v639 = vld [vmem:[%s585 + $0x4] sm:$0xf]
        %v640 = vld [vmem:[%s585 + $0x8] sm:$0xf]
        %v641 = vld [vmem:[%s585 + $0xc] sm:$0xf]
        %v642 = vld [vmem:[%s585 + $0x10] sm:$0xf]
        %v643 = vld [vmem:[%s585 + $0x14] sm:$0xf]
        %v644 = vld [vmem:[%s585 + $0x18] sm:$0xf]
        %v645 = vld [vmem:[%s585 + $0x1c] sm:$0xf]
        %v646 = vld [vmem:[%s585 + $0x20] sm:$0xf]
        %v647 = vld [vmem:[%s585 + $0x24] sm:$0xf]
        %v648 = vld [vmem:[%s585 + $0x28] sm:$0xf]
        %v649 = vld [vmem:[%s585 + $0x2c] sm:$0xf]
        %v650 = vld [vmem:[%s585 + $0x30] sm:$0xf]
        %v651 = vld [vmem:[%s585 + $0x34] sm:$0xf]
        %v652 = vld [vmem:[%s585 + $0x38] sm:$0xf]
        %v653 = vld [vmem:[%s585 + $0x3c] sm:$0xf]
        %v670 = vunpack.c.l.b16 %v622
        %v671 = vunpack.c.l.b16 %v623
        %v672 = vunpack.c.l.b16 %v624
        %v673 = vunpack.c.l.b16 %v625
        %v674 = vunpack.c.l.b16 %v626
        %v675 = vunpack.c.l.b16 %v627
        %v676 = vunpack.c.l.b16 %v628
        %v677 = vunpack.c.l.b16 %v629
        %v678 = vunpack.c.l.b16 %v630
        %v679 = vunpack.c.l.b16 %v631
        %v680 = vunpack.c.l.b16 %v632
        %v681 = vunpack.c.l.b16 %v633
        %v682 = vunpack.c.l.b16 %v634
        %v683 = vunpack.c.l.b16 %v635
        %v684 = vunpack.c.l.b16 %v636
        %v685 = vunpack.c.l.b16 %v637
        %v686 = vpack.c.b16 %v671, %v670
        %v687 = vpack.c.b16 %v673, %v672
        %v688 = vpack.c.b16 %v675, %v674
        %v689 = vpack.c.b16 %v677, %v676
        %v690 = vpack.c.b16 %v679, %v678
        %v691 = vpack.c.b16 %v681, %v680
        %v692 = vpack.c.b16 %v683, %v682
        %v693 = vpack.c.b16 %v685, %v684
        %v718 = vunpack.c.l.b16 %v638
        %v719 = vunpack.c.l.b16 %v639
        %v720 = vunpack.c.l.b16 %v640
        %v721 = vunpack.c.l.b16 %v641
        %v722 = vunpack.c.l.b16 %v642
        %v723 = vunpack.c.l.b16 %v643
        %v724 = vunpack.c.l.b16 %v644
        %v725 = vunpack.c.l.b16 %v645
        %v726 = vunpack.c.l.b16 %v646
        %v727 = vunpack.c.l.b16 %v647
        %v728 = vunpack.c.l.b16 %v648
        %v729 = vunpack.c.l.b16 %v649
        %v730 = vunpack.c.l.b16 %v650
        %v731 = vunpack.c.l.b16 %v651
        %v732 = vunpack.c.l.b16 %v652
        %v733 = vunpack.c.l.b16 %v653
        %v734 = vpack.c.b16 %v719, %v718
        %v735 = vpack.c.b16 %v721, %v720
        %v736 = vpack.c.b16 %v723, %v722
        %v737 = vpack.c.b16 %v725, %v724
        %v738 = vpack.c.b16 %v727, %v726
        %v739 = vpack.c.b16 %v729, %v728
        %v740 = vpack.c.b16 %v731, %v730
        %v741 = vpack.c.b16 %v733, %v732
        %750 = vmatpush.bf16.msra.mxu0 %v741
        %751 = vmatpush.bf16.msra.mxu0 %v740
        %752 = vmatpush.bf16.msra.mxu0 %v739
        %753 = vmatpush.bf16.msra.mxu0 %v738
        %754 = vmatpush.bf16.msra.mxu0 %v737
        %755 = vmatpush.bf16.msra.mxu0 %v736
        %756 = vmatpush.bf16.msra.mxu0 %v735
        %757 = vmatpush.bf16.msra.mxu0 %v734
        %758 = vmatmul.bf16.gmra.mxu0 %v686
        %v759 = vpop.f32.mrf.mxu0
        %v760 = vadd.f32 0.0, %v759
        %v761 = vpop.f32.mrf.mxu0
        %v762 = vadd.f32 0.0, %v761
        %763 = vmatmul.bf16.gmra.mxu0 %v687
        %v764 = vpop.f32.mrf.mxu0
        %v765 = vadd.f32 0.0, %v764
        %v766 = vpop.f32.mrf.mxu0
        %v767 = vadd.f32 0.0, %v766
        %768 = vmatmul.bf16.gmra.mxu0 %v688
        %v769 = vpop.f32.mrf.mxu0
        %v770 = vadd.f32 0.0, %v769
        %v771 = vpop.f32.mrf.mxu0
        %v772 = vadd.f32 0.0, %v771
        %773 = vmatmul.bf16.gmra.mxu0 %v689
        %v774 = vpop.f32.mrf.mxu0
        %v775 = vadd.f32 0.0, %v774
        %v776 = vpop.f32.mrf.mxu0
        %v777 = vadd.f32 0.0, %v776
        %778 = vmatmul.bf16.gmra.mxu0 %v690
        %v779 = vpop.f32.mrf.mxu0
        %v780 = vadd.f32 0.0, %v779
        %v781 = vpop.f32.mrf.mxu0
        %v782 = vadd.f32 0.0, %v781
        %783 = vmatmul.bf16.gmra.mxu0 %v691
        %v784 = vpop.f32.mrf.mxu0
        %v785 = vadd.f32 0.0, %v784
        %v786 = vpop.f32.mrf.mxu0
        %v787 = vadd.f32 0.0, %v786
        %788 = vmatmul.bf16.gmra.mxu0 %v692
        %v789 = vpop.f32.mrf.mxu0
        %v790 = vadd.f32 0.0, %v789
        %v791 = vpop.f32.mrf.mxu0
        %v792 = vadd.f32 0.0, %v791
        %793 = vmatmul.bf16.gmra.mxu0 %v693
        %v794 = vpop.f32.mrf.mxu0
        %v795 = vadd.f32 0.0, %v794
        %v796 = vpop.f32.mrf.mxu0
        %v797 = vadd.f32 0.0, %v796
        %798 = vdwg.mxu0
        %v799 = vld [vmem:[#allocation2] sm:$0xff]
        %v800 = vld [vmem:[#allocation2 + $0x8] sm:$0xff]
        %v801 = vld [vmem:[#allocation2 + $0x10] sm:$0xff]
        %v802 = vld [vmem:[#allocation2 + $0x18] sm:$0xff]
        %v803 = vld [vmem:[#allocation2 + $0x20] sm:$0xff]
        %v804 = vld [vmem:[#allocation2 + $0x28] sm:$0xff]
        %v805 = vld [vmem:[#allocation2 + $0x30] sm:$0xff]
        %v806 = vld [vmem:[#allocation2 + $0x38] sm:$0xff]
        %v807 = vld [vmem:[#allocation2 + $0x40] sm:$0xff]
        %v808 = vld [vmem:[#allocation2 + $0x48] sm:$0xff]
        %v809 = vld [vmem:[#allocation2 + $0x50] sm:$0xff]
        %v810 = vld [vmem:[#allocation2 + $0x58] sm:$0xff]
        %v811 = vld [vmem:[#allocation2 + $0x60] sm:$0xff]
        %v812 = vld [vmem:[#allocation2 + $0x68] sm:$0xff]
        %v813 = vld [vmem:[#allocation2 + $0x70] sm:$0xff]
        %v814 = vld [vmem:[#allocation2 + $0x78] sm:$0xff]
        %v815 = vadd.f32 %v799, %v760
        %v816 = vadd.f32 %v800, %v762
        %v817 = vadd.f32 %v801, %v765
        %v818 = vadd.f32 %v802, %v767
        %v819 = vadd.f32 %v803, %v770
        %v820 = vadd.f32 %v804, %v772
        %v821 = vadd.f32 %v805, %v775
        %v822 = vadd.f32 %v806, %v777
        %v823 = vadd.f32 %v807, %v780
        %v824 = vadd.f32 %v808, %v782
        %v825 = vadd.f32 %v809, %v785
        %v826 = vadd.f32 %v810, %v787
        %v827 = vadd.f32 %v811, %v790
        %v828 = vadd.f32 %v812, %v792
        %v829 = vadd.f32 %v813, %v795
        %v830 = vadd.f32 %v814, %v797
        %vm831 = vcmask 15360
        %832 = vst.msk [vmem:[#allocation2] sm:$0xff] %vm831, %v815
        %833 = vst.msk [vmem:[#allocation2 + $0x8] sm:$0xff] %vm831, %v816
        %834 = vst.msk [vmem:[#allocation2 + $0x10] sm:$0xff] %vm831, %v817
        %835 = vst.msk [vmem:[#allocation2 + $0x18] sm:$0xff] %vm831, %v818
        %836 = vst.msk [vmem:[#allocation2 + $0x20] sm:$0xff] %vm831, %v819
        %837 = vst.msk [vmem:[#allocation2 + $0x28] sm:$0xff] %vm831, %v820
        %838 = vst.msk [vmem:[#allocation2 + $0x30] sm:$0xff] %vm831, %v821
        %839 = vst.msk [vmem:[#allocation2 + $0x38] sm:$0xff] %vm831, %v822
        %840 = vst.msk [vmem:[#allocation2 + $0x40] sm:$0xff] %vm831, %v823
        %841 = vst.msk [vmem:[#allocation2 + $0x48] sm:$0xff] %vm831, %v824
        %842 = vst.msk [vmem:[#allocation2 + $0x50] sm:$0xff] %vm831, %v825
        %843 = vst.msk [vmem:[#allocation2 + $0x58] sm:$0xff] %vm831, %v826
        %844 = vst.msk [vmem:[#allocation2 + $0x60] sm:$0xff] %vm831, %v827
        %845 = vst.msk [vmem:[#allocation2 + $0x68] sm:$0xff] %vm831, %v828
        %846 = vst.msk [vmem:[#allocation2 + $0x70] sm:$0xff] %vm831, %v829
        %847 = vst.msk [vmem:[#allocation2 + $0x78] sm:$0xff] %vm831, %v830
        %p848 = scmp.eq.s32.totalorder %s31, 1
        // Predicated region
        $region114: #{tpu_custom_call.1} parent=104 // pred_check
          %p849 = pneg %p848
        $region115: #{tpu_custom_call.1} parent=104 // pred_check_branch
          %851 = sbr.rel (%p849) target = $region117
        $region116: #{tpu_custom_call.1} parent=104 // pred_region
          %v852 = vld [vmem:[#allocation2] sm:$0xff]
          %v853 = vld [vmem:[#allocation2 + $0x8] sm:$0xff]
          %v854 = vld [vmem:[#allocation2 + $0x10] sm:$0xff]
          %v855 = vld [vmem:[#allocation2 + $0x18] sm:$0xff]
          %v856 = vld [vmem:[#allocation2 + $0x20] sm:$0xff]
          %v857 = vld [vmem:[#allocation2 + $0x28] sm:$0xff]
          %v858 = vld [vmem:[#allocation2 + $0x30] sm:$0xff]
          %v859 = vld [vmem:[#allocation2 + $0x38] sm:$0xff]
          %v860 = vld [vmem:[#allocation2 + $0x40] sm:$0xff]
          %v861 = vld [vmem:[#allocation2 + $0x48] sm:$0xff]
          %v862 = vld [vmem:[#allocation2 + $0x50] sm:$0xff]
          %v863 = vld [vmem:[#allocation2 + $0x58] sm:$0xff]
          %v864 = vld [vmem:[#allocation2 + $0x60] sm:$0xff]
          %v865 = vld [vmem:[#allocation2 + $0x68] sm:$0xff]
          %v866 = vld [vmem:[#allocation2 + $0x70] sm:$0xff]
          %v867 = vld [vmem:[#allocation2 + $0x78] sm:$0xff]
          %884 = vrot.lane.b32.xlu0 %v852, 127
          %v885 = vpop.permute.xlu0 %884
          %886 = vrot.lane.b32.xlu0 %v853, 127
          %v887 = vpop.permute.xlu0 %886
          %888 = vrot.lane.b32.xlu0 %v854, 127
          %v889 = vpop.permute.xlu0 %888
          %890 = vrot.lane.b32.xlu0 %v855, 127
          %v891 = vpop.permute.xlu0 %890
          %892 = vrot.lane.b32.xlu0 %v856, 127
          %v893 = vpop.permute.xlu0 %892
          %894 = vrot.lane.b32.xlu0 %v857, 127
          %v895 = vpop.permute.xlu0 %894
          %896 = vrot.lane.b32.xlu0 %v858, 127
          %v897 = vpop.permute.xlu0 %896
          %898 = vrot.lane.b32.xlu0 %v859, 127
          %v899 = vpop.permute.xlu0 %898
          %900 = vrot.lane.b32.xlu0 %v860, 127
          %v901 = vpop.permute.xlu0 %900
          %902 = vrot.lane.b32.xlu0 %v861, 127
          %v903 = vpop.permute.xlu0 %902
          %904 = vrot.lane.b32.xlu0 %v862, 127
          %v905 = vpop.permute.xlu0 %904
          %906 = vrot.lane.b32.xlu0 %v863, 127
          %v907 = vpop.permute.xlu0 %906
          %908 = vrot.lane.b32.xlu0 %v864, 127
          %v909 = vpop.permute.xlu0 %908
          %910 = vrot.lane.b32.xlu0 %v865, 127
          %v911 = vpop.permute.xlu0 %910
          %912 = vrot.lane.b32.xlu0 %v866, 127
          %v913 = vpop.permute.xlu0 %912
          %914 = vrot.lane.b32.xlu0 %v867, 127
          %v915 = vpop.permute.xlu0 %914
          %v932 = vrcp.pop %v885
          %v933 = vmul.f32 %v885, %v932
          %v934 = vsub.f32 1.0, %v933
          %v935 = vmul.f32 %v932, %v934
          %v936 = vadd.f32 %v932, %v935
          %vm937 = vweird.f32 %v885
          %vm938 = vweird.f32 %v932
          %vm939 = vmor %vm937, %vm938
          %v940 = vsel %vm939, %v932, %v936
          %v941 = vand.u32 2147483647, %v885
          %vm942 = vcmp.eq.f32.partialorder %v941, 8.507059e+37
          %v943 = vand.u32 %v885, 2147483648
          %v944 = vor.u32 1.1754944e-38, %v943
          %v945 = vsel %vm942, %v944, %v940
          %v946 = vmul.f32 %v852, %v945
          %v947 = vrcp.pop %v887
          %v948 = vmul.f32 %v887, %v947
          %v949 = vsub.f32 1.0, %v948
          %v950 = vmul.f32 %v947, %v949
          %v951 = vadd.f32 %v947, %v950
          %vm952 = vweird.f32 %v887
          %vm953 = vweird.f32 %v947
          %vm954 = vmor %vm952, %vm953
          %v955 = vsel %vm954, %v947, %v951
          %v956 = vand.u32 2147483647, %v887
          %vm957 = vcmp.eq.f32.partialorder %v956, 8.507059e+37
          %v958 = vand.u32 %v887, 2147483648
          %v959 = vor.u32 1.1754944e-38, %v958
          %v960 = vsel %vm957, %v959, %v955
          %v961 = vmul.f32 %v853, %v960
          %v962 = vrcp.pop %v889
          %v963 = vmul.f32 %v889, %v962
          %v964 = vsub.f32 1.0, %v963
          %v965 = vmul.f32 %v962, %v964
          %v966 = vadd.f32 %v962, %v965
          %vm967 = vweird.f32 %v889
          %vm968 = vweird.f32 %v962
          %vm969 = vmor %vm967, %vm968
          %v970 = vsel %vm969, %v962, %v966
          %v971 = vand.u32 2147483647, %v889
          %vm972 = vcmp.eq.f32.partialorder %v971, 8.507059e+37
          %v973 = vand.u32 %v889, 2147483648
          %v974 = vor.u32 1.1754944e-38, %v973
          %v975 = vsel %vm972, %v974, %v970
          %v976 = vmul.f32 %v854, %v975
          %v977 = vrcp.pop %v891
          %v978 = vmul.f32 %v891, %v977
          %v979 = vsub.f32 1.0, %v978
          %v980 = vmul.f32 %v977, %v979
          %v981 = vadd.f32 %v977, %v980
          %vm982 = vweird.f32 %v891
          %vm983 = vweird.f32 %v977
          %vm984 = vmor %vm982, %vm983
          %v985 = vsel %vm984, %v977, %v981
          %v986 = vand.u32 2147483647, %v891
          %vm987 = vcmp.eq.f32.partialorder %v986, 8.507059e+37
          %v988 = vand.u32 %v891, 2147483648
          %v989 = vor.u32 1.1754944e-38, %v988
          %v990 = vsel %vm987, %v989, %v985
          %v991 = vmul.f32 %v855, %v990
          %v992 = vrcp.pop %v893
          %v993 = vmul.f32 %v893, %v992
          %v994 = vsub.f32 1.0, %v993
          %v995 = vmul.f32 %v992, %v994
          %v996 = vadd.f32 %v992, %v995
          %vm997 = vweird.f32 %v893
          %vm998 = vweird.f32 %v992
          %vm999 = vmor %vm997, %vm998
          %v1000 = vsel %vm999, %v992, %v996
          %v1001 = vand.u32 2147483647, %v893
          %vm1002 = vcmp.eq.f32.partialorder %v1001, 8.507059e+37
          %v1003 = vand.u32 %v893, 2147483648
          %v1004 = vor.u32 1.1754944e-38, %v1003
          %v1005 = vsel %vm1002, %v1004, %v1000
          %v1006 = vmul.f32 %v856, %v1005
          %v1007 = vrcp.pop %v895
          %v1008 = vmul.f32 %v895, %v1007
          %v1009 = vsub.f32 1.0, %v1008
          %v1010 = vmul.f32 %v1007, %v1009
          %v1011 = vadd.f32 %v1007, %v1010
          %vm1012 = vweird.f32 %v895
          %vm1013 = vweird.f32 %v1007
          %vm1014 = vmor %vm1012, %vm1013
          %v1015 = vsel %vm1014, %v1007, %v1011
          %v1016 = vand.u32 2147483647, %v895
          %vm1017 = vcmp.eq.f32.partialorder %v1016, 8.507059e+37
          %v1018 = vand.u32 %v895, 2147483648
          %v1019 = vor.u32 1.1754944e-38, %v1018
          %v1020 = vsel %vm1017, %v1019, %v1015
          %v1021 = vmul.f32 %v857, %v1020
          %v1022 = vrcp.pop %v897
          %v1023 = vmul.f32 %v897, %v1022
          %v1024 = vsub.f32 1.0, %v1023
          %v1025 = vmul.f32 %v1022, %v1024
          %v1026 = vadd.f32 %v1022, %v1025
          %vm1027 = vweird.f32 %v897
          %vm1028 = vweird.f32 %v1022
          %vm1029 = vmor %vm1027, %vm1028
          %v1030 = vsel %vm1029, %v1022, %v1026
          %v1031 = vand.u32 2147483647, %v897
          %vm1032 = vcmp.eq.f32.partialorder %v1031, 8.507059e+37
          %v1033 = vand.u32 %v897, 2147483648
          %v1034 = vor.u32 1.1754944e-38, %v1033
          %v1035 = vsel %vm1032, %v1034, %v1030
          %v1036 = vmul.f32 %v858, %v1035
          %v1037 = vrcp.pop %v899
          %v1038 = vmul.f32 %v899, %v1037
          %v1039 = vsub.f32 1.0, %v1038
          %v1040 = vmul.f32 %v1037, %v1039
          %v1041 = vadd.f32 %v1037, %v1040
          %vm1042 = vweird.f32 %v899
          %vm1043 = vweird.f32 %v1037
          %vm1044 = vmor %vm1042, %vm1043
          %v1045 = vsel %vm1044, %v1037, %v1041
          %v1046 = vand.u32 2147483647, %v899
          %vm1047 = vcmp.eq.f32.partialorder %v1046, 8.507059e+37
          %v1048 = vand.u32 %v899, 2147483648
          %v1049 = vor.u32 1.1754944e-38, %v1048
          %v1050 = vsel %vm1047, %v1049, %v1045
          %v1051 = vmul.f32 %v859, %v1050
          %v1052 = vrcp.pop %v901
          %v1053 = vmul.f32 %v901, %v1052
          %v1054 = vsub.f32 1.0, %v1053
          %v1055 = vmul.f32 %v1052, %v1054
          %v1056 = vadd.f32 %v1052, %v1055
          %vm1057 = vweird.f32 %v901
          %vm1058 = vweird.f32 %v1052
          %vm1059 = vmor %vm1057, %vm1058
          %v1060 = vsel %vm1059, %v1052, %v1056
          %v1061 = vand.u32 2147483647, %v901
          %vm1062 = vcmp.eq.f32.partialorder %v1061, 8.507059e+37
          %v1063 = vand.u32 %v901, 2147483648
          %v1064 = vor.u32 1.1754944e-38, %v1063
          %v1065 = vsel %vm1062, %v1064, %v1060
          %v1066 = vmul.f32 %v860, %v1065
          %v1067 = vrcp.pop %v903
          %v1068 = vmul.f32 %v903, %v1067
          %v1069 = vsub.f32 1.0, %v1068
          %v1070 = vmul.f32 %v1067, %v1069
          %v1071 = vadd.f32 %v1067, %v1070
          %vm1072 = vweird.f32 %v903
          %vm1073 = vweird.f32 %v1067
          %vm1074 = vmor %vm1072, %vm1073
          %v1075 = vsel %vm1074, %v1067, %v1071
          %v1076 = vand.u32 2147483647, %v903
          %vm1077 = vcmp.eq.f32.partialorder %v1076, 8.507059e+37
          %v1078 = vand.u32 %v903, 2147483648
          %v1079 = vor.u32 1.1754944e-38, %v1078
          %v1080 = vsel %vm1077, %v1079, %v1075
          %v1081 = vmul.f32 %v861, %v1080
          %v1082 = vrcp.pop %v905
          %v1083 = vmul.f32 %v905, %v1082
          %v1084 = vsub.f32 1.0, %v1083
          %v1085 = vmul.f32 %v1082, %v1084
          %v1086 = vadd.f32 %v1082, %v1085
          %vm1087 = vweird.f32 %v905
          %vm1088 = vweird.f32 %v1082
          %vm1089 = vmor %vm1087, %vm1088
          %v1090 = vsel %vm1089, %v1082, %v1086
          %v1091 = vand.u32 2147483647, %v905
          %vm1092 = vcmp.eq.f32.partialorder %v1091, 8.507059e+37
          %v1093 = vand.u32 %v905, 2147483648
          %v1094 = vor.u32 1.1754944e-38, %v1093
          %v1095 = vsel %vm1092, %v1094, %v1090
          %v1096 = vmul.f32 %v862, %v1095
          %v1097 = vrcp.pop %v907
          %v1098 = vmul.f32 %v907, %v1097
          %v1099 = vsub.f32 1.0, %v1098
          %v1100 = vmul.f32 %v1097, %v1099
          %v1101 = vadd.f32 %v1097, %v1100
          %vm1102 = vweird.f32 %v907
          %vm1103 = vweird.f32 %v1097
          %vm1104 = vmor %vm1102, %vm1103
          %v1105 = vsel %vm1104, %v1097, %v1101
          %v1106 = vand.u32 2147483647, %v907
          %vm1107 = vcmp.eq.f32.partialorder %v1106, 8.507059e+37
          %v1108 = vand.u32 %v907, 2147483648
          %v1109 = vor.u32 1.1754944e-38, %v1108
          %v1110 = vsel %vm1107, %v1109, %v1105
          %v1111 = vmul.f32 %v863, %v1110
          %v1112 = vrcp.pop %v909
          %v1113 = vmul.f32 %v909, %v1112
          %v1114 = vsub.f32 1.0, %v1113
          %v1115 = vmul.f32 %v1112, %v1114
          %v1116 = vadd.f32 %v1112, %v1115
          %vm1117 = vweird.f32 %v909
          %vm1118 = vweird.f32 %v1112
          %vm1119 = vmor %vm1117, %vm1118
          %v1120 = vsel %vm1119, %v1112, %v1116
          %v1121 = vand.u32 2147483647, %v909
          %vm1122 = vcmp.eq.f32.partialorder %v1121, 8.507059e+37
          %v1123 = vand.u32 %v909, 2147483648
          %v1124 = vor.u32 1.1754944e-38, %v1123
          %v1125 = vsel %vm1122, %v1124, %v1120
          %v1126 = vmul.f32 %v864, %v1125
          %v1127 = vrcp.pop %v911
          %v1128 = vmul.f32 %v911, %v1127
          %v1129 = vsub.f32 1.0, %v1128
          %v1130 = vmul.f32 %v1127, %v1129
          %v1131 = vadd.f32 %v1127, %v1130
          %vm1132 = vweird.f32 %v911
          %vm1133 = vweird.f32 %v1127
          %vm1134 = vmor %vm1132, %vm1133
          %v1135 = vsel %vm1134, %v1127, %v1131
          %v1136 = vand.u32 2147483647, %v911
          %vm1137 = vcmp.eq.f32.partialorder %v1136, 8.507059e+37
          %v1138 = vand.u32 %v911, 2147483648
          %v1139 = vor.u32 1.1754944e-38, %v1138
          %v1140 = vsel %vm1137, %v1139, %v1135
          %v1141 = vmul.f32 %v865, %v1140
          %v1142 = vrcp.pop %v913
          %v1143 = vmul.f32 %v913, %v1142
          %v1144 = vsub.f32 1.0, %v1143
          %v1145 = vmul.f32 %v1142, %v1144
          %v1146 = vadd.f32 %v1142, %v1145
          %vm1147 = vweird.f32 %v913
          %vm1148 = vweird.f32 %v1142
          %vm1149 = vmor %vm1147, %vm1148
          %v1150 = vsel %vm1149, %v1142, %v1146
          %v1151 = vand.u32 2147483647, %v913
          %vm1152 = vcmp.eq.f32.partialorder %v1151, 8.507059e+37
          %v1153 = vand.u32 %v913, 2147483648
          %v1154 = vor.u32 1.1754944e-38, %v1153
          %v1155 = vsel %vm1152, %v1154, %v1150
          %v1156 = vmul.f32 %v866, %v1155
          %v1157 = vrcp.pop %v915
          %v1158 = vmul.f32 %v915, %v1157
          %v1159 = vsub.f32 1.0, %v1158
          %v1160 = vmul.f32 %v1157, %v1159
          %v1161 = vadd.f32 %v1157, %v1160
          %vm1162 = vweird.f32 %v915
          %vm1163 = vweird.f32 %v1157
          %vm1164 = vmor %vm1162, %vm1163
          %v1165 = vsel %vm1164, %v1157, %v1161
          %v1166 = vand.u32 2147483647, %v915
          %vm1167 = vcmp.eq.f32.partialorder %v1166, 8.507059e+37
          %v1168 = vand.u32 %v915, 2147483648
          %v1169 = vor.u32 1.1754944e-38, %v1168
          %v1170 = vsel %vm1167, %v1169, %v1165
          %v1171 = vmul.f32 %v867, %v1170
          %v1172 = vld [vmem:[%s591] sm:$0xf]
          %v1173 = vld [vmem:[%s591 + $0x4] sm:$0xf]
          %v1174 = vld [vmem:[%s591 + $0x8] sm:$0xf]
          %v1175 = vld [vmem:[%s591 + $0xc] sm:$0xf]
          %v1176 = vld [vmem:[%s591 + $0x10] sm:$0xf]
          %v1177 = vld [vmem:[%s591 + $0x14] sm:$0xf]
          %v1178 = vld [vmem:[%s591 + $0x18] sm:$0xf]
          %v1179 = vld [vmem:[%s591 + $0x1c] sm:$0xf]
          %v1180 = vld [vmem:[%s591 + $0x20] sm:$0xf]
          %v1181 = vld [vmem:[%s591 + $0x24] sm:$0xf]
          %v1182 = vld [vmem:[%s591 + $0x28] sm:$0xf]
          %v1183 = vld [vmem:[%s591 + $0x2c] sm:$0xf]
          %v1184 = vld [vmem:[%s591 + $0x30] sm:$0xf]
          %v1185 = vld [vmem:[%s591 + $0x34] sm:$0xf]
          %v1186 = vld [vmem:[%s591 + $0x38] sm:$0xf]
          %v1187 = vld [vmem:[%s591 + $0x3c] sm:$0xf]
          %v1188 = vld [vmem:[%s4] sm:$0xf]
          %v1189 = vld [vmem:[%s4 + $0x4] sm:$0xf]
          %v1190 = vld [vmem:[%s5] sm:$0x1]
          %v1192 = vperm.slane %v1190, 0
          %v1210 = vunpack.c.l.b16 %v1172
          %v1211 = vunpack.c.l.b16 %v1173
          %v1212 = vunpack.c.l.b16 %v1174
          %v1213 = vunpack.c.l.b16 %v1175
          %v1214 = vunpack.c.l.b16 %v1176
          %v1215 = vunpack.c.l.b16 %v1177
          %v1216 = vunpack.c.l.b16 %v1178
          %v1217 = vunpack.c.l.b16 %v1179
          %v1218 = vunpack.c.l.b16 %v1180
          %v1219 = vunpack.c.l.b16 %v1181
          %v1220 = vunpack.c.l.b16 %v1182
          %v1221 = vunpack.c.l.b16 %v1183
          %v1222 = vunpack.c.l.b16 %v1184
          %v1223 = vunpack.c.l.b16 %v1185
          %v1224 = vunpack.c.l.b16 %v1186
          %v1225 = vunpack.c.l.b16 %v1187
          %v1226 = vpack.c.b16 %v1211, %v1210
          %v1227 = vpack.c.b16 %v1213, %v1212
          %v1228 = vpack.c.b16 %v1215, %v1214
          %v1229 = vpack.c.b16 %v1217, %v1216
          %v1230 = vpack.c.b16 %v1219, %v1218
          %v1231 = vpack.c.b16 %v1221, %v1220
          %v1232 = vpack.c.b16 %v1223, %v1222
          %v1233 = vpack.c.b16 %v1225, %v1224
          %v1236 = vunpack.c.l.b16 %v1188
          %v1237 = vunpack.c.l.b16 %v1189
          %v1238 = vpack.c.b16 %v1237, %v1236
          %vm1240 = vcmask 130048
          %v1242 = vsel %vm1240, %v1226, 0
          %v1245 = vsel %vm1240, %v1227, 0
          %v1248 = vsel %vm1240, %v1228, 0
          %v1251 = vsel %vm1240, %v1229, 0
          %v1254 = vsel %vm1240, %v1230, 0
          %v1257 = vsel %vm1240, %v1231, 0
          %v1260 = vsel %vm1240, %v1232, 0
          %v1263 = vsel %vm1240, %v1233, 0
          %1265 = vmatpush.bf16.msra.mxu0 0
          %1266 = vmatpush.bf16.msra.mxu0 0
          %1267 = vmatpush.bf16.msra.mxu0 0
          %1268 = vmatpush.bf16.msra.mxu0 0
          %1269 = vmatpush.bf16.msra.mxu0 0
          %1270 = vmatpush.bf16.msra.mxu0 0
          %1271 = vmatpush.bf16.msra.mxu0 0
          %1272 = vmatpush.bf16.msra.mxu0 %v1238
          %1273 = vmatmul.bf16.gmra.mxu0 %v1242
          %v1274 = vpop.f32.mrf.mxu0
          %v1275 = vadd.f32 %v1192, %v1274
          %v1276 = vpop.f32.mrf.mxu0
          %v1277 = vadd.f32 %v1192, %v1276
          %1278 = vmatmul.bf16.gmra.mxu0 %v1245
          %v1279 = vpop.f32.mrf.mxu0
          %v1280 = vadd.f32 %v1192, %v1279
          %v1281 = vpop.f32.mrf.mxu0
          %v1282 = vadd.f32 %v1192, %v1281
          %1283 = vmatmul.bf16.gmra.mxu0 %v1248
          %v1284 = vpop.f32.mrf.mxu0
          %v1285 = vadd.f32 %v1192, %v1284
          %v1286 = vpop.f32.mrf.mxu0
          %v1287 = vadd.f32 %v1192, %v1286
          %1288 = vmatmul.bf16.gmra.mxu0 %v1251
          %v1289 = vpop.f32.mrf.mxu0
          %v1290 = vadd.f32 %v1192, %v1289
          %v1291 = vpop.f32.mrf.mxu0
          %v1292 = vadd.f32 %v1192, %v1291
          %1293 = vmatmul.bf16.gmra.mxu0 %v1254
          %v1294 = vpop.f32.mrf.mxu0
          %v1295 = vadd.f32 %v1192, %v1294
          %v1296 = vpop.f32.mrf.mxu0
          %v1297 = vadd.f32 %v1192, %v1296
          %1298 = vmatmul.bf16.gmra.mxu0 %v1257
          %v1299 = vpop.f32.mrf.mxu0
          %v1300 = vadd.f32 %v1192, %v1299
          %v1301 = vpop.f32.mrf.mxu0
          %v1302 = vadd.f32 %v1192, %v1301
          %1303 = vmatmul.bf16.gmra.mxu0 %v1260
          %v1304 = vpop.f32.mrf.mxu0
          %v1305 = vadd.f32 %v1192, %v1304
          %v1306 = vpop.f32.mrf.mxu0
          %v1307 = vadd.f32 %v1192, %v1306
          %1308 = vmatmul.bf16.gmra.mxu0 %v1263
          %v1309 = vpop.f32.mrf.mxu0
          %v1310 = vadd.f32 %v1192, %v1309
          %v1311 = vpop.f32.mrf.mxu0
          %v1312 = vadd.f32 %v1192, %v1311
          %1313 = vdwg.mxu0
          %v1314 = vmax.f32 %v1275, 0.0
          %v1315 = vmax.f32 %v1277, 0.0
          %v1316 = vmax.f32 %v1280, 0.0
          %v1317 = vmax.f32 %v1282, 0.0
          %v1318 = vmax.f32 %v1285, 0.0
          %v1319 = vmax.f32 %v1287, 0.0
          %v1320 = vmax.f32 %v1290, 0.0
          %v1321 = vmax.f32 %v1292, 0.0
          %v1322 = vmax.f32 %v1295, 0.0
          %v1323 = vmax.f32 %v1297, 0.0
          %v1324 = vmax.f32 %v1300, 0.0
          %v1325 = vmax.f32 %v1302, 0.0
          %v1326 = vmax.f32 %v1305, 0.0
          %v1327 = vmax.f32 %v1307, 0.0
          %v1328 = vmax.f32 %v1310, 0.0
          %v1329 = vmax.f32 %v1312, 0.0
          %v1330 = vpack.c.bf16 %v1315, %v1314
          %v1331 = vpack.c.bf16 %v1317, %v1316
          %v1332 = vpack.c.bf16 %v1319, %v1318
          %v1333 = vpack.c.bf16 %v1321, %v1320
          %v1334 = vpack.c.bf16 %v1323, %v1322
          %v1335 = vpack.c.bf16 %v1325, %v1324
          %v1336 = vpack.c.bf16 %v1327, %v1326
          %v1337 = vpack.c.bf16 %v1329, %v1328
          %v1338 = vld [vmem:[%s6] sm:$0xf]
          %v1339 = vld [vmem:[%s6 + $0x4] sm:$0xf]
          %v1340 = vld [vmem:[%s6 + $0x8] sm:$0xf]
          %v1341 = vld [vmem:[%s6 + $0xc] sm:$0xf]
          %v1342 = vld [vmem:[%s7] sm:$0x1]
          %v1344 = vperm.slane %v1342, 0
          %v1350 = vunpack.c.l.b16 %v1338
          %v1351 = vunpack.c.l.b16 %v1339
          %v1352 = vunpack.c.l.b16 %v1340
          %v1353 = vunpack.c.l.b16 %v1341
          %v1354 = vpack.c.b16 %v1351, %v1350
          %v1355 = vpack.c.b16 %v1353, %v1352
          %vm1358 = vcmask 261120
          %v1360 = vsel %vm1358, %v1330, 0
          %v1363 = vsel %vm1358, %v1331, 0
          %v1366 = vsel %vm1358, %v1332, 0
          %v1369 = vsel %vm1358, %v1333, 0
          %v1372 = vsel %vm1358, %v1334, 0
          %v1375 = vsel %vm1358, %v1335, 0
          %v1378 = vsel %vm1358, %v1336, 0
          %v1381 = vsel %vm1358, %v1337, 0
          %1383 = vmatpush.bf16.msra.mxu0 0
          %1384 = vmatpush.bf16.msra.mxu0 0
          %1385 = vmatpush.bf16.msra.mxu0 0
          %1386 = vmatpush.bf16.msra.mxu0 0
          %1387 = vmatpush.bf16.msra.mxu0 0
          %1388 = vmatpush.bf16.msra.mxu0 0
          %1389 = vmatpush.bf16.msra.mxu0 %v1355
          %1390 = vmatpush.bf16.msra.mxu0 %v1354
          %1391 = vmatmul.bf16.gmra.mxu0 %v1360
          %v1392 = vpop.f32.mrf.mxu0
          %v1393 = vadd.f32 %v1344, %v1392
          %v1394 = vpop.f32.mrf.mxu0
          %v1395 = vadd.f32 %v1344, %v1394
          %1396 = vmatmul.bf16.gmra.mxu0 %v1363
          %v1397 = vpop.f32.mrf.mxu0
          %v1398 = vadd.f32 %v1344, %v1397
          %v1399 = vpop.f32.mrf.mxu0
          %v1400 = vadd.f32 %v1344, %v1399
          %1401 = vmatmul.bf16.gmra.mxu0 %v1366
          %v1402 = vpop.f32.mrf.mxu0
          %v1403 = vadd.f32 %v1344, %v1402
          %v1404 = vpop.f32.mrf.mxu0
          %v1405 = vadd.f32 %v1344, %v1404
          %1406 = vmatmul.bf16.gmra.mxu0 %v1369
          %v1407 = vpop.f32.mrf.mxu0
          %v1408 = vadd.f32 %v1344, %v1407
          %v1409 = vpop.f32.mrf.mxu0
          %v1410 = vadd.f32 %v1344, %v1409
          %1411 = vmatmul.bf16.gmra.mxu0 %v1372
          %v1412 = vpop.f32.mrf.mxu0
          %v1413 = vadd.f32 %v1344, %v1412
          %v1414 = vpop.f32.mrf.mxu0
          %v1415 = vadd.f32 %v1344, %v1414
          %1416 = vmatmul.bf16.gmra.mxu0 %v1375
          %v1417 = vpop.f32.mrf.mxu0
          %v1418 = vadd.f32 %v1344, %v1417
          %v1419 = vpop.f32.mrf.mxu0
          %v1420 = vadd.f32 %v1344, %v1419
          %1421 = vmatmul.bf16.gmra.mxu0 %v1378
          %v1422 = vpop.f32.mrf.mxu0
          %v1423 = vadd.f32 %v1344, %v1422
          %v1424 = vpop.f32.mrf.mxu0
          %v1425 = vadd.f32 %v1344, %v1424
          %1426 = vmatmul.bf16.gmra.mxu0 %v1381
          %v1427 = vpop.f32.mrf.mxu0
          %v1428 = vadd.f32 %v1344, %v1427
          %v1429 = vpop.f32.mrf.mxu0
          %v1430 = vadd.f32 %v1344, %v1429
          %1431 = vdwg.mxu0
          %v1432 = vmax.f32 %v1393, 0.0
          %v1433 = vmax.f32 %v1395, 0.0
          %v1434 = vmax.f32 %v1398, 0.0
          %v1435 = vmax.f32 %v1400, 0.0
          %v1436 = vmax.f32 %v1403, 0.0
          %v1437 = vmax.f32 %v1405, 0.0
          %v1438 = vmax.f32 %v1408, 0.0
          %v1439 = vmax.f32 %v1410, 0.0
          %v1440 = vmax.f32 %v1413, 0.0
          %v1441 = vmax.f32 %v1415, 0.0
          %v1442 = vmax.f32 %v1418, 0.0
          %v1443 = vmax.f32 %v1420, 0.0
          %v1444 = vmax.f32 %v1423, 0.0
          %v1445 = vmax.f32 %v1425, 0.0
          %v1446 = vmax.f32 %v1428, 0.0
          %v1447 = vmax.f32 %v1430, 0.0
          %v1448 = vpack.c.bf16 %v1433, %v1432
          %v1449 = vpack.c.bf16 %v1435, %v1434
          %v1450 = vpack.c.bf16 %v1437, %v1436
          %v1451 = vpack.c.bf16 %v1439, %v1438
          %v1452 = vpack.c.bf16 %v1441, %v1440
          %v1453 = vpack.c.bf16 %v1443, %v1442
          %v1454 = vpack.c.bf16 %v1445, %v1444
          %v1455 = vpack.c.bf16 %v1447, %v1446
          %v1456 = vld [vmem:[%s8] sm:$0xf]
          %v1457 = vld [vmem:[%s8 + $0x4] sm:$0xf]
          %v1458 = vld [vmem:[%s8 + $0x8] sm:$0xf]
          %v1459 = vld [vmem:[%s8 + $0xc] sm:$0xf]
          %v1460 = vld [vmem:[%s9] sm:$0x1]
          %v1462 = vperm.slane %v1460, 0
          %v1468 = vunpack.c.l.b16 %v1456
          %v1469 = vunpack.c.l.b16 %v1457
          %v1470 = vunpack.c.l.b16 %v1458
          %v1471 = vunpack.c.l.b16 %v1459
          %v1472 = vpack.c.b16 %v1469, %v1468
          %v1473 = vpack.c.b16 %v1471, %v1470
          %v1477 = vsel %vm1358, %v1448, 0
          %v1480 = vsel %vm1358, %v1449, 0
          %v1483 = vsel %vm1358, %v1450, 0
          %v1486 = vsel %vm1358, %v1451, 0
          %v1489 = vsel %vm1358, %v1452, 0
          %v1492 = vsel %vm1358, %v1453, 0
          %v1495 = vsel %vm1358, %v1454, 0
          %v1498 = vsel %vm1358, %v1455, 0
          %1500 = vmatpush.bf16.msra.mxu0 0
          %1501 = vmatpush.bf16.msra.mxu0 0
          %1502 = vmatpush.bf16.msra.mxu0 0
          %1503 = vmatpush.bf16.msra.mxu0 0
          %1504 = vmatpush.bf16.msra.mxu0 0
          %1505 = vmatpush.bf16.msra.mxu0 0
          %1506 = vmatpush.bf16.msra.mxu0 %v1473
          %1507 = vmatpush.bf16.msra.mxu0 %v1472
          %1508 = vmatmul.bf16.gmra.mxu0 %v1477
          %v1509 = vpop.f32.mrf.mxu0
          %v1510 = vadd.f32 %v1462, %v1509
          %v1511 = vpop.f32.mrf.mxu0
          %v1512 = vadd.f32 %v1462, %v1511
          %1513 = vmatmul.bf16.gmra.mxu0 %v1480
          %v1514 = vpop.f32.mrf.mxu0
          %v1515 = vadd.f32 %v1462, %v1514
          %v1516 = vpop.f32.mrf.mxu0
          %v1517 = vadd.f32 %v1462, %v1516
          %1518 = vmatmul.bf16.gmra.mxu0 %v1483
          %v1519 = vpop.f32.mrf.mxu0
          %v1520 = vadd.f32 %v1462, %v1519
          %v1521 = vpop.f32.mrf.mxu0
          %v1522 = vadd.f32 %v1462, %v1521
          %1523 = vmatmul.bf16.gmra.mxu0 %v1486
          %v1524 = vpop.f32.mrf.mxu0
          %v1525 = vadd.f32 %v1462, %v1524
          %v1526 = vpop.f32.mrf.mxu0
          %v1527 = vadd.f32 %v1462, %v1526
          %1528 = vmatmul.bf16.gmra.mxu0 %v1489
          %v1529 = vpop.f32.mrf.mxu0
          %v1530 = vadd.f32 %v1462, %v1529
          %v1531 = vpop.f32.mrf.mxu0
          %v1532 = vadd.f32 %v1462, %v1531
          %1533 = vmatmul.bf16.gmra.mxu0 %v1492
          %v1534 = vpop.f32.mrf.mxu0
          %v1535 = vadd.f32 %v1462, %v1534
          %v1536 = vpop.f32.mrf.mxu0
          %v1537 = vadd.f32 %v1462, %v1536
          %1538 = vmatmul.bf16.gmra.mxu0 %v1495
          %v1539 = vpop.f32.mrf.mxu0
          %v1540 = vadd.f32 %v1462, %v1539
          %v1541 = vpop.f32.mrf.mxu0
          %v1542 = vadd.f32 %v1462, %v1541
          %1543 = vmatmul.bf16.gmra.mxu0 %v1498
          %v1544 = vpop.f32.mrf.mxu0
          %v1545 = vadd.f32 %v1462, %v1544
          %v1546 = vpop.f32.mrf.mxu0
          %v1547 = vadd.f32 %v1462, %v1546
          %1548 = vdwg.mxu0
          %v1549 = vmax.f32 %v1510, 0.0
          %v1550 = vmax.f32 %v1512, 0.0
          %v1551 = vmax.f32 %v1515, 0.0
          %v1552 = vmax.f32 %v1517, 0.0
          %v1553 = vmax.f32 %v1520, 0.0
          %v1554 = vmax.f32 %v1522, 0.0
          %v1555 = vmax.f32 %v1525, 0.0
          %v1556 = vmax.f32 %v1527, 0.0
          %v1557 = vmax.f32 %v1530, 0.0
          %v1558 = vmax.f32 %v1532, 0.0
          %v1559 = vmax.f32 %v1535, 0.0
          %v1560 = vmax.f32 %v1537, 0.0
          %v1561 = vmax.f32 %v1540, 0.0
          %v1562 = vmax.f32 %v1542, 0.0
          %v1563 = vmax.f32 %v1545, 0.0
          %v1564 = vmax.f32 %v1547, 0.0
          %v1565 = vxor.u32 %v1510, 2147483648
          %v1566 = vxor.u32 %v1512, 2147483648
          %v1567 = vxor.u32 %v1515, 2147483648
          %v1568 = vxor.u32 %v1517, 2147483648
          %v1569 = vxor.u32 %v1520, 2147483648
          %v1570 = vxor.u32 %v1522, 2147483648
          %v1571 = vxor.u32 %v1525, 2147483648
          %v1572 = vxor.u32 %v1527, 2147483648
          %v1573 = vxor.u32 %v1530, 2147483648
          %v1574 = vxor.u32 %v1532, 2147483648
          %v1575 = vxor.u32 %v1535, 2147483648
          %v1576 = vxor.u32 %v1537, 2147483648
          %v1577 = vxor.u32 %v1540, 2147483648
          %v1578 = vxor.u32 %v1542, 2147483648
          %v1579 = vxor.u32 %v1545, 2147483648
          %v1580 = vxor.u32 %v1547, 2147483648
          %v1581 = vmul.f32 %v1565, 1.442695
          %v1582 = vpow.pop %v1581
          %v1583 = vmul.f32 %v1566, 1.442695
          %v1584 = vpow.pop %v1583
          %v1585 = vmul.f32 %v1567, 1.442695
          %v1586 = vpow.pop %v1585
          %v1587 = vmul.f32 %v1568, 1.442695
          %v1588 = vpow.pop %v1587
          %v1589 = vmul.f32 %v1569, 1.442695
          %v1590 = vpow.pop %v1589
          %v1591 = vmul.f32 %v1570, 1.442695
          %v1592 = vpow.pop %v1591
          %v1593 = vmul.f32 %v1571, 1.442695
          %v1594 = vpow.pop %v1593
          %v1595 = vmul.f32 %v1572, 1.442695
          %v1596 = vpow.pop %v1595
          %v1597 = vmul.f32 %v1573, 1.442695
          %v1598 = vpow.pop %v1597
          %v1599 = vmul.f32 %v1574, 1.442695
          %v1600 = vpow.pop %v1599
          %v1601 = vmul.f32 %v1575, 1.442695
          %v1602 = vpow.pop %v1601
          %v1603 = vmul.f32 %v1576, 1.442695
          %v1604 = vpow.pop %v1603
          %v1605 = vmul.f32 %v1577, 1.442695
          %v1606 = vpow.pop %v1605
          %v1607 = vmul.f32 %v1578, 1.442695
          %v1608 = vpow.pop %v1607
          %v1609 = vmul.f32 %v1579, 1.442695
          %v1610 = vpow.pop %v1609
          %v1611 = vmul.f32 %v1580, 1.442695
          %v1612 = vpow.pop %v1611
          %v1613 = vadd.f32 %v1582, 1.0
          %v1614 = vadd.f32 %v1584, 1.0
          %v1615 = vadd.f32 %v1586, 1.0
          %v1616 = vadd.f32 %v1588, 1.0
          %v1617 = vadd.f32 %v1590, 1.0
          %v1618 = vadd.f32 %v1592, 1.0
          %v1619 = vadd.f32 %v1594, 1.0
          %v1620 = vadd.f32 %v1596, 1.0
          %v1621 = vadd.f32 %v1598, 1.0
          %v1622 = vadd.f32 %v1600, 1.0
          %v1623 = vadd.f32 %v1602, 1.0
          %v1624 = vadd.f32 %v1604, 1.0
          %v1625 = vadd.f32 %v1606, 1.0
          %v1626 = vadd.f32 %v1608, 1.0
          %v1627 = vadd.f32 %v1610, 1.0
          %v1628 = vadd.f32 %v1612, 1.0
          %v1629 = vrcp.pop %v1613
          %v1630 = vmul.f32 %v1613, %v1629
          %v1631 = vsub.f32 1.0, %v1630
          %v1632 = vmul.f32 %v1629, %v1631
          %v1633 = vadd.f32 %v1629, %v1632
          %vm1634 = vweird.f32 %v1613
          %vm1635 = vweird.f32 %v1629
          %vm1636 = vmor %vm1634, %vm1635
          %v1637 = vsel %vm1636, %v1629, %v1633
          %v1638 = vand.u32 2147483647, %v1613
          %vm1639 = vcmp.eq.f32.partialorder %v1638, 8.507059e+37
          %v1640 = vand.u32 %v1613, 2147483648
          %v1641 = vor.u32 1.1754944e-38, %v1640
          %v1642 = vsel %vm1639, %v1641, %v1637
          %v1643 = vmul.f32 1.0, %v1642
          %v1644 = vrcp.pop %v1614
          %v1645 = vmul.f32 %v1614, %v1644
          %v1646 = vsub.f32 1.0, %v1645
          %v1647 = vmul.f32 %v1644, %v1646
          %v1648 = vadd.f32 %v1644, %v1647
          %vm1649 = vweird.f32 %v1614
          %vm1650 = vweird.f32 %v1644
          %vm1651 = vmor %vm1649, %vm1650
          %v1652 = vsel %vm1651, %v1644, %v1648
          %v1653 = vand.u32 2147483647, %v1614
          %vm1654 = vcmp.eq.f32.partialorder %v1653, 8.507059e+37
          %v1655 = vand.u32 %v1614, 2147483648
          %v1656 = vor.u32 1.1754944e-38, %v1655
          %v1657 = vsel %vm1654, %v1656, %v1652
          %v1658 = vmul.f32 1.0, %v1657
          %v1659 = vrcp.pop %v1615
          %v1660 = vmul.f32 %v1615, %v1659
          %v1661 = vsub.f32 1.0, %v1660
          %v1662 = vmul.f32 %v1659, %v1661
          %v1663 = vadd.f32 %v1659, %v1662
          %vm1664 = vweird.f32 %v1615
          %vm1665 = vweird.f32 %v1659
          %vm1666 = vmor %vm1664, %vm1665
          %v1667 = vsel %vm1666, %v1659, %v1663
          %v1668 = vand.u32 2147483647, %v1615
          %vm1669 = vcmp.eq.f32.partialorder %v1668, 8.507059e+37
          %v1670 = vand.u32 %v1615, 2147483648
          %v1671 = vor.u32 1.1754944e-38, %v1670
          %v1672 = vsel %vm1669, %v1671, %v1667
          %v1673 = vmul.f32 1.0, %v1672
          %v1674 = vrcp.pop %v1616
          %v1675 = vmul.f32 %v1616, %v1674
          %v1676 = vsub.f32 1.0, %v1675
          %v1677 = vmul.f32 %v1674, %v1676
          %v1678 = vadd.f32 %v1674, %v1677
          %vm1679 = vweird.f32 %v1616
          %vm1680 = vweird.f32 %v1674
          %vm1681 = vmor %vm1679, %vm1680
          %v1682 = vsel %vm1681, %v1674, %v1678
          %v1683 = vand.u32 2147483647, %v1616
          %vm1684 = vcmp.eq.f32.partialorder %v1683, 8.507059e+37
          %v1685 = vand.u32 %v1616, 2147483648
          %v1686 = vor.u32 1.1754944e-38, %v1685
          %v1687 = vsel %vm1684, %v1686, %v1682
          %v1688 = vmul.f32 1.0, %v1687
          %v1689 = vrcp.pop %v1617
          %v1690 = vmul.f32 %v1617, %v1689
          %v1691 = vsub.f32 1.0, %v1690
          %v1692 = vmul.f32 %v1689, %v1691
          %v1693 = vadd.f32 %v1689, %v1692
          %vm1694 = vweird.f32 %v1617
          %vm1695 = vweird.f32 %v1689
          %vm1696 = vmor %vm1694, %vm1695
          %v1697 = vsel %vm1696, %v1689, %v1693
          %v1698 = vand.u32 2147483647, %v1617
          %vm1699 = vcmp.eq.f32.partialorder %v1698, 8.507059e+37
          %v1700 = vand.u32 %v1617, 2147483648
          %v1701 = vor.u32 1.1754944e-38, %v1700
          %v1702 = vsel %vm1699, %v1701, %v1697
          %v1703 = vmul.f32 1.0, %v1702
          %v1704 = vrcp.pop %v1618
          %v1705 = vmul.f32 %v1618, %v1704
          %v1706 = vsub.f32 1.0, %v1705
          %v1707 = vmul.f32 %v1704, %v1706
          %v1708 = vadd.f32 %v1704, %v1707
          %vm1709 = vweird.f32 %v1618
          %vm1710 = vweird.f32 %v1704
          %vm1711 = vmor %vm1709, %vm1710
          %v1712 = vsel %vm1711, %v1704, %v1708
          %v1713 = vand.u32 2147483647, %v1618
          %vm1714 = vcmp.eq.f32.partialorder %v1713, 8.507059e+37
          %v1715 = vand.u32 %v1618, 2147483648
          %v1716 = vor.u32 1.1754944e-38, %v1715
          %v1717 = vsel %vm1714, %v1716, %v1712
          %v1718 = vmul.f32 1.0, %v1717
          %v1719 = vrcp.pop %v1619
          %v1720 = vmul.f32 %v1619, %v1719
          %v1721 = vsub.f32 1.0, %v1720
          %v1722 = vmul.f32 %v1719, %v1721
          %v1723 = vadd.f32 %v1719, %v1722
          %vm1724 = vweird.f32 %v1619
          %vm1725 = vweird.f32 %v1719
          %vm1726 = vmor %vm1724, %vm1725
          %v1727 = vsel %vm1726, %v1719, %v1723
          %v1728 = vand.u32 2147483647, %v1619
          %vm1729 = vcmp.eq.f32.partialorder %v1728, 8.507059e+37
          %v1730 = vand.u32 %v1619, 2147483648
          %v1731 = vor.u32 1.1754944e-38, %v1730
          %v1732 = vsel %vm1729, %v1731, %v1727
          %v1733 = vmul.f32 1.0, %v1732
          %v1734 = vrcp.pop %v1620
          %v1735 = vmul.f32 %v1620, %v1734
          %v1736 = vsub.f32 1.0, %v1735
          %v1737 = vmul.f32 %v1734, %v1736
          %v1738 = vadd.f32 %v1734, %v1737
          %vm1739 = vweird.f32 %v1620
          %vm1740 = vweird.f32 %v1734
          %vm1741 = vmor %vm1739, %vm1740
          %v1742 = vsel %vm1741, %v1734, %v1738
          %v1743 = vand.u32 2147483647, %v1620
          %vm1744 = vcmp.eq.f32.partialorder %v1743, 8.507059e+37
          %v1745 = vand.u32 %v1620, 2147483648
          %v1746 = vor.u32 1.1754944e-38, %v1745
          %v1747 = vsel %vm1744, %v1746, %v1742
          %v1748 = vmul.f32 1.0, %v1747
          %v1749 = vrcp.pop %v1621
          %v1750 = vmul.f32 %v1621, %v1749
          %v1751 = vsub.f32 1.0, %v1750
          %v1752 = vmul.f32 %v1749, %v1751
          %v1753 = vadd.f32 %v1749, %v1752
          %vm1754 = vweird.f32 %v1621
          %vm1755 = vweird.f32 %v1749
          %vm1756 = vmor %vm1754, %vm1755
          %v1757 = vsel %vm1756, %v1749, %v1753
          %v1758 = vand.u32 2147483647, %v1621
          %vm1759 = vcmp.eq.f32.partialorder %v1758, 8.507059e+37
          %v1760 = vand.u32 %v1621, 2147483648
          %v1761 = vor.u32 1.1754944e-38, %v1760
          %v1762 = vsel %vm1759, %v1761, %v1757
          %v1763 = vmul.f32 1.0, %v1762
          %v1764 = vrcp.pop %v1622
          %v1765 = vmul.f32 %v1622, %v1764
          %v1766 = vsub.f32 1.0, %v1765
          %v1767 = vmul.f32 %v1764, %v1766
          %v1768 = vadd.f32 %v1764, %v1767
          %vm1769 = vweird.f32 %v1622
          %vm1770 = vweird.f32 %v1764
          %vm1771 = vmor %vm1769, %vm1770
          %v1772 = vsel %vm1771, %v1764, %v1768
          %v1773 = vand.u32 2147483647, %v1622
          %vm1774 = vcmp.eq.f32.partialorder %v1773, 8.507059e+37
          %v1775 = vand.u32 %v1622, 2147483648
          %v1776 = vor.u32 1.1754944e-38, %v1775
          %v1777 = vsel %vm1774, %v1776, %v1772
          %v1778 = vmul.f32 1.0, %v1777
          %v1779 = vrcp.pop %v1623
          %v1780 = vmul.f32 %v1623, %v1779
          %v1781 = vsub.f32 1.0, %v1780
          %v1782 = vmul.f32 %v1779, %v1781
          %v1783 = vadd.f32 %v1779, %v1782
          %vm1784 = vweird.f32 %v1623
          %vm1785 = vweird.f32 %v1779
          %vm1786 = vmor %vm1784, %vm1785
          %v1787 = vsel %vm1786, %v1779, %v1783
          %v1788 = vand.u32 2147483647, %v1623
          %vm1789 = vcmp.eq.f32.partialorder %v1788, 8.507059e+37
          %v1790 = vand.u32 %v1623, 2147483648
          %v1791 = vor.u32 1.1754944e-38, %v1790
          %v1792 = vsel %vm1789, %v1791, %v1787
          %v1793 = vmul.f32 1.0, %v1792
          %v1794 = vrcp.pop %v1624
          %v1795 = vmul.f32 %v1624, %v1794
          %v1796 = vsub.f32 1.0, %v1795
          %v1797 = vmul.f32 %v1794, %v1796
          %v1798 = vadd.f32 %v1794, %v1797
          %vm1799 = vweird.f32 %v1624
          %vm1800 = vweird.f32 %v1794
          %vm1801 = vmor %vm1799, %vm1800
          %v1802 = vsel %vm1801, %v1794, %v1798
          %v1803 = vand.u32 2147483647, %v1624
          %vm1804 = vcmp.eq.f32.partialorder %v1803, 8.507059e+37
          %v1805 = vand.u32 %v1624, 2147483648
          %v1806 = vor.u32 1.1754944e-38, %v1805
          %v1807 = vsel %vm1804, %v1806, %v1802
          %v1808 = vmul.f32 1.0, %v1807
          %v1809 = vrcp.pop %v1625
          %v1810 = vmul.f32 %v1625, %v1809
          %v1811 = vsub.f32 1.0, %v1810
          %v1812 = vmul.f32 %v1809, %v1811
          %v1813 = vadd.f32 %v1809, %v1812
          %vm1814 = vweird.f32 %v1625
          %vm1815 = vweird.f32 %v1809
          %vm1816 = vmor %vm1814, %vm1815
          %v1817 = vsel %vm1816, %v1809, %v1813
          %v1818 = vand.u32 2147483647, %v1625
          %vm1819 = vcmp.eq.f32.partialorder %v1818, 8.507059e+37
          %v1820 = vand.u32 %v1625, 2147483648
          %v1821 = vor.u32 1.1754944e-38, %v1820
          %v1822 = vsel %vm1819, %v1821, %v1817
          %v1823 = vmul.f32 1.0, %v1822
          %v1824 = vrcp.pop %v1626
          %v1825 = vmul.f32 %v1626, %v1824
          %v1826 = vsub.f32 1.0, %v1825
          %v1827 = vmul.f32 %v1824, %v1826
          %v1828 = vadd.f32 %v1824, %v1827
          %vm1829 = vweird.f32 %v1626
          %vm1830 = vweird.f32 %v1824
          %vm1831 = vmor %vm1829, %vm1830
          %v1832 = vsel %vm1831, %v1824, %v1828
          %v1833 = vand.u32 2147483647, %v1626
          %vm1834 = vcmp.eq.f32.partialorder %v1833, 8.507059e+37
          %v1835 = vand.u32 %v1626, 2147483648
          %v1836 = vor.u32 1.1754944e-38, %v1835
          %v1837 = vsel %vm1834, %v1836, %v1832
          %v1838 = vmul.f32 1.0, %v1837
          %v1839 = vrcp.pop %v1627
          %v1840 = vmul.f32 %v1627, %v1839
          %v1841 = vsub.f32 1.0, %v1840
          %v1842 = vmul.f32 %v1839, %v1841
          %v1843 = vadd.f32 %v1839, %v1842
          %vm1844 = vweird.f32 %v1627
          %vm1845 = vweird.f32 %v1839
          %vm1846 = vmor %vm1844, %vm1845
          %v1847 = vsel %vm1846, %v1839, %v1843
          %v1848 = vand.u32 2147483647, %v1627
          %vm1849 = vcmp.eq.f32.partialorder %v1848, 8.507059e+37
          %v1850 = vand.u32 %v1627, 2147483648
          %v1851 = vor.u32 1.1754944e-38, %v1850
          %v1852 = vsel %vm1849, %v1851, %v1847
          %v1853 = vmul.f32 1.0, %v1852
          %v1854 = vrcp.pop %v1628
          %v1855 = vmul.f32 %v1628, %v1854
          %v1856 = vsub.f32 1.0, %v1855
          %v1857 = vmul.f32 %v1854, %v1856
          %v1858 = vadd.f32 %v1854, %v1857
          %vm1859 = vweird.f32 %v1628
          %vm1860 = vweird.f32 %v1854
          %vm1861 = vmor %vm1859, %vm1860
          %v1862 = vsel %vm1861, %v1854, %v1858
          %v1863 = vand.u32 2147483647, %v1628
          %vm1864 = vcmp.eq.f32.partialorder %v1863, 8.507059e+37
          %v1865 = vand.u32 %v1628, 2147483648
          %v1866 = vor.u32 1.1754944e-38, %v1865
          %v1867 = vsel %vm1864, %v1866, %v1862
          %v1868 = vmul.f32 1.0, %v1867
          %v1869 = vld [vmem:[%s10] sm:$0xff]
          %v1870 = vld [vmem:[%s10 + $0x8] sm:$0xff]
          %v1871 = vld [vmem:[%s10 + $0x10] sm:$0xff]
          %v1872 = vld [vmem:[%s10 + $0x18] sm:$0xff]
          %v1873 = vld [vmem:[%s10 + $0x20] sm:$0xff]
          %v1874 = vld [vmem:[%s10 + $0x28] sm:$0xff]
          %v1875 = vld [vmem:[%s10 + $0x30] sm:$0xff]
          %v1876 = vld [vmem:[%s10 + $0x38] sm:$0xff]
          %v1877 = vld [vmem:[%s11] sm:$0x1]
          %v1879 = vperm.slane %v1877, 0
          %vm1881 = vcmask 523264
          %v1883 = vsel %vm1881, %v1549, 0
          %v1886 = vsel %vm1881, %v1550, 0
          %v1889 = vsel %vm1881, %v1551, 0
          %v1892 = vsel %vm1881, %v1552, 0
          %v1895 = vsel %vm1881, %v1553, 0
          %v1898 = vsel %vm1881, %v1554, 0
          %v1901 = vsel %vm1881, %v1555, 0
          %v1904 = vsel %vm1881, %v1556, 0
          %v1907 = vsel %vm1881, %v1557, 0
          %v1910 = vsel %vm1881, %v1558, 0
          %v1913 = vsel %vm1881, %v1559, 0
          %v1916 = vsel %vm1881, %v1560, 0
          %v1919 = vsel %vm1881, %v1561, 0
          %v1922 = vsel %vm1881, %v1562, 0
          %v1925 = vsel %vm1881, %v1563, 0
          %v1928 = vsel %vm1881, %v1564, 0
          %1930 = vmatpush.msra.mxu0 0.0
          %1931 = vmatpush.msra.mxu0 0.0
          %1932 = vmatpush.msra.mxu0 0.0
          %1933 = vmatpush.msra.mxu0 0.0
          %1934 = vmatpush.msra.mxu0 0.0
          %1935 = vmatpush.msra.mxu0 0.0
          %1936 = vmatpush.msra.mxu0 0.0
          %1937 = vmatpush.msra.mxu0 0.0
          %1938 = vmatpush.msra.mxu0 %v1876
          %1939 = vmatpush.msra.mxu0 %v1875
          %1940 = vmatpush.msra.mxu0 %v1874
          %1941 = vmatpush.msra.mxu0 %v1873
          %1942 = vmatpush.msra.mxu0 %v1872
          %1943 = vmatpush.msra.mxu0 %v1871
          %1944 = vmatpush.msra.mxu0 %v1870
          %1945 = vmatpush.msra.mxu0 %v1869
          %1946 = vmatmul.f32.gmra.mxu0 %v1883
          %v1947 = vpop.f32.mrf.mxu0
          %v1948 = vadd.f32 %v1879, %v1947
          %1949 = vmatmul.f32.gmra.mxu0 %v1886
          %v1950 = vpop.f32.mrf.mxu0
          %v1951 = vadd.f32 %v1879, %v1950
          %1952 = vmatmul.f32.gmra.mxu0 %v1889
          %v1953 = vpop.f32.mrf.mxu0
          %v1954 = vadd.f32 %v1879, %v1953
          %1955 = vmatmul.f32.gmra.mxu0 %v1892
          %v1956 = vpop.f32.mrf.mxu0
          %v1957 = vadd.f32 %v1879, %v1956
          %1958 = vmatmul.f32.gmra.mxu0 %v1895
          %v1959 = vpop.f32.mrf.mxu0
          %v1960 = vadd.f32 %v1879, %v1959
          %1961 = vmatmul.f32.gmra.mxu0 %v1898
          %v1962 = vpop.f32.mrf.mxu0
          %v1963 = vadd.f32 %v1879, %v1962
          %1964 = vmatmul.f32.gmra.mxu0 %v1901
          %v1965 = vpop.f32.mrf.mxu0
          %v1966 = vadd.f32 %v1879, %v1965
          %1967 = vmatmul.f32.gmra.mxu0 %v1904
          %v1968 = vpop.f32.mrf.mxu0
          %v1969 = vadd.f32 %v1879, %v1968
          %1970 = vmatmul.f32.gmra.mxu0 %v1907
          %v1971 = vpop.f32.mrf.mxu0
          %v1972 = vadd.f32 %v1879, %v1971
          %1973 = vmatmul.f32.gmra.mxu0 %v1910
          %v1974 = vpop.f32.mrf.mxu0
          %v1975 = vadd.f32 %v1879, %v1974
          %1976 = vmatmul.f32.gmra.mxu0 %v1913
          %v1977 = vpop.f32.mrf.mxu0
          %v1978 = vadd.f32 %v1879, %v1977
          %1979 = vmatmul.f32.gmra.mxu0 %v1916
          %v1980 = vpop.f32.mrf.mxu0
          %v1981 = vadd.f32 %v1879, %v1980
          %1982 = vmatmul.f32.gmra.mxu0 %v1919
          %v1983 = vpop.f32.mrf.mxu0
          %v1984 = vadd.f32 %v1879, %v1983
          %1985 = vmatmul.f32.gmra.mxu0 %v1922
          %v1986 = vpop.f32.mrf.mxu0
          %v1987 = vadd.f32 %v1879, %v1986
          %1988 = vmatmul.f32.gmra.mxu0 %v1925
          %v1989 = vpop.f32.mrf.mxu0
          %v1990 = vadd.f32 %v1879, %v1989
          %1991 = vmatmul.f32.gmra.mxu0 %v1928
          %v1992 = vpop.f32.mrf.mxu0
          %v1993 = vadd.f32 %v1879, %v1992
          %1994 = vdwg.mxu0
          %v1995 = vld [vmem:[%s597] sm:$0xff]
          %v1996 = vld [vmem:[%s597 + $0x8] sm:$0xff]
          %v1997 = vld [vmem:[%s597 + $0x10] sm:$0xff]
          %v1998 = vld [vmem:[%s597 + $0x18] sm:$0xff]
          %v1999 = vld [vmem:[%s597 + $0x20] sm:$0xff]
          %v2000 = vld [vmem:[%s597 + $0x28] sm:$0xff]
          %v2001 = vld [vmem:[%s597 + $0x30] sm:$0xff]
          %v2002 = vld [vmem:[%s597 + $0x38] sm:$0xff]
          %v2003 = vld [vmem:[%s597 + $0x40] sm:$0xff]
          %v2004 = vld [vmem:[%s597 + $0x48] sm:$0xff]
          %v2005 = vld [vmem:[%s597 + $0x50] sm:$0xff]
          %v2006 = vld [vmem:[%s597 + $0x58] sm:$0xff]
          %v2007 = vld [vmem:[%s597 + $0x60] sm:$0xff]
          %v2008 = vld [vmem:[%s597 + $0x68] sm:$0xff]
          %v2009 = vld [vmem:[%s597 + $0x70] sm:$0xff]
          %v2010 = vld [vmem:[%s597 + $0x78] sm:$0xff]
          %vm2011 = vcmp.gt.f32.partialorder %v1995, 0.0
          %vm2012 = vcmp.gt.f32.partialorder %v1996, 0.0
          %vm2013 = vcmp.gt.f32.partialorder %v1997, 0.0
          %vm2014 = vcmp.gt.f32.partialorder %v1998, 0.0
          %vm2015 = vcmp.gt.f32.partialorder %v1999, 0.0
          %vm2016 = vcmp.gt.f32.partialorder %v2000, 0.0
          %vm2017 = vcmp.gt.f32.partialorder %v2001, 0.0
          %vm2018 = vcmp.gt.f32.partialorder %v2002, 0.0
          %vm2019 = vcmp.gt.f32.partialorder %v2003, 0.0
          %vm2020 = vcmp.gt.f32.partialorder %v2004, 0.0
          %vm2021 = vcmp.gt.f32.partialorder %v2005, 0.0
          %vm2022 = vcmp.gt.f32.partialorder %v2006, 0.0
          %vm2023 = vcmp.gt.f32.partialorder %v2007, 0.0
          %vm2024 = vcmp.gt.f32.partialorder %v2008, 0.0
          %vm2025 = vcmp.gt.f32.partialorder %v2009, 0.0
          %vm2026 = vcmp.gt.f32.partialorder %v2010, 0.0
          %2043 = vrot.lane.b32.xlu0 %v1948, 127
          %v2044 = vpop.permute.xlu0 %2043
          %2045 = vrot.lane.b32.xlu0 %v1951, 127
          %v2046 = vpop.permute.xlu0 %2045
          %2047 = vrot.lane.b32.xlu0 %v1954, 127
          %v2048 = vpop.permute.xlu0 %2047
          %2049 = vrot.lane.b32.xlu0 %v1957, 127
          %v2050 = vpop.permute.xlu0 %2049
          %2051 = vrot.lane.b32.xlu0 %v1960, 127
          %v2052 = vpop.permute.xlu0 %2051
          %2053 = vrot.lane.b32.xlu0 %v1963, 127
          %v2054 = vpop.permute.xlu0 %2053
          %2055 = vrot.lane.b32.xlu0 %v1966, 127
          %v2056 = vpop.permute.xlu0 %2055
          %2057 = vrot.lane.b32.xlu0 %v1969, 127
          %v2058 = vpop.permute.xlu0 %2057
          %2059 = vrot.lane.b32.xlu0 %v1972, 127
          %v2060 = vpop.permute.xlu0 %2059
          %2061 = vrot.lane.b32.xlu0 %v1975, 127
          %v2062 = vpop.permute.xlu0 %2061
          %2063 = vrot.lane.b32.xlu0 %v1978, 127
          %v2064 = vpop.permute.xlu0 %2063
          %2065 = vrot.lane.b32.xlu0 %v1981, 127
          %v2066 = vpop.permute.xlu0 %2065
          %2067 = vrot.lane.b32.xlu0 %v1984, 127
          %v2068 = vpop.permute.xlu0 %2067
          %2069 = vrot.lane.b32.xlu0 %v1987, 127
          %v2070 = vpop.permute.xlu0 %2069
          %2071 = vrot.lane.b32.xlu0 %v1990, 127
          %v2072 = vpop.permute.xlu0 %2071
          %2073 = vrot.lane.b32.xlu0 %v1993, 127
          %v2074 = vpop.permute.xlu0 %2073
          %v2091 = vsel %vm2011, %v2044, %v1948
          %v2092 = vsel %vm2012, %v2046, %v1951
          %v2093 = vsel %vm2013, %v2048, %v1954
          %v2094 = vsel %vm2014, %v2050, %v1957
          %v2095 = vsel %vm2015, %v2052, %v1960
          %v2096 = vsel %vm2016, %v2054, %v1963
          %v2097 = vsel %vm2017, %v2056, %v1966
          %v2098 = vsel %vm2018, %v2058, %v1969
          %v2099 = vsel %vm2019, %v2060, %v1972
          %v2100 = vsel %vm2020, %v2062, %v1975
          %v2101 = vsel %vm2021, %v2064, %v1978
          %v2102 = vsel %vm2022, %v2066, %v1981
          %v2103 = vsel %vm2023, %v2068, %v1984
          %v2104 = vsel %vm2024, %v2070, %v1987
          %v2105 = vsel %vm2025, %v2072, %v1990
          %v2106 = vsel %vm2026, %v2074, %v1993
          %v2107 = vxor.u32 %v2091, 2147483648
          %v2108 = vxor.u32 %v2092, 2147483648
          %v2109 = vxor.u32 %v2093, 2147483648
          %v2110 = vxor.u32 %v2094, 2147483648
          %v2111 = vxor.u32 %v2095, 2147483648
          %v2112 = vxor.u32 %v2096, 2147483648
          %v2113 = vxor.u32 %v2097, 2147483648
          %v2114 = vxor.u32 %v2098, 2147483648
          %v2115 = vxor.u32 %v2099, 2147483648
          %v2116 = vxor.u32 %v2100, 2147483648
          %v2117 = vxor.u32 %v2101, 2147483648
          %v2118 = vxor.u32 %v2102, 2147483648
          %v2119 = vxor.u32 %v2103, 2147483648
          %v2120 = vxor.u32 %v2104, 2147483648
          %v2121 = vxor.u32 %v2105, 2147483648
          %v2122 = vxor.u32 %v2106, 2147483648
          %v2123 = vmul.f32 %v2107, 1.442695
          %v2124 = vpow.pop %v2123
          %v2125 = vmul.f32 %v2108, 1.442695
          %v2126 = vpow.pop %v2125
          %v2127 = vmul.f32 %v2109, 1.442695
          %v2128 = vpow.pop %v2127
          %v2129 = vmul.f32 %v2110, 1.442695
          %v2130 = vpow.pop %v2129
          %v2131 = vmul.f32 %v2111, 1.442695
          %v2132 = vpow.pop %v2131
          %v2133 = vmul.f32 %v2112, 1.442695
          %v2134 = vpow.pop %v2133
          %v2135 = vmul.f32 %v2113, 1.442695
          %v2136 = vpow.pop %v2135
          %v2137 = vmul.f32 %v2114, 1.442695
          %v2138 = vpow.pop %v2137
          %v2139 = vmul.f32 %v2115, 1.442695
          %v2140 = vpow.pop %v2139
          %v2141 = vmul.f32 %v2116, 1.442695
          %v2142 = vpow.pop %v2141
          %v2143 = vmul.f32 %v2117, 1.442695
          %v2144 = vpow.pop %v2143
          %v2145 = vmul.f32 %v2118, 1.442695
          %v2146 = vpow.pop %v2145
          %v2147 = vmul.f32 %v2119, 1.442695
          %v2148 = vpow.pop %v2147
          %v2149 = vmul.f32 %v2120, 1.442695
          %v2150 = vpow.pop %v2149
          %v2151 = vmul.f32 %v2121, 1.442695
          %v2152 = vpow.pop %v2151
          %v2153 = vmul.f32 %v2122, 1.442695
          %v2154 = vpow.pop %v2153
          %v2155 = vadd.f32 %v2124, 1.0
          %v2156 = vadd.f32 %v2126, 1.0
          %v2157 = vadd.f32 %v2128, 1.0
          %v2158 = vadd.f32 %v2130, 1.0
          %v2159 = vadd.f32 %v2132, 1.0
          %v2160 = vadd.f32 %v2134, 1.0
          %v2161 = vadd.f32 %v2136, 1.0
          %v2162 = vadd.f32 %v2138, 1.0
          %v2163 = vadd.f32 %v2140, 1.0
          %v2164 = vadd.f32 %v2142, 1.0
          %v2165 = vadd.f32 %v2144, 1.0
          %v2166 = vadd.f32 %v2146, 1.0
          %v2167 = vadd.f32 %v2148, 1.0
          %v2168 = vadd.f32 %v2150, 1.0
          %v2169 = vadd.f32 %v2152, 1.0
          %v2170 = vadd.f32 %v2154, 1.0
          %v2171 = vrcp.pop %v2155
          %v2172 = vmul.f32 %v2155, %v2171
          %v2173 = vsub.f32 1.0, %v2172
          %v2174 = vmul.f32 %v2171, %v2173
          %v2175 = vadd.f32 %v2171, %v2174
          %vm2176 = vweird.f32 %v2155
          %vm2177 = vweird.f32 %v2171
          %vm2178 = vmor %vm2176, %vm2177
          %v2179 = vsel %vm2178, %v2171, %v2175
          %v2180 = vand.u32 2147483647, %v2155
          %vm2181 = vcmp.eq.f32.partialorder %v2180, 8.507059e+37
          %v2182 = vand.u32 %v2155, 2147483648
          %v2183 = vor.u32 1.1754944e-38, %v2182
          %v2184 = vsel %vm2181, %v2183, %v2179
          %v2185 = vmul.f32 1.0, %v2184
          %v2186 = vrcp.pop %v2156
          %v2187 = vmul.f32 %v2156, %v2186
          %v2188 = vsub.f32 1.0, %v2187
          %v2189 = vmul.f32 %v2186, %v2188
          %v2190 = vadd.f32 %v2186, %v2189
          %vm2191 = vweird.f32 %v2156
          %vm2192 = vweird.f32 %v2186
          %vm2193 = vmor %vm2191, %vm2192
          %v2194 = vsel %vm2193, %v2186, %v2190
          %v2195 = vand.u32 2147483647, %v2156
          %vm2196 = vcmp.eq.f32.partialorder %v2195, 8.507059e+37
          %v2197 = vand.u32 %v2156, 2147483648
          %v2198 = vor.u32 1.1754944e-38, %v2197
          %v2199 = vsel %vm2196, %v2198, %v2194
          %v2200 = vmul.f32 1.0, %v2199
          %v2201 = vrcp.pop %v2157
          %v2202 = vmul.f32 %v2157, %v2201
          %v2203 = vsub.f32 1.0, %v2202
          %v2204 = vmul.f32 %v2201, %v2203
          %v2205 = vadd.f32 %v2201, %v2204
          %vm2206 = vweird.f32 %v2157
          %vm2207 = vweird.f32 %v2201
          %vm2208 = vmor %vm2206, %vm2207
          %v2209 = vsel %vm2208, %v2201, %v2205
          %v2210 = vand.u32 2147483647, %v2157
          %vm2211 = vcmp.eq.f32.partialorder %v2210, 8.507059e+37
          %v2212 = vand.u32 %v2157, 2147483648
          %v2213 = vor.u32 1.1754944e-38, %v2212
          %v2214 = vsel %vm2211, %v2213, %v2209
          %v2215 = vmul.f32 1.0, %v2214
          %v2216 = vrcp.pop %v2158
          %v2217 = vmul.f32 %v2158, %v2216
          %v2218 = vsub.f32 1.0, %v2217
          %v2219 = vmul.f32 %v2216, %v2218
          %v2220 = vadd.f32 %v2216, %v2219
          %vm2221 = vweird.f32 %v2158
          %vm2222 = vweird.f32 %v2216
          %vm2223 = vmor %vm2221, %vm2222
          %v2224 = vsel %vm2223, %v2216, %v2220
          %v2225 = vand.u32 2147483647, %v2158
          %vm2226 = vcmp.eq.f32.partialorder %v2225, 8.507059e+37
          %v2227 = vand.u32 %v2158, 2147483648
          %v2228 = vor.u32 1.1754944e-38, %v2227
          %v2229 = vsel %vm2226, %v2228, %v2224
          %v2230 = vmul.f32 1.0, %v2229
          %v2231 = vrcp.pop %v2159
          %v2232 = vmul.f32 %v2159, %v2231
          %v2233 = vsub.f32 1.0, %v2232
          %v2234 = vmul.f32 %v2231, %v2233
          %v2235 = vadd.f32 %v2231, %v2234
          %vm2236 = vweird.f32 %v2159
          %vm2237 = vweird.f32 %v2231
          %vm2238 = vmor %vm2236, %vm2237
          %v2239 = vsel %vm2238, %v2231, %v2235
          %v2240 = vand.u32 2147483647, %v2159
          %vm2241 = vcmp.eq.f32.partialorder %v2240, 8.507059e+37
          %v2242 = vand.u32 %v2159, 2147483648
          %v2243 = vor.u32 1.1754944e-38, %v2242
          %v2244 = vsel %vm2241, %v2243, %v2239
          %v2245 = vmul.f32 1.0, %v2244
          %v2246 = vrcp.pop %v2160
          %v2247 = vmul.f32 %v2160, %v2246
          %v2248 = vsub.f32 1.0, %v2247
          %v2249 = vmul.f32 %v2246, %v2248
          %v2250 = vadd.f32 %v2246, %v2249
          %vm2251 = vweird.f32 %v2160
          %vm2252 = vweird.f32 %v2246
          %vm2253 = vmor %vm2251, %vm2252
          %v2254 = vsel %vm2253, %v2246, %v2250
          %v2255 = vand.u32 2147483647, %v2160
          %vm2256 = vcmp.eq.f32.partialorder %v2255, 8.507059e+37
          %v2257 = vand.u32 %v2160, 2147483648
          %v2258 = vor.u32 1.1754944e-38, %v2257
          %v2259 = vsel %vm2256, %v2258, %v2254
          %v2260 = vmul.f32 1.0, %v2259
          %v2261 = vrcp.pop %v2161
          %v2262 = vmul.f32 %v2161, %v2261
          %v2263 = vsub.f32 1.0, %v2262
          %v2264 = vmul.f32 %v2261, %v2263
          %v2265 = vadd.f32 %v2261, %v2264
          %vm2266 = vweird.f32 %v2161
          %vm2267 = vweird.f32 %v2261
          %vm2268 = vmor %vm2266, %vm2267
          %v2269 = vsel %vm2268, %v2261, %v2265
          %v2270 = vand.u32 2147483647, %v2161
          %vm2271 = vcmp.eq.f32.partialorder %v2270, 8.507059e+37
          %v2272 = vand.u32 %v2161, 2147483648
          %v2273 = vor.u32 1.1754944e-38, %v2272
          %v2274 = vsel %vm2271, %v2273, %v2269
          %v2275 = vmul.f32 1.0, %v2274
          %v2276 = vrcp.pop %v2162
          %v2277 = vmul.f32 %v2162, %v2276
          %v2278 = vsub.f32 1.0, %v2277
          %v2279 = vmul.f32 %v2276, %v2278
          %v2280 = vadd.f32 %v2276, %v2279
          %vm2281 = vweird.f32 %v2162
          %vm2282 = vweird.f32 %v2276
          %vm2283 = vmor %vm2281, %vm2282
          %v2284 = vsel %vm2283, %v2276, %v2280
          %v2285 = vand.u32 2147483647, %v2162
          %vm2286 = vcmp.eq.f32.partialorder %v2285, 8.507059e+37
          %v2287 = vand.u32 %v2162, 2147483648
          %v2288 = vor.u32 1.1754944e-38, %v2287
          %v2289 = vsel %vm2286, %v2288, %v2284
          %v2290 = vmul.f32 1.0, %v2289
          %v2291 = vrcp.pop %v2163
          %v2292 = vmul.f32 %v2163, %v2291
          %v2293 = vsub.f32 1.0, %v2292
          %v2294 = vmul.f32 %v2291, %v2293
          %v2295 = vadd.f32 %v2291, %v2294
          %vm2296 = vweird.f32 %v2163
          %vm2297 = vweird.f32 %v2291
          %vm2298 = vmor %vm2296, %vm2297
          %v2299 = vsel %vm2298, %v2291, %v2295
          %v2300 = vand.u32 2147483647, %v2163
          %vm2301 = vcmp.eq.f32.partialorder %v2300, 8.507059e+37
          %v2302 = vand.u32 %v2163, 2147483648
          %v2303 = vor.u32 1.1754944e-38, %v2302
          %v2304 = vsel %vm2301, %v2303, %v2299
          %v2305 = vmul.f32 1.0, %v2304
          %v2306 = vrcp.pop %v2164
          %v2307 = vmul.f32 %v2164, %v2306
          %v2308 = vsub.f32 1.0, %v2307
          %v2309 = vmul.f32 %v2306, %v2308
          %v2310 = vadd.f32 %v2306, %v2309
          %vm2311 = vweird.f32 %v2164
          %vm2312 = vweird.f32 %v2306
          %vm2313 = vmor %vm2311, %vm2312
          %v2314 = vsel %vm2313, %v2306, %v2310
          %v2315 = vand.u32 2147483647, %v2164
          %vm2316 = vcmp.eq.f32.partialorder %v2315, 8.507059e+37
          %v2317 = vand.u32 %v2164, 2147483648
          %v2318 = vor.u32 1.1754944e-38, %v2317
          %v2319 = vsel %vm2316, %v2318, %v2314
          %v2320 = vmul.f32 1.0, %v2319
          %v2321 = vrcp.pop %v2165
          %v2322 = vmul.f32 %v2165, %v2321
          %v2323 = vsub.f32 1.0, %v2322
          %v2324 = vmul.f32 %v2321, %v2323
          %v2325 = vadd.f32 %v2321, %v2324
          %vm2326 = vweird.f32 %v2165
          %vm2327 = vweird.f32 %v2321
          %vm2328 = vmor %vm2326, %vm2327
          %v2329 = vsel %vm2328, %v2321, %v2325
          %v2330 = vand.u32 2147483647, %v2165
          %vm2331 = vcmp.eq.f32.partialorder %v2330, 8.507059e+37
          %v2332 = vand.u32 %v2165, 2147483648
          %v2333 = vor.u32 1.1754944e-38, %v2332
          %v2334 = vsel %vm2331, %v2333, %v2329
          %v2335 = vmul.f32 1.0, %v2334
          %v2336 = vrcp.pop %v2166
          %v2337 = vmul.f32 %v2166, %v2336
          %v2338 = vsub.f32 1.0, %v2337
          %v2339 = vmul.f32 %v2336, %v2338
          %v2340 = vadd.f32 %v2336, %v2339
          %vm2341 = vweird.f32 %v2166
          %vm2342 = vweird.f32 %v2336
          %vm2343 = vmor %vm2341, %vm2342
          %v2344 = vsel %vm2343, %v2336, %v2340
          %v2345 = vand.u32 2147483647, %v2166
          %vm2346 = vcmp.eq.f32.partialorder %v2345, 8.507059e+37
          %v2347 = vand.u32 %v2166, 2147483648
          %v2348 = vor.u32 1.1754944e-38, %v2347
          %v2349 = vsel %vm2346, %v2348, %v2344
          %v2350 = vmul.f32 1.0, %v2349
          %v2351 = vrcp.pop %v2167
          %v2352 = vmul.f32 %v2167, %v2351
          %v2353 = vsub.f32 1.0, %v2352
          %v2354 = vmul.f32 %v2351, %v2353
          %v2355 = vadd.f32 %v2351, %v2354
          %vm2356 = vweird.f32 %v2167
          %vm2357 = vweird.f32 %v2351
          %vm2358 = vmor %vm2356, %vm2357
          %v2359 = vsel %vm2358, %v2351, %v2355
          %v2360 = vand.u32 2147483647, %v2167
          %vm2361 = vcmp.eq.f32.partialorder %v2360, 8.507059e+37
          %v2362 = vand.u32 %v2167, 2147483648
          %v2363 = vor.u32 1.1754944e-38, %v2362
          %v2364 = vsel %vm2361, %v2363, %v2359
          %v2365 = vmul.f32 1.0, %v2364
          %v2366 = vrcp.pop %v2168
          %v2367 = vmul.f32 %v2168, %v2366
          %v2368 = vsub.f32 1.0, %v2367
          %v2369 = vmul.f32 %v2366, %v2368
          %v2370 = vadd.f32 %v2366, %v2369
          %vm2371 = vweird.f32 %v2168
          %vm2372 = vweird.f32 %v2366
          %vm2373 = vmor %vm2371, %vm2372
          %v2374 = vsel %vm2373, %v2366, %v2370
          %v2375 = vand.u32 2147483647, %v2168
          %vm2376 = vcmp.eq.f32.partialorder %v2375, 8.507059e+37
          %v2377 = vand.u32 %v2168, 2147483648
          %v2378 = vor.u32 1.1754944e-38, %v2377
          %v2379 = vsel %vm2376, %v2378, %v2374
          %v2380 = vmul.f32 1.0, %v2379
          %v2381 = vrcp.pop %v2169
          %v2382 = vmul.f32 %v2169, %v2381
          %v2383 = vsub.f32 1.0, %v2382
          %v2384 = vmul.f32 %v2381, %v2383
          %v2385 = vadd.f32 %v2381, %v2384
          %vm2386 = vweird.f32 %v2169
          %vm2387 = vweird.f32 %v2381
          %vm2388 = vmor %vm2386, %vm2387
          %v2389 = vsel %vm2388, %v2381, %v2385
          %v2390 = vand.u32 2147483647, %v2169
          %vm2391 = vcmp.eq.f32.partialorder %v2390, 8.507059e+37
          %v2392 = vand.u32 %v2169, 2147483648
          %v2393 = vor.u32 1.1754944e-38, %v2392
          %v2394 = vsel %vm2391, %v2393, %v2389
          %v2395 = vmul.f32 1.0, %v2394
          %v2396 = vrcp.pop %v2170
          %v2397 = vmul.f32 %v2170, %v2396
          %v2398 = vsub.f32 1.0, %v2397
          %v2399 = vmul.f32 %v2396, %v2398
          %v2400 = vadd.f32 %v2396, %v2399
          %vm2401 = vweird.f32 %v2170
          %vm2402 = vweird.f32 %v2396
          %vm2403 = vmor %vm2401, %vm2402
          %v2404 = vsel %vm2403, %v2396, %v2400
          %v2405 = vand.u32 2147483647, %v2170
          %vm2406 = vcmp.eq.f32.partialorder %v2405, 8.507059e+37
          %v2407 = vand.u32 %v2170, 2147483648
          %v2408 = vor.u32 1.1754944e-38, %v2407
          %v2409 = vsel %vm2406, %v2408, %v2404
          %v2410 = vmul.f32 1.0, %v2409
          %2427 = vrot.lane.b32.xlu0 %v1643, 96
          %v2428 = vpop.permute.xlu0 %2427
          %2429 = vrot.lane.b32.xlu0 %v1658, 96
          %v2430 = vpop.permute.xlu0 %2429
          %2431 = vrot.lane.b32.xlu0 %v1673, 96
          %v2432 = vpop.permute.xlu0 %2431
          %2433 = vrot.lane.b32.xlu0 %v1688, 96
          %v2434 = vpop.permute.xlu0 %2433
          %2435 = vrot.lane.b32.xlu0 %v1703, 96
          %v2436 = vpop.permute.xlu0 %2435
          %2437 = vrot.lane.b32.xlu0 %v1718, 96
          %v2438 = vpop.permute.xlu0 %2437
          %2439 = vrot.lane.b32.xlu0 %v1733, 96
          %v2440 = vpop.permute.xlu0 %2439
          %2441 = vrot.lane.b32.xlu0 %v1748, 96
          %v2442 = vpop.permute.xlu0 %2441
          %2443 = vrot.lane.b32.xlu0 %v1763, 96
          %v2444 = vpop.permute.xlu0 %2443
          %2445 = vrot.lane.b32.xlu0 %v1778, 96
          %v2446 = vpop.permute.xlu0 %2445
          %2447 = vrot.lane.b32.xlu0 %v1793, 96
          %v2448 = vpop.permute.xlu0 %2447
          %2449 = vrot.lane.b32.xlu0 %v1808, 96
          %v2450 = vpop.permute.xlu0 %2449
          %2451 = vrot.lane.b32.xlu0 %v1823, 96
          %v2452 = vpop.permute.xlu0 %2451
          %2453 = vrot.lane.b32.xlu0 %v1838, 96
          %v2454 = vpop.permute.xlu0 %2453
          %2455 = vrot.lane.b32.xlu0 %v1853, 96
          %v2456 = vpop.permute.xlu0 %2455
          %2457 = vrot.lane.b32.xlu0 %v1868, 96
          %v2458 = vpop.permute.xlu0 %2457
          %2491 = vrot.lane.b32.xlu0 %v2185, 33
          %v2492 = vpop.permute.xlu0 %2491
          %2493 = vrot.lane.b32.xlu0 %v2200, 33
          %v2494 = vpop.permute.xlu0 %2493
          %2495 = vrot.lane.b32.xlu0 %v2215, 33
          %v2496 = vpop.permute.xlu0 %2495
          %2497 = vrot.lane.b32.xlu0 %v2230, 33
          %v2498 = vpop.permute.xlu0 %2497
          %2499 = vrot.lane.b32.xlu0 %v2245, 33
          %v2500 = vpop.permute.xlu0 %2499
          %2501 = vrot.lane.b32.xlu0 %v2260, 33
          %v2502 = vpop.permute.xlu0 %2501
          %2503 = vrot.lane.b32.xlu0 %v2275, 33
          %v2504 = vpop.permute.xlu0 %2503
          %2505 = vrot.lane.b32.xlu0 %v2290, 33
          %v2506 = vpop.permute.xlu0 %2505
          %2507 = vrot.lane.b32.xlu0 %v2305, 33
          %v2508 = vpop.permute.xlu0 %2507
          %2509 = vrot.lane.b32.xlu0 %v2320, 33
          %v2510 = vpop.permute.xlu0 %2509
          %2511 = vrot.lane.b32.xlu0 %v2335, 33
          %v2512 = vpop.permute.xlu0 %2511
          %2513 = vrot.lane.b32.xlu0 %v2350, 33
          %v2514 = vpop.permute.xlu0 %2513
          %2515 = vrot.lane.b32.xlu0 %v2365, 33
          %v2516 = vpop.permute.xlu0 %2515
          %2517 = vrot.lane.b32.xlu0 %v2380, 33
          %v2518 = vpop.permute.xlu0 %2517
          %2519 = vrot.lane.b32.xlu0 %v2395, 33
          %v2520 = vpop.permute.xlu0 %2519
          %2521 = vrot.lane.b32.xlu0 %v2410, 33
          %v2522 = vpop.permute.xlu0 %2521
          %2555 = vrot.lane.b32.xlu0 %v946, 34
          %v2556 = vpop.permute.xlu0 %2555
          %2557 = vrot.lane.b32.xlu0 %v961, 34
          %v2558 = vpop.permute.xlu0 %2557
          %2559 = vrot.lane.b32.xlu0 %v976, 34
          %v2560 = vpop.permute.xlu0 %2559
          %2561 = vrot.lane.b32.xlu0 %v991, 34
          %v2562 = vpop.permute.xlu0 %2561
          %2563 = vrot.lane.b32.xlu0 %v1006, 34
          %v2564 = vpop.permute.xlu0 %2563
          %2565 = vrot.lane.b32.xlu0 %v1021, 34
          %v2566 = vpop.permute.xlu0 %2565
          %2567 = vrot.lane.b32.xlu0 %v1036, 34
          %v2568 = vpop.permute.xlu0 %2567
          %2569 = vrot.lane.b32.xlu0 %v1051, 34
          %v2570 = vpop.permute.xlu0 %2569
          %2571 = vrot.lane.b32.xlu0 %v1066, 34
          %v2572 = vpop.permute.xlu0 %2571
          %2573 = vrot.lane.b32.xlu0 %v1081, 34
          %v2574 = vpop.permute.xlu0 %2573
          %2575 = vrot.lane.b32.xlu0 %v1096, 34
          %v2576 = vpop.permute.xlu0 %2575
          %2577 = vrot.lane.b32.xlu0 %v1111, 34
          %v2578 = vpop.permute.xlu0 %2577
          %2579 = vrot.lane.b32.xlu0 %v1126, 34
          %v2580 = vpop.permute.xlu0 %2579
          %2581 = vrot.lane.b32.xlu0 %v1141, 34
          %v2582 = vpop.permute.xlu0 %2581
          %2583 = vrot.lane.b32.xlu0 %v1156, 34
          %v2584 = vpop.permute.xlu0 %2583
          %2585 = vrot.lane.b32.xlu0 %v1171, 34
          %v2586 = vpop.permute.xlu0 %2585
          %v2603 = vsel %vm1358, %v1432, %v2428
          %v2604 = vsel %vm1358, %v1433, %v2430
          %v2605 = vsel %vm1358, %v1434, %v2432
          %v2606 = vsel %vm1358, %v1435, %v2434
          %v2607 = vsel %vm1358, %v1436, %v2436
          %v2608 = vsel %vm1358, %v1437, %v2438
          %v2609 = vsel %vm1358, %v1438, %v2440
          %v2610 = vsel %vm1358, %v1439, %v2442
          %v2611 = vsel %vm1358, %v1440, %v2444
          %v2612 = vsel %vm1358, %v1441, %v2446
          %v2613 = vsel %vm1358, %v1442, %v2448
          %v2614 = vsel %vm1358, %v1443, %v2450
          %v2615 = vsel %vm1358, %v1444, %v2452
          %v2616 = vsel %vm1358, %v1445, %v2454
          %v2617 = vsel %vm1358, %v1446, %v2456
          %v2618 = vsel %vm1358, %v1447, %v2458
          %vm2619 = vcmask 269312
          %v2620 = vsel %vm2619, %v2603, %v2492
          %v2621 = vsel %vm2619, %v2604, %v2494
          %v2622 = vsel %vm2619, %v2605, %v2496
          %v2623 = vsel %vm2619, %v2606, %v2498
          %v2624 = vsel %vm2619, %v2607, %v2500
          %v2625 = vsel %vm2619, %v2608, %v2502
          %v2626 = vsel %vm2619, %v2609, %v2504
          %v2627 = vsel %vm2619, %v2610, %v2506
          %v2628 = vsel %vm2619, %v2611, %v2508
          %v2629 = vsel %vm2619, %v2612, %v2510
          %v2630 = vsel %vm2619, %v2613, %v2512
          %v2631 = vsel %vm2619, %v2614, %v2514
          %v2632 = vsel %vm2619, %v2615, %v2516
          %v2633 = vsel %vm2619, %v2616, %v2518
          %v2634 = vsel %vm2619, %v2617, %v2520
          %v2635 = vsel %vm2619, %v2618, %v2522
          %vm2636 = vcmask 277504
          %v2637 = vsel %vm2636, %v2620, %v2556
          %v2638 = vsel %vm2636, %v2621, %v2558
          %v2639 = vsel %vm2636, %v2622, %v2560
          %v2640 = vsel %vm2636, %v2623, %v2562
          %v2641 = vsel %vm2636, %v2624, %v2564
          %v2642 = vsel %vm2636, %v2625, %v2566
          %v2643 = vsel %vm2636, %v2626, %v2568
          %v2644 = vsel %vm2636, %v2627, %v2570
          %v2645 = vsel %vm2636, %v2628, %v2572
          %v2646 = vsel %vm2636, %v2629, %v2574
          %v2647 = vsel %vm2636, %v2630, %v2576
          %v2648 = vsel %vm2636, %v2631, %v2578
          %v2649 = vsel %vm2636, %v2632, %v2580
          %v2650 = vsel %vm2636, %v2633, %v2582
          %v2651 = vsel %vm2636, %v2634, %v2584
          %v2652 = vsel %vm2636, %v2635, %v2586
          %vm2653 = vcmask 285696
          %v2654 = vsel %vm2653, %v2637, 0.0
          %v2655 = vsel %vm2653, %v2638, 0.0
          %v2656 = vsel %vm2653, %v2639, 0.0
          %v2657 = vsel %vm2653, %v2640, 0.0
          %v2658 = vsel %vm2653, %v2641, 0.0
          %v2659 = vsel %vm2653, %v2642, 0.0
          %v2660 = vsel %vm2653, %v2643, 0.0
          %v2661 = vsel %vm2653, %v2644, 0.0
          %v2662 = vsel %vm2653, %v2645, 0.0
          %v2663 = vsel %vm2653, %v2646, 0.0
          %v2664 = vsel %vm2653, %v2647, 0.0
          %v2665 = vsel %vm2653, %v2648, 0.0
          %v2666 = vsel %vm2653, %v2649, 0.0
          %v2667 = vsel %vm2653, %v2650, 0.0
          %v2668 = vsel %vm2653, %v2651, 0.0
          %v2669 = vsel %vm2653, %v2652, 0.0
          %2670 = vst [vmem:[%s579] sm:$0xff] %v2654
          %2671 = vst [vmem:[%s579 + $0x8] sm:$0xff] %v2655
          %2672 = vst [vmem:[%s579 + $0x10] sm:$0xff] %v2656
          %2673 = vst [vmem:[%s579 + $0x18] sm:$0xff] %v2657
          %2674 = vst [vmem:[%s579 + $0x20] sm:$0xff] %v2658
          %2675 = vst [vmem:[%s579 + $0x28] sm:$0xff] %v2659
          %2676 = vst [vmem:[%s579 + $0x30] sm:$0xff] %v2660
          %2677 = vst [vmem:[%s579 + $0x38] sm:$0xff] %v2661
          %2678 = vst [vmem:[%s579 + $0x40] sm:$0xff] %v2662
          %2679 = vst [vmem:[%s579 + $0x48] sm:$0xff] %v2663
          %2680 = vst [vmem:[%s579 + $0x50] sm:$0xff] %v2664
          %2681 = vst [vmem:[%s579 + $0x58] sm:$0xff] %v2665
          %2682 = vst [vmem:[%s579 + $0x60] sm:$0xff] %v2666
          %2683 = vst [vmem:[%s579 + $0x68] sm:$0xff] %v2667
          %2684 = vst [vmem:[%s579 + $0x70] sm:$0xff] %v2668
          %2685 = vst [vmem:[%s579 + $0x78] sm:$0xff] %v2669
        $region117: #{tpu_custom_call.1} parent=104 // pred_fallthru
          _
        %s2686 = sand.u32 %s320, 1
        %s2687 = scalar_lea.sflag [#allocation5], %s2686
        %s2688 = sand.u32 %s320, 1
        %s2689 = smul.addr %s2688, 128
        %s2690 = scalar_lea.vmem [#allocation4], %s2689
        // Predicated region
        $region118: #{tpu_custom_call.1} parent=104 // pred_check
          %p2691 = pneg %p330
        $region119: #{tpu_custom_call.1} parent=104 // pred_check_branch
          %2693 = sbr.rel (%p2691) target = $region121
        $region120: #{tpu_custom_call.1} parent=104 // pred_region
          %s2694 = smul.u32 16, %s30
          %2696 = vsyncadd %s2687, 0
          %s2697 = smul.addr %s2694, 8
          %s2698 = scalar_lea.hbm %s12, %s2697
          %s2699 = sshll.u32 %s2690, 4
          %s2700 = int_to_ptr.vmem [resolvable:$true] %s2699
          %s2701 = sshll.u32 %s2698, 4
          %s2702 = int_to_ptr.hbm [resolvable:$true] %s2701
          %2707 = dma.vmem_to_hbm [thread:$0]  %s2700, 2048, %s2702, %s2687, 128, 128, 8
        $region121: #{tpu_custom_call.1} parent=104 // pred_fallthru
          _
      $region105: #{tpu_custom_call.1} parent=5 // pred_fallthru
        _
      %p2708 = scmp.le.s32.totalorder 2, %s21
      // Predicated region
      $region122: #{tpu_custom_call.1} parent=5 // pred_check
        %p2709 = pneg %p2708
      $region123: #{tpu_custom_call.1} parent=5 // pred_check_branch
        %2711 = sbr.rel (%p2709) target = $region125
      $region124: #{tpu_custom_call.1} parent=5 // pred_region
        %s2712 = ssub.s32 %s21, 2
        // Predicated region
        $region126: #{tpu_custom_call.1} parent=124 // pred_check
          %p2713 = pneg %p336
        $region127: #{tpu_custom_call.1} parent=124 // pred_check_branch
          %2715 = sbr.rel (%p2713) target = $region129
        $region128: #{tpu_custom_call.1} parent=124 // pred_region
          %s2716 = sand.u32 %s321, 1
          %s2717 = scalar_lea.sflag [#allocation5], %s2716
          %s2718 = sand.u32 %s321, 1
          %s2719 = smul.addr %s2718, 128
          %s2720 = scalar_lea.vmem [#allocation4], %s2719
          %2722 = dma.done %s2717, 2048
        $region129: #{tpu_custom_call.1} parent=124 // pred_fallthru
          _
      $region125: #{tpu_custom_call.1} parent=5 // pred_fallthru
        _
    $region6: #{tpu_custom_call.1} parent=1 // loop_footer
      %s25 = sadd.s32 1, %s21
    $region7: #{tpu_custom_call.1} parent=1 // loop_footer_branch
      %20 = sbr.rel target = $region3
    $region8: #{tpu_custom_call.1} parent=1 // loop_exit
      _
    %2723 = vsyncpa [#allocation5], 1
    %s2724 = scalar_lea.sflag [#allocation5], 1
    %2725 = vsyncpa %s2724, 1

// kernel: tpu_custom_call.1
$region0: #{tpu_custom_call.1}
  #allocation0 [shape = 'u32[]', space=smem, size = 0x4, offset = 0x4, fixed_abs, tag = 'smem constant byte address 0x4 - core index']
  #allocation1 [shape = 'u32[72,128]{1,0:T(1,128)}', space=vmem, size = 0x9000, scoped, tag = 'internal scratch']
  #allocation2 [shape = 'f32[128,2]{1,0:T(8,128)}', space=vmem, size = 0x10000, scoped, tag = 'scratch operand']
  %s0 = inlined_call_operand.vmem [shape: bf16[256,256], index: 0, kind: input, shape index: {}]
  %s1 = inlined_call_operand.vmem [shape: bf16[256,2], index: 1, kind: input, shape index: {}]
  %s2 = inlined_call_operand.vmem [shape: bf16[256,16], index: 2, kind: input, shape index: {}]
  %s3 = inlined_call_operand.vmem [shape: f32[256,1], index: 3, kind: input, shape index: {}]
  %s4 = inlined_call_operand.vmem [shape: bf16[16,32], index: 4, kind: input, shape index: {}]
  %s5 = inlined_call_operand.vmem [shape: f32[1,32], index: 5, kind: input, shape index: {}]
  %s6 = inlined_call_operand.vmem [shape: bf16[32,32], index: 6, kind: input, shape index: {}]
  %s7 = inlined_call_operand.vmem [shape: f32[1,32], index: 7, kind: input, shape index: {}]
  %s8 = inlined_call_operand.vmem [shape: bf16[32,65], index: 8, kind: input, shape index: {}]
  %s9 = inlined_call_operand.vmem [shape: f32[1,65], index: 9, kind: input, shape index: {}]
  %s10 = inlined_call_operand.vmem [shape: f32[64,2], index: 10, kind: input, shape index: {}]
  %s11 = inlined_call_operand.vmem [shape: f32[1,2], index: 11, kind: input, shape index: {}]
  %s12 = inlined_call_operand.hbm [shape: f32[256,128], index: 12, kind: output, shape index: {}]
  %s13 = sld [smem:[#allocation0]]
  $region130: #{tpu_custom_call.1} parent=0
    _
  %s15 = ssub.s32 1, %s13
  %s16 = scalar_select 0, %s15, %s13
  $region1: #{tpu_custom_call.1} parent=0
    #allocation3 [shape = 'u8[65536]{0}', space=vmem, size = 0x10000, scoped, tag = 'input window, operand 0']
    #allocation4 [shape = 'u8[131072]{0}', space=vmem, size = 0x20000, scoped, tag = 'output window, operand 0']
    #allocation5 [shape = 's32[2]{0}', space=sflag, size = 0x8, scoped, tag = 'scoped memory for tpu_custom_call.1']
    %17 = vsyncpa [#allocation5], 0
    %s18 = scalar_lea.sflag [#allocation5], 1
    %19 = vsyncpa %s18, 0
    loop: start=0, step=1, limit=6
    $region2: #{tpu_custom_call.1} parent=1 // loop_pre_header
      _
    $region3: #{tpu_custom_call.1} parent=1 // loop_header
      %s21 = sphi 0, %s25
      %p22 = scmp.ge.s32.totalorder %s21, 6
      %s28 = sphi 0, %s40
      %s29 = sphi 0, %s36
      %s30 = sphi 0, %s28
      %s31 = sphi 0, %s29
      %s32 = sphi 0, %s30
      %s33 = sphi 0, %s31
      %s45 = sphi 0, %s47
      %s48 = sphi 0, %s45
      %s49 = sphi 0, %s48
      %s65 = sphi 0, %s49
      %s71 = sphi 0, %s73
      %s74 = sphi 0, %s71
      %s75 = sphi 0, %s74
      %s91 = sphi 0, %s75
      %s97 = sphi 0, %s99
      %s100 = sphi 0, %s97
      %s101 = sphi 0, %s100
      %s117 = sphi 0, %s101
      %s123 = sphi 0, %s125
      %s126 = sphi 0, %s123
      %s127 = sphi 0, %s126
      %s143 = sphi 0, %s127
      %s147 = sphi 0, %s147
      %s149 = sphi 0, %s147
      %s150 = sphi 0, %s149
      %s164 = sphi 0, %s150
      %s168 = sphi 0, %s168
      %s170 = sphi 0, %s168
      %s171 = sphi 0, %s170
      %s185 = sphi 0, %s171
      %s189 = sphi 0, %s189
      %s191 = sphi 0, %s189
      %s192 = sphi 0, %s191
      %s206 = sphi 0, %s192
      %s210 = sphi 0, %s210
      %s212 = sphi 0, %s210
      %s213 = sphi 0, %s212
      %s227 = sphi 0, %s213
      %s231 = sphi 0, %s231
      %s233 = sphi 0, %s231
      %s234 = sphi 0, %s233
      %s248 = sphi 0, %s234
      %s252 = sphi 0, %s252
      %s254 = sphi 0, %s252
      %s255 = sphi 0, %s254
      %s269 = sphi 0, %s255
      %s273 = sphi 0, %s273
      %s275 = sphi 0, %s273
      %s276 = sphi 0, %s275
      %s290 = sphi 0, %s276
      %s294 = sphi 0, %s294
      %s296 = sphi 0, %s294
      %s297 = sphi 0, %s296
      %s311 = sphi 0, %s297
      %s317 = sphi 0, %s319
      %s320 = sphi 0, %s317
      %s321 = sphi 0, %s320
      %s337 = sphi 0, %s321
    $region4: #{tpu_custom_call.1} parent=1 // loop_header_branch
      %24 = sbr.rel (%p22) target = $region8
    $region5: #{tpu_custom_call.1} parent=1 // loop_body
      %s26 = ssub.s32 %s21, 1
      %s27 = ssub.s32 %s21, 2
      %s34 = sadd.s32 1, %s29
      %p35 = scmp.ge.s32.totalorder %s34, 2
      %s36 = scalar_select %p35, 0, %s34
      %s37 = sadd.s32 1, %s28
      %s38 = scalar_select %p35, %s37, %s28
      %p39 = scmp.ge.s32.totalorder %s38, 2
      %s40 = scalar_select %p39, 0, %s38
      %s41 = ssub.s32 %s28, %s40
      %s42 = ssub.s32 %s29, %s36
      %s43 = sor.u32 %s41, %s42
      %p44 = scmp.eq.s32.totalorder %s43, 0
      %s46 = sadd.s32 %s45, 1
      %s47 = scalar_select %p44, %s45, %s46
      %p50 = pneg %p44
      %p51 = scmp.eq.s32.totalorder %s21, 3
      %p52 = por %p50, %p51
      %p53 = scmp.ne.s32.totalorder %s45, %s48
      %p54 = scmp.eq.s32.totalorder %s21, 0
      %p55 = por %p53, %p54
      %p56 = scmp.ne.s32.totalorder %s45, %s48
      %p57 = scmp.eq.s32.totalorder %s26, 3
      %p58 = por %p56, %p57
      %p59 = scmp.ne.s32.totalorder %s48, %s49
      %p60 = scmp.eq.s32.totalorder %s26, 0
      %p61 = por %p59, %p60
      %p62 = scmp.ne.s32.totalorder %s48, %s49
      %p63 = scmp.eq.s32.totalorder %s27, 3
      %p64 = por %p62, %p63
      %p66 = scmp.ne.s32.totalorder %s49, %s65
      %p67 = scmp.eq.s32.totalorder %s27, 0
      %p68 = por %p66, %p67
      %s69 = ssub.s32 %s29, %s36
      %p70 = scmp.eq.s32.totalorder %s69, 0
      %s72 = sadd.s32 %s71, 1
      %s73 = scalar_select %p70, %s71, %s72
      %p76 = pneg %p70
      %p77 = scmp.eq.s32.totalorder %s21, 3
      %p78 = por %p76, %p77
      %p79 = scmp.ne.s32.totalorder %s71, %s74
      %p80 = scmp.eq.s32.totalorder %s21, 0
      %p81 = por %p79, %p80
      %p82 = scmp.ne.s32.totalorder %s71, %s74
      %p83 = scmp.eq.s32.totalorder %s26, 3
      %p84 = por %p82, %p83
      %p85 = scmp.ne.s32.totalorder %s74, %s75
      %p86 = scmp.eq.s32.totalorder %s26, 0
      %p87 = por %p85, %p86
      %p88 = scmp.ne.s32.totalorder %s74, %s75
      %p89 = scmp.eq.s32.totalorder %s27, 3
      %p90 = por %p88, %p89
      %p92 = scmp.ne.s32.totalorder %s75, %s91
      %p93 = scmp.eq.s32.totalorder %s27, 0
      %p94 = por %p92, %p93
      %s95 = ssub.s32 %s28, %s40
      %p96 = scmp.eq.s32.totalorder %s95, 0
      %s98 = sadd.s32 %s97, 1
      %s99 = scalar_select %p96, %s97, %s98
      %p102 = pneg %p96
      %p103 = scmp.eq.s32.totalorder %s21, 3
      %p104 = por %p102, %p103
      %p105 = scmp.ne.s32.totalorder %s97, %s100
      %p106 = scmp.eq.s32.totalorder %s21, 0
      %p107 = por %p105, %p106
      %p108 = scmp.ne.s32.totalorder %s97, %s100
      %p109 = scmp.eq.s32.totalorder %s26, 3
      %p110 = por %p108, %p109
      %p111 = scmp.ne.s32.totalorder %s100, %s101
      %p112 = scmp.eq.s32.totalorder %s26, 0
      %p113 = por %p111, %p112
      %p114 = scmp.ne.s32.totalorder %s100, %s101
      %p115 = scmp.eq.s32.totalorder %s27, 3
      %p116 = por %p114, %p115
      %p118 = scmp.ne.s32.totalorder %s101, %s117
      %p119 = scmp.eq.s32.totalorder %s27, 0
      %p120 = por %p118, %p119
      %s121 = ssub.s32 %s28, %s40
      %p122 = scmp.eq.s32.totalorder %s121, 0
      %s124 = sadd.s32 %s123, 1
      %s125 = scalar_select %p122, %s123, %s124
      %p128 = pneg %p122
      %p129 = scmp.eq.s32.totalorder %s21, 3
      %p130 = por %p128, %p129
      %p131 = scmp.ne.s32.totalorder %s123, %s126
      %p132 = scmp.eq.s32.totalorder %s21, 0
      %p133 = por %p131, %p132
      %p134 = scmp.ne.s32.totalorder %s123, %s126
      %p135 = scmp.eq.s32.totalorder %s26, 3
      %p136 = por %p134, %p135
      %p137 = scmp.ne.s32.totalorder %s126, %s127
      %p138 = scmp.eq.s32.totalorder %s26, 0
      %p139 = por %p137, %p138
      %p140 = scmp.ne.s32.totalorder %s126, %s127
      %p141 = scmp.eq.s32.totalorder %s27, 3
      %p142 = por %p140, %p141
      %p144 = scmp.ne.s32.totalorder %s127, %s143
      %p145 = scmp.eq.s32.totalorder %s27, 0
      %p146 = por %p144, %p145
      %s148 = sadd.s32 %s147, 1
      %p151 = scmp.eq.s32.totalorder %s21, 3
      %p152 = scmp.ne.s32.totalorder %s147, %s149
      %p153 = scmp.eq.s32.totalorder %s21, 0
      %p154 = por %p152, %p153
      %p155 = scmp.ne.s32.totalorder %s147, %s149
      %p156 = scmp.eq.s32.totalorder %s26, 3
      %p157 = por %p155, %p156
      %p158 = scmp.ne.s32.totalorder %s149, %s150
      %p159 = scmp.eq.s32.totalorder %s26, 0
      %p160 = por %p158, %p159
      %p161 = scmp.ne.s32.totalorder %s149, %s150
      %p162 = scmp.eq.s32.totalorder %s27, 3
      %p163 = por %p161, %p162
      %p165 = scmp.ne.s32.totalorder %s150, %s164
      %p166 = scmp.eq.s32.totalorder %s27, 0
      %p167 = por %p165, %p166
      %s169 = sadd.s32 %s168, 1
      %p172 = scmp.eq.s32.totalorder %s21, 3
      %p173 = scmp.ne.s32.totalorder %s168, %s170
      %p174 = scmp.eq.s32.totalorder %s21, 0
      %p175 = por %p173, %p174
      %p176 = scmp.ne.s32.totalorder %s168, %s170
      %p177 = scmp.eq.s32.totalorder %s26, 3
      %p178 = por %p176, %p177
      %p179 = scmp.ne.s32.totalorder %s170, %s171
      %p180 = scmp.eq.s32.totalorder %s26, 0
      %p181 = por %p179, %p180
      %p182 = scmp.ne.s32.totalorder %s170, %s171
      %p183 = scmp.eq.s32.totalorder %s27, 3
      %p184 = por %p182, %p183
      %p186 = scmp.ne.s32.totalorder %s171, %s185
      %p187 = scmp.eq.s32.totalorder %s27, 0
      %p188 = por %p186, %p187
      %s190 = sadd.s32 %s189, 1
      %p193 = scmp.eq.s32.totalorder %s21, 3
      %p194 = scmp.ne.s32.totalorder %s189, %s191
      %p195 = scmp.eq.s32.totalorder %s21, 0
      %p196 = por %p194, %p195
      %p197 = scmp.ne.s32.totalorder %s189, %s191
      %p198 = scmp.eq.s32.totalorder %s26, 3
      %p199 = por %p197, %p198
      %p200 = scmp.ne.s32.totalorder %s191, %s192
      %p201 = scmp.eq.s32.totalorder %s26, 0
      %p202 = por %p200, %p201
      %p203 = scmp.ne.s32.totalorder %s191, %s192
      %p204 = scmp.eq.s32.totalorder %s27, 3
      %p205 = por %p203, %p204
      %p207 = scmp.ne.s32.totalorder %s192, %s206
      %p208 = scmp.eq.s32.totalorder %s27, 0
      %p209 = por %p207, %p208
      %s211 = sadd.s32 %s210, 1
      %p214 = scmp.eq.s32.totalorder %s21, 3
      %p215 = scmp.ne.s32.totalorder %s210, %s212
      %p216 = scmp.eq.s32.totalorder %s21, 0
      %p217 = por %p215, %p216
      %p218 = scmp.ne.s32.totalorder %s210, %s212
      %p219 = scmp.eq.s32.totalorder %s26, 3
      %p220 = por %p218, %p219
      %p221 = scmp.ne.s32.totalorder %s212, %s213
      %p222 = scmp.eq.s32.totalorder %s26, 0
      %p223 = por %p221, %p222
      %p224 = scmp.ne.s32.totalorder %s212, %s213
      %p225 = scmp.eq.s32.totalorder %s27, 3
      %p226 = por %p224, %p225
      %p228 = scmp.ne.s32.totalorder %s213, %s227
      %p229 = scmp.eq.s32.totalorder %s27, 0
      %p230 = por %p228, %p229
      %s232 = sadd.s32 %s231, 1
      %p235 = scmp.eq.s32.totalorder %s21, 3
      %p236 = scmp.ne.s32.totalorder %s231, %s233
      %p237 = scmp.eq.s32.totalorder %s21, 0
      %p238 = por %p236, %p237
      %p239 = scmp.ne.s32.totalorder %s231, %s233
      %p240 = scmp.eq.s32.totalorder %s26, 3
      %p241 = por %p239, %p240
      %p242 = scmp.ne.s32.totalorder %s233, %s234
      %p243 = scmp.eq.s32.totalorder %s26, 0
      %p244 = por %p242, %p243
      %p245 = scmp.ne.s32.totalorder %s233, %s234
      %p246 = scmp.eq.s32.totalorder %s27, 3
      %p247 = por %p245, %p246
      %p249 = scmp.ne.s32.totalorder %s234, %s248
      %p250 = scmp.eq.s32.totalorder %s27, 0
      %p251 = por %p249, %p250
      %s253 = sadd.s32 %s252, 1
      %p256 = scmp.eq.s32.totalorder %s21, 3
      %p257 = scmp.ne.s32.totalorder %s252, %s254
      %p258 = scmp.eq.s32.totalorder %s21, 0
      %p259 = por %p257, %p258
      %p260 = scmp.ne.s32.totalorder %s252, %s254
      %p261 = scmp.eq.s32.totalorder %s26, 3
      %p262 = por %p260, %p261
      %p263 = scmp.ne.s32.totalorder %s254, %s255
      %p264 = scmp.eq.s32.totalorder %s26, 0
      %p265 = por %p263, %p264
      %p266 = scmp.ne.s32.totalorder %s254, %s255
      %p267 = scmp.eq.s32.totalorder %s27, 3
      %p268 = por %p266, %p267
      %p270 = scmp.ne.s32.totalorder %s255, %s269
      %p271 = scmp.eq.s32.totalorder %s27, 0
      %p272 = por %p270, %p271
      %s274 = sadd.s32 %s273, 1
      %p277 = scmp.eq.s32.totalorder %s21, 3
      %p278 = scmp.ne.s32.totalorder %s273, %s275
      %p279 = scmp.eq.s32.totalorder %s21, 0
      %p280 = por %p278, %p279
      %p281 = scmp.ne.s32.totalorder %s273, %s275
      %p282 = scmp.eq.s32.totalorder %s26, 3
      %p283 = por %p281, %p282
      %p284 = scmp.ne.s32.totalorder %s275, %s276
      %p285 = scmp.eq.s32.totalorder %s26, 0
      %p286 = por %p284, %p285
      %p287 = scmp.ne.s32.totalorder %s275, %s276
      %p288 = scmp.eq.s32.totalorder %s27, 3
      %p289 = por %p287, %p288
      %p291 = scmp.ne.s32.totalorder %s276, %s290
      %p292 = scmp.eq.s32.totalorder %s27, 0
      %p293 = por %p291, %p292
      %s295 = sadd.s32 %s294, 1
      %p298 = scmp.eq.s32.totalorder %s21, 3
      %p299 = scmp.ne.s32.totalorder %s294, %s296
      %p300 = scmp.eq.s32.totalorder %s21, 0
      %p301 = por %p299, %p300
      %p302 = scmp.ne.s32.totalorder %s294, %s296
      %p303 = scmp.eq.s32.totalorder %s26, 3
      %p304 = por %p302, %p303
      %p305 = scmp.ne.s32.totalorder %s296, %s297
      %p306 = scmp.eq.s32.totalorder %s26, 0
      %p307 = por %p305, %p306
      %p308 = scmp.ne.s32.totalorder %s296, %s297
      %p309 = scmp.eq.s32.totalorder %s27, 3
      %p310 = por %p308, %p309
      %p312 = scmp.ne.s32.totalorder %s297, %s311
      %p313 = scmp.eq.s32.totalorder %s27, 0
      %p314 = por %p312, %p313
      %s315 = ssub.s32 %s28, %s40
      %p316 = scmp.eq.s32.totalorder %s315, 0
      %s318 = sadd.s32 %s317, 1
      %s319 = scalar_select %p316, %s317, %s318
      %p322 = pneg %p316
      %p323 = scmp.eq.s32.totalorder %s21, 3
      %p324 = por %p322, %p323
      %p325 = scmp.ne.s32.totalorder %s317, %s320
      %p326 = scmp.eq.s32.totalorder %s21, 0
      %p327 = por %p325, %p326
      %p328 = scmp.ne.s32.totalorder %s317, %s320
      %p329 = scmp.eq.s32.totalorder %s26, 3
      %p330 = por %p328, %p329
      %p331 = scmp.ne.s32.totalorder %s320, %s321
      %p332 = scmp.eq.s32.totalorder %s26, 0
      %p333 = por %p331, %p332
      %p334 = scmp.ne.s32.totalorder %s320, %s321
      %p335 = scmp.eq.s32.totalorder %s27, 3
      %p336 = por %p334, %p335
      %p338 = scmp.ne.s32.totalorder %s321, %s337
      %p339 = scmp.eq.s32.totalorder %s27, 0
      %p340 = por %p338, %p339
      %p341 = scmp.le.s32.totalorder 1, %s21
      %p342 = scmp.lt.s32.totalorder %s21, 5
      %p343 = pnand %p341, %p342
      %p344 = pneg %p343
      // Predicated region
      $region9: #{tpu_custom_call.1} parent=5 // pred_check
        _
      $region10: #{tpu_custom_call.1} parent=5 // pred_check_branch
        %346 = sbr.rel (%p343) target = $region12
      $region11: #{tpu_custom_call.1} parent=5 // pred_region
        %s347 = ssub.s32 %s21, 1
        // Predicated region
        $region13: #{tpu_custom_call.1} parent=11 // pred_check
          %p348 = pneg %p160
        $region14: #{tpu_custom_call.1} parent=11 // pred_check_branch
          %350 = sbr.rel (%p348) target = $region16
        $region15: #{tpu_custom_call.1} parent=11 // pred_region
          _
        $region16: #{tpu_custom_call.1} parent=11 // pred_fallthru
          _
        // Predicated region
        $region17: #{tpu_custom_call.1} parent=11 // pred_check
          %p351 = pneg %p181
        $region18: #{tpu_custom_call.1} parent=11 // pred_check_branch
          %353 = sbr.rel (%p351) target = $region20
        $region19: #{tpu_custom_call.1} parent=11 // pred_region
          _
        $region20: #{tpu_custom_call.1} parent=11 // pred_fallthru
          _
        // Predicated region
        $region21: #{tpu_custom_call.1} parent=11 // pred_check
          %p354 = pneg %p202
        $region22: #{tpu_custom_call.1} parent=11 // pred_check_branch
          %356 = sbr.rel (%p354) target = $region24
        $region23: #{tpu_custom_call.1} parent=11 // pred_region
          _
        $region24: #{tpu_custom_call.1} parent=11 // pred_fallthru
          _
        // Predicated region
        $region25: #{tpu_custom_call.1} parent=11 // pred_check
          %p357 = pneg %p223
        $region26: #{tpu_custom_call.1} parent=11 // pred_check_branch
          %359 = sbr.rel (%p357) target = $region28
        $region27: #{tpu_custom_call.1} parent=11 // pred_region
          _
        $region28: #{tpu_custom_call.1} parent=11 // pred_fallthru
          _
        // Predicated region
        $region29: #{tpu_custom_call.1} parent=11 // pred_check
          %p360 = pneg %p244
        $region30: #{tpu_custom_call.1} parent=11 // pred_check_branch
          %362 = sbr.rel (%p360) target = $region32
        $region31: #{tpu_custom_call.1} parent=11 // pred_region
          _
        $region32: #{tpu_custom_call.1} parent=11 // pred_fallthru
          _
        // Predicated region
        $region33: #{tpu_custom_call.1} parent=11 // pred_check
          %p363 = pneg %p265
        $region34: #{tpu_custom_call.1} parent=11 // pred_check_branch
          %365 = sbr.rel (%p363) target = $region36
        $region35: #{tpu_custom_call.1} parent=11 // pred_region
          _
        $region36: #{tpu_custom_call.1} parent=11 // pred_fallthru
          _
        // Predicated region
        $region37: #{tpu_custom_call.1} parent=11 // pred_check
          %p366 = pneg %p286
        $region38: #{tpu_custom_call.1} parent=11 // pred_check_branch
          %368 = sbr.rel (%p366) target = $region40
        $region39: #{tpu_custom_call.1} parent=11 // pred_region
          _
        $region40: #{tpu_custom_call.1} parent=11 // pred_fallthru
          _
        // Predicated region
        $region41: #{tpu_custom_call.1} parent=11 // pred_check
          %p369 = pneg %p307
        $region42: #{tpu_custom_call.1} parent=11 // pred_check_branch
          %371 = sbr.rel (%p369) target = $region44
        $region43: #{tpu_custom_call.1} parent=11 // pred_region
          _
        $region44: #{tpu_custom_call.1} parent=11 // pred_fallthru
          _
      $region12: #{tpu_custom_call.1} parent=5 // pred_fallthru
        _
      %p372 = scmp.lt.s32.totalorder %s21, 4
      // Predicated region
      $region45: #{tpu_custom_call.1} parent=5 // pred_check
        %p373 = pneg %p372
      $region46: #{tpu_custom_call.1} parent=5 // pred_check_branch
        %375 = sbr.rel (%p373) target = $region48
      $region47: #{tpu_custom_call.1} parent=5 // pred_region
        // Predicated region
        $region49: #{tpu_custom_call.1} parent=47 // pred_check
          %p376 = pneg %p55
        $region50: #{tpu_custom_call.1} parent=47 // pred_check_branch
          %378 = sbr.rel (%p376) target = $region52
        $region51: #{tpu_custom_call.1} parent=47 // pred_region
          %s379 = sand.u32 %s45, 1
          %s380 = sand.u32 %s45, 1
          %s381 = smul.addr %s380, 64
          %s382 = scalar_lea.vmem [#allocation3], %s381
          %s383 = smul.u32 16, %s28
          %s384 = smul.addr %s383, 2
          %s385 = sadd.s32 %s29, %s384
          %s386 = smul.addr %s385, 4
          %s387 = scalar_lea.vmem %s0, %s386
          // Predicated region
          $region53: #{tpu_custom_call.1} parent=51 // pred_check
            _
          $region54: #{tpu_custom_call.1} parent=51 // pred_check_branch
            %389 = sbr.rel (0) target = $region56
          $region55: #{tpu_custom_call.1} parent=51 // pred_region
            // Predicated region
            $region57: #{tpu_custom_call.1} parent=55 // pred_check
              _
            $region58: #{tpu_custom_call.1} parent=55 // pred_check_branch
              %391 = sbr.rel target = $region60
            $region59: #{tpu_custom_call.1} parent=55 // pred_region
              // Predicated region
              $region72: #{tpu_custom_call.1} parent=59 // pred_check
                _
              $region73: #{tpu_custom_call.1} parent=59 // pred_check_branch
                %437 = sbr.rel (0) target = $region75
              $region74: #{tpu_custom_call.1} parent=59 // pred_region
                loop: start=0, step=1, limit=1
                $region76: #{tpu_custom_call.1} parent=74 // loop_pre_header
                  _
                $region77: #{tpu_custom_call.1} parent=74 // loop_header
                  %s439 = sphi 0, %s443
                  %p440 = scmp.ge.s32.totalorder %s439, 1
                  %s444 = sphi %s387, %s387
                  %s445 = sphi %s382, %s382
                $region78: #{tpu_custom_call.1} parent=74 // loop_header_branch
                  %442 = sbr.rel (%p440) target = $region82
                $region79: #{tpu_custom_call.1} parent=74 // loop_body
                  _
                $region80: #{tpu_custom_call.1} parent=74 // loop_footer
                  %s443 = sadd.s32 1, %s439
                $region81: #{tpu_custom_call.1} parent=74 // loop_footer_branch
                  %438 = sbr.rel target = $region77
                $region82: #{tpu_custom_call.1} parent=74 // loop_exit
                  _
                %s447 = ssub.s32 16, 1
                loop: start=0, step=1, limit=1
                $region83: #{tpu_custom_call.1} parent=74 // loop_pre_header
                  _
                $region84: #{tpu_custom_call.1} parent=74 // loop_header
                  %s449 = sphi 0, %s453
                  %p450 = scmp.ge.s32.totalorder %s449, 1
                  %s454 = sphi %s387, %s387
                  %s455 = sphi %s382, %s382
                $region85: #{tpu_custom_call.1} parent=74 // loop_header_branch
                  %452 = sbr.rel (%p450) target = $region89
                $region86: #{tpu_custom_call.1} parent=74 // loop_body
                  %v456 = vld [vmem:[%s454] sm:%s447]
                  %457 = vst [vmem:[%s455] sm:%s447] %v456
                  %v458 = vld [vmem:[%s454 + $0x8] sm:%s447]
                  %459 = vst [vmem:[%s455 + $0x4] sm:%s447] %v458
                  %v460 = vld [vmem:[%s454 + $0x10] sm:%s447]
                  %461 = vst [vmem:[%s455 + $0x8] sm:%s447] %v460
                  %v462 = vld [vmem:[%s454 + $0x18] sm:%s447]
                  %463 = vst [vmem:[%s455 + $0xc] sm:%s447] %v462
                  %v464 = vld [vmem:[%s454 + $0x20] sm:%s447]
                  %465 = vst [vmem:[%s455 + $0x10] sm:%s447] %v464
                  %v466 = vld [vmem:[%s454 + $0x28] sm:%s447]
                  %467 = vst [vmem:[%s455 + $0x14] sm:%s447] %v466
                  %v468 = vld [vmem:[%s454 + $0x30] sm:%s447]
                  %469 = vst [vmem:[%s455 + $0x18] sm:%s447] %v468
                  %v470 = vld [vmem:[%s454 + $0x38] sm:%s447]
                  %471 = vst [vmem:[%s455 + $0x1c] sm:%s447] %v470
                  %v472 = vld [vmem:[%s454 + $0x40] sm:%s447]
                  %473 = vst [vmem:[%s455 + $0x20] sm:%s447] %v472
                  %v474 = vld [vmem:[%s454 + $0x48] sm:%s447]
                  %475 = vst [vmem:[%s455 + $0x24] sm:%s447] %v474
                  %v476 = vld [vmem:[%s454 + $0x50] sm:%s447]
                  %477 = vst [vmem:[%s455 + $0x28] sm:%s447] %v476
                  %v478 = vld [vmem:[%s454 + $0x58] sm:%s447]
                  %479 = vst [vmem:[%s455 + $0x2c] sm:%s447] %v478
                  %v480 = vld [vmem:[%s454 + $0x60] sm:%s447]
                  %481 = vst [vmem:[%s455 + $0x30] sm:%s447] %v480
                  %v482 = vld [vmem:[%s454 + $0x68] sm:%s447]
                  %483 = vst [vmem:[%s455 + $0x34] sm:%s447] %v482
                  %v484 = vld [vmem:[%s454 + $0x70] sm:%s447]
                  %485 = vst [vmem:[%s455 + $0x38] sm:%s447] %v484
                  %v486 = vld [vmem:[%s454 + $0x78] sm:%s447]
                  %487 = vst [vmem:[%s455 + $0x3c] sm:%s447] %v486
                $region87: #{tpu_custom_call.1} parent=74 // loop_footer
                  %s453 = sadd.s32 1, %s449
                $region88: #{tpu_custom_call.1} parent=74 // loop_footer_branch
                  %448 = sbr.rel target = $region84
                $region89: #{tpu_custom_call.1} parent=74 // loop_exit
                  _
              $region75: #{tpu_custom_call.1} parent=59 // pred_fallthru
                _
            $region60: #{tpu_custom_call.1} parent=55 // pred_fallthru
              _
            // Predicated region
            $region61: #{tpu_custom_call.1} parent=55 // pred_check
              _
            $region62: #{tpu_custom_call.1} parent=55 // pred_check_branch
              %393 = sbr.rel (0) target = $region64
            $region63: #{tpu_custom_call.1} parent=55 // pred_region
              %s395 = ssub.s32 16, 1
              loop: start=0, step=1, limit=1
              $region65: #{tpu_custom_call.1} parent=63 // loop_pre_header
                _
              $region66: #{tpu_custom_call.1} parent=63 // loop_header
                %s397 = sphi 0, %s401
                %p398 = scmp.ge.s32.totalorder %s397, 1
                %s402 = sphi %s387, %s387
                %s403 = sphi %s382, %s382
              $region67: #{tpu_custom_call.1} parent=63 // loop_header_branch
                %400 = sbr.rel (%p398) target = $region71
              $region68: #{tpu_custom_call.1} parent=63 // loop_body
                %v404 = vld [vmem:[%s402] sm:%s395]
                %405 = vst [vmem:[%s403] sm:%s395] %v404
                %v406 = vld [vmem:[%s402 + $0x8] sm:%s395]
                %407 = vst [vmem:[%s403 + $0x4] sm:%s395] %v406
                %v408 = vld [vmem:[%s402 + $0x10] sm:%s395]
                %409 = vst [vmem:[%s403 + $0x8] sm:%s395] %v408
                %v410 = vld [vmem:[%s402 + $0x18] sm:%s395]
                %411 = vst [vmem:[%s403 + $0xc] sm:%s395] %v410
                %v412 = vld [vmem:[%s402 + $0x20] sm:%s395]
                %413 = vst [vmem:[%s403 + $0x10] sm:%s395] %v412
                %v414 = vld [vmem:[%s402 + $0x28] sm:%s395]
                %415 = vst [vmem:[%s403 + $0x14] sm:%s395] %v414
                %v416 = vld [vmem:[%s402 + $0x30] sm:%s395]
                %417 = vst [vmem:[%s403 + $0x18] sm:%s395] %v416
                %v418 = vld [vmem:[%s402 + $0x38] sm:%s395]
                %419 = vst [vmem:[%s403 + $0x1c] sm:%s395] %v418
                %v420 = vld [vmem:[%s402 + $0x40] sm:%s395]
                %421 = vst [vmem:[%s403 + $0x20] sm:%s395] %v420
                %v422 = vld [vmem:[%s402 + $0x48] sm:%s395]
                %423 = vst [vmem:[%s403 + $0x24] sm:%s395] %v422
                %v424 = vld [vmem:[%s402 + $0x50] sm:%s395]
                %425 = vst [vmem:[%s403 + $0x28] sm:%s395] %v424
                %v426 = vld [vmem:[%s402 + $0x58] sm:%s395]
                %427 = vst [vmem:[%s403 + $0x2c] sm:%s395] %v426
                %v428 = vld [vmem:[%s402 + $0x60] sm:%s395]
                %429 = vst [vmem:[%s403 + $0x30] sm:%s395] %v428
                %v430 = vld [vmem:[%s402 + $0x68] sm:%s395]
                %431 = vst [vmem:[%s403 + $0x34] sm:%s395] %v430
                %v432 = vld [vmem:[%s402 + $0x70] sm:%s395]
                %433 = vst [vmem:[%s403 + $0x38] sm:%s395] %v432
                %v434 = vld [vmem:[%s402 + $0x78] sm:%s395]
                %435 = vst [vmem:[%s403 + $0x3c] sm:%s395] %v434
              $region69: #{tpu_custom_call.1} parent=63 // loop_footer
                %s401 = sadd.s32 1, %s397
              $region70: #{tpu_custom_call.1} parent=63 // loop_footer_branch
                %396 = sbr.rel target = $region66
              $region71: #{tpu_custom_call.1} parent=63 // loop_exit
                _
            $region64: #{tpu_custom_call.1} parent=55 // pred_fallthru
              _
          $region56: #{tpu_custom_call.1} parent=51 // pred_fallthru
            _
          %488 = vnop
        $region52: #{tpu_custom_call.1} parent=47 // pred_fallthru
          _
        // Predicated region
        $region90: #{tpu_custom_call.1} parent=47 // pred_check
          %p489 = pneg %p81
        $region91: #{tpu_custom_call.1} parent=47 // pred_check_branch
          %491 = sbr.rel (%p489) target = $region93
        $region92: #{tpu_custom_call.1} parent=47 // pred_region
          %s492 = smul.u32 16, %s29
          %p493 = scmp.lt.s32.totalorder %s492, 31
          %s494 = scalar_select %p493, %s492, 31
          %s495 = smul.addr %s494, 4
          %s496 = scalar_lea.vmem %s1, %s495
          %s497 = smul.u32 16, %s29
        $region93: #{tpu_custom_call.1} parent=47 // pred_fallthru
          _
        // Predicated region
        $region94: #{tpu_custom_call.1} parent=47 // pred_check
          %p498 = pneg %p107
        $region95: #{tpu_custom_call.1} parent=47 // pred_check_branch
          %500 = sbr.rel (%p498) target = $region97
        $region96: #{tpu_custom_call.1} parent=47 // pred_region
          %s501 = smul.u32 16, %s28
          %p502 = scmp.lt.s32.totalorder %s501, 31
          %s503 = scalar_select %p502, %s501, 31
          %s504 = smul.addr %s503, 4
          %s505 = scalar_lea.vmem %s2, %s504
          %s506 = smul.u32 16, %s28
        $region97: #{tpu_custom_call.1} parent=47 // pred_fallthru
          _
        // Predicated region
        $region98: #{tpu_custom_call.1} parent=47 // pred_check
          %p507 = pneg %p133
        $region99: #{tpu_custom_call.1} parent=47 // pred_check_branch
          %509 = sbr.rel (%p507) target = $region101
        $region100: #{tpu_custom_call.1} parent=47 // pred_region
          %s510 = smul.u32 16, %s28
          %p511 = scmp.lt.s32.totalorder %s510, 31
          %s512 = scalar_select %p511, %s510, 31
          %s513 = smul.addr %s512, 8
          %s514 = scalar_lea.vmem %s3, %s513
          %s515 = smul.u32 16, %s28
        $region101: #{tpu_custom_call.1} parent=47 // pred_fallthru
          _
      $region48: #{tpu_custom_call.1} parent=5 // pred_fallthru
        _
      %p516 = scmp.le.s32.totalorder 1, %s21
      %p517 = scmp.lt.s32.totalorder %s21, 5
      %p518 = pnand %p516, %p517
      %p519 = pneg %p518
      // Predicated region
      $region102: #{tpu_custom_call.1} parent=5 // pred_check
        _
      $region103: #{tpu_custom_call.1} parent=5 // pred_check_branch
        %521 = sbr.rel (%p518) target = $region105
      $region104: #{tpu_custom_call.1} parent=5 // pred_region
        %s522 = ssub.s32 %s21, 1
        %s523 = sand.u32 %s48, 1
        %s524 = sand.u32 %s48, 1
        %s525 = smul.addr %s524, 64
        %s526 = scalar_lea.vmem [#allocation3], %s525
        // Predicated region
        $region106: #{tpu_custom_call.1} parent=104 // pred_check
          %p527 = pneg %p61
        $region107: #{tpu_custom_call.1} parent=104 // pred_check_branch
          %529 = sbr.rel (%p527) target = $region109
        $region108: #{tpu_custom_call.1} parent=104 // pred_region
          _
        $region109: #{tpu_custom_call.1} parent=104 // pred_fallthru
          _
        %s530 = sand.u32 %s48, 1
        %s531 = sand.u32 %s48, 1
        %s532 = smul.addr %s531, 64
        %s533 = scalar_lea.vmem [#allocation3], %s532
        %p534 = pneg %p61
        %p535 = pneg %p58
        %s536 = smul.u32 16, %s31
        %p537 = scmp.lt.s32.totalorder %s536, 31
        %s538 = scalar_select %p537, %s536, 31
        %s539 = smul.addr %s538, 4
        %s540 = scalar_lea.vmem %s1, %s539
        %p541 = pneg %p87
        %p542 = pneg %p84
        %s543 = smul.u32 16, %s30
        %p544 = scmp.lt.s32.totalorder %s543, 31
        %s545 = scalar_select %p544, %s543, 31
        %s546 = smul.addr %s545, 4
        %s547 = scalar_lea.vmem %s2, %s546
        %p548 = pneg %p113
        %p549 = pneg %p110
        %s550 = smul.u32 16, %s30
        %p551 = scmp.lt.s32.totalorder %s550, 31
        %s552 = scalar_select %p551, %s550, 31
        %s553 = smul.addr %s552, 8
        %s554 = scalar_lea.vmem %s3, %s553
        %p555 = pneg %p139
        %p556 = pneg %p136
        %p557 = pneg %p160
        %p558 = pneg %p157
        %p559 = pneg %p181
        %p560 = pneg %p178
        %p561 = pneg %p202
        %p562 = pneg %p199
        %p563 = pneg %p223
        %p564 = pneg %p220
        %p565 = pneg %p244
        %p566 = pneg %p241
        %p567 = pneg %p265
        %p568 = pneg %p262
        %p569 = pneg %p286
        %p570 = pneg %p283
        %p571 = pneg %p307
        %p572 = pneg %p304
        %p573 = pneg %p333
        %p574 = pneg %p330
        %s575 = sand.u32 %s320, 1
        %s576 = scalar_lea.sflag [#allocation5], %s575
        %s577 = sand.u32 %s320, 1
        %s578 = smul.addr %s577, 128
        %s579 = scalar_lea.vmem [#allocation4], %s578
        %s580 = smul.u32 16, %s30
        %s581 = smul.u32 16, %s31
        %p582 = scmp.lt.s32.totalorder %s581, 31
        %s583 = scalar_select %p582, %s581, 31
        %s584 = smul.addr %s583, 4
        %s585 = scalar_lea.vmem %s1, %s584
        %s586 = smul.u32 16, %s31
        %s587 = smul.u32 16, %s30
        %p588 = scmp.lt.s32.totalorder %s587, 31
        %s589 = scalar_select %p588, %s587, 31
        %s590 = smul.addr %s589, 4
        %s591 = scalar_lea.vmem %s2, %s590
        %s592 = smul.u32 16, %s30
        %s593 = smul.u32 16, %s30
        %p594 = scmp.lt.s32.totalorder %s593, 31
        %s595 = scalar_select %p594, %s593, 31
        %s596 = smul.addr %s595, 8
        %s597 = scalar_lea.vmem %s3, %s596
        %s598 = smul.u32 16, %s30
        %s599 = smul.u32 16, %s30
        %p601 = scmp.eq.s32.totalorder %s31, 0
        // Predicated region
        $region110: #{tpu_custom_call.1} parent=104 // pred_check
          %p602 = pneg %p601
        $region111: #{tpu_custom_call.1} parent=104 // pred_check_branch
          %604 = sbr.rel (%p602) target = $region113
        $region112: #{tpu_custom_call.1} parent=104 // pred_region
          %vm605 = vcmask 15360
          %606 = vst.msk [vmem:[#allocation2] sm:$0xff] %vm605, 0.0
          %607 = vst.msk [vmem:[#allocation2 + $0x8] sm:$0xff] %vm605, 0.0
          %608 = vst.msk [vmem:[#allocation2 + $0x10] sm:$0xff] %vm605, 0.0
          %609 = vst.msk [vmem:[#allocation2 + $0x18] sm:$0xff] %vm605, 0.0
          %610 = vst.msk [vmem:[#allocation2 + $0x20] sm:$0xff] %vm605, 0.0
          %611 = vst.msk [vmem:[#allocation2 + $0x28] sm:$0xff] %vm605, 0.0
          %612 = vst.msk [vmem:[#allocation2 + $0x30] sm:$0xff] %vm605, 0.0
          %613 = vst.msk [vmem:[#allocation2 + $0x38] sm:$0xff] %vm605, 0.0
          %614 = vst.msk [vmem:[#allocation2 + $0x40] sm:$0xff] %vm605, 0.0
          %615 = vst.msk [vmem:[#allocation2 + $0x48] sm:$0xff] %vm605, 0.0
          %616 = vst.msk [vmem:[#allocation2 + $0x50] sm:$0xff] %vm605, 0.0
          %617 = vst.msk [vmem:[#allocation2 + $0x58] sm:$0xff] %vm605, 0.0
          %618 = vst.msk [vmem:[#allocation2 + $0x60] sm:$0xff] %vm605, 0.0
          %619 = vst.msk [vmem:[#allocation2 + $0x68] sm:$0xff] %vm605, 0.0
          %620 = vst.msk [vmem:[#allocation2 + $0x70] sm:$0xff] %vm605, 0.0
          %621 = vst.msk [vmem:[#allocation2 + $0x78] sm:$0xff] %vm605, 0.0
        $region113: #{tpu_custom_call.1} parent=104 // pred_fallthru
          _
        %v622 = vld [vmem:[%s526] sm:$0xf]
        %v623 = vld [vmem:[%s526 + $0x4] sm:$0xf]
        %v624 = vld [vmem:[%s526 + $0x8] sm:$0xf]
        %v625 = vld [vmem:[%s526 + $0xc] sm:$0xf]
        %v626 = vld [vmem:[%s526 + $0x10] sm:$0xf]
        %v627 = vld [vmem:[%s526 + $0x14] sm:$0xf]
        %v628 = vld [vmem:[%s526 + $0x18] sm:$0xf]
        %v629 = vld [vmem:[%s526 + $0x1c] sm:$0xf]
        %v630 = vld [vmem:[%s526 + $0x20] sm:$0xf]
        %v631 = vld [vmem:[%s526 + $0x24] sm:$0xf]
        %v632 = vld [vmem:[%s526 + $0x28] sm:$0xf]
        %v633 = vld [vmem:[%s526 + $0x2c] sm:$0xf]
        %v634 = vld [vmem:[%s526 + $0x30] sm:$0xf]
        %v635 = vld [vmem:[%s526 + $0x34] sm:$0xf]
        %v636 = vld [vmem:[%s526 + $0x38] sm:$0xf]
        %v637 = vld [vmem:[%s526 + $0x3c] sm:$0xf]
        %v638 = vld [vmem:[%s585] sm:$0xf]
        %v639 = vld [vmem:[%s585 + $0x4] sm:$0xf]
        %v640 = vld [vmem:[%s585 + $0x8] sm:$0xf]
        %v641 = vld [vmem:[%s585 + $0xc] sm:$0xf]
        %v642 = vld [vmem:[%s585 + $0x10] sm:$0xf]
        %v643 = vld [vmem:[%s585 + $0x14] sm:$0xf]
        %v644 = vld [vmem:[%s585 + $0x18] sm:$0xf]
        %v645 = vld [vmem:[%s585 + $0x1c] sm:$0xf]
        %v646 = vld [vmem:[%s585 + $0x20] sm:$0xf]
        %v647 = vld [vmem:[%s585 + $0x24] sm:$0xf]
        %v648 = vld [vmem:[%s585 + $0x28] sm:$0xf]
        %v649 = vld [vmem:[%s585 + $0x2c] sm:$0xf]
        %v650 = vld [vmem:[%s585 + $0x30] sm:$0xf]
        %v651 = vld [vmem:[%s585 + $0x34] sm:$0xf]
        %v652 = vld [vmem:[%s585 + $0x38] sm:$0xf]
        %v653 = vld [vmem:[%s585 + $0x3c] sm:$0xf]
        %v670 = vunpack.c.l.b16 %v622
        %v671 = vunpack.c.l.b16 %v623
        %v672 = vunpack.c.l.b16 %v624
        %v673 = vunpack.c.l.b16 %v625
        %v674 = vunpack.c.l.b16 %v626
        %v675 = vunpack.c.l.b16 %v627
        %v676 = vunpack.c.l.b16 %v628
        %v677 = vunpack.c.l.b16 %v629
        %v678 = vunpack.c.l.b16 %v630
        %v679 = vunpack.c.l.b16 %v631
        %v680 = vunpack.c.l.b16 %v632
        %v681 = vunpack.c.l.b16 %v633
        %v682 = vunpack.c.l.b16 %v634
        %v683 = vunpack.c.l.b16 %v635
        %v684 = vunpack.c.l.b16 %v636
        %v685 = vunpack.c.l.b16 %v637
        %v686 = vpack.c.b16 %v671, %v670
        %v687 = vpack.c.b16 %v673, %v672
        %v688 = vpack.c.b16 %v675, %v674
        %v689 = vpack.c.b16 %v677, %v676
        %v690 = vpack.c.b16 %v679, %v678
        %v691 = vpack.c.b16 %v681, %v680
        %v692 = vpack.c.b16 %v683, %v682
        %v693 = vpack.c.b16 %v685, %v684
        %v718 = vunpack.c.l.b16 %v638
        %v719 = vunpack.c.l.b16 %v639
        %v720 = vunpack.c.l.b16 %v640
        %v721 = vunpack.c.l.b16 %v641
        %v722 = vunpack.c.l.b16 %v642
        %v723 = vunpack.c.l.b16 %v643
        %v724 = vunpack.c.l.b16 %v644
        %v725 = vunpack.c.l.b16 %v645
        %v726 = vunpack.c.l.b16 %v646
        %v727 = vunpack.c.l.b16 %v647
        %v728 = vunpack.c.l.b16 %v648
        %v729 = vunpack.c.l.b16 %v649
        %v730 = vunpack.c.l.b16 %v650
        %v731 = vunpack.c.l.b16 %v651
        %v732 = vunpack.c.l.b16 %v652
        %v733 = vunpack.c.l.b16 %v653
        %v734 = vpack.c.b16 %v719, %v718
        %v735 = vpack.c.b16 %v721, %v720
        %v736 = vpack.c.b16 %v723, %v722
        %v737 = vpack.c.b16 %v725, %v724
        %v738 = vpack.c.b16 %v727, %v726
        %v739 = vpack.c.b16 %v729, %v728
        %v740 = vpack.c.b16 %v731, %v730
        %v741 = vpack.c.b16 %v733, %v732
        %750 = vmatpush.bf16.msra.mxu0 %v741
        %751 = vmatpush.bf16.msra.mxu0 %v740
        %752 = vmatpush.bf16.msra.mxu0 %v739
        %753 = vmatpush.bf16.msra.mxu0 %v738
        %754 = vmatpush.bf16.msra.mxu0 %v737
        %755 = vmatpush.bf16.msra.mxu0 %v736
        %756 = vmatpush.bf16.msra.mxu0 %v735
        %757 = vmatpush.bf16.msra.mxu0 %v734
        %758 = vmatmul.bf16.gmra.mxu0 %v686
        %v759 = vpop.f32.mrf.mxu0
        %v760 = vadd.f32 0.0, %v759
        %v761 = vpop.f32.mrf.mxu0
        %v762 = vadd.f32 0.0, %v761
        %763 = vmatmul.bf16.gmra.mxu0 %v687
        %v764 = vpop.f32.mrf.mxu0
        %v765 = vadd.f32 0.0, %v764
        %v766 = vpop.f32.mrf.mxu0
        %v767 = vadd.f32 0.0, %v766
        %768 = vmatmul.bf16.gmra.mxu0 %v688
        %v769 = vpop.f32.mrf.mxu0
        %v770 = vadd.f32 0.0, %v769
        %v771 = vpop.f32.mrf.mxu0
        %v772 = vadd.f32 0.0, %v771
        %773 = vmatmul.bf16.gmra.mxu0 %v689
        %v774 = vpop.f32.mrf.mxu0
        %v775 = vadd.f32 0.0, %v774
        %v776 = vpop.f32.mrf.mxu0
        %v777 = vadd.f32 0.0, %v776
        %778 = vmatmul.bf16.gmra.mxu0 %v690
        %v779 = vpop.f32.mrf.mxu0
        %v780 = vadd.f32 0.0, %v779
        %v781 = vpop.f32.mrf.mxu0
        %v782 = vadd.f32 0.0, %v781
        %783 = vmatmul.bf16.gmra.mxu0 %v691
        %v784 = vpop.f32.mrf.mxu0
        %v785 = vadd.f32 0.0, %v784
        %v786 = vpop.f32.mrf.mxu0
        %v787 = vadd.f32 0.0, %v786
        %788 = vmatmul.bf16.gmra.mxu0 %v692
        %v789 = vpop.f32.mrf.mxu0
        %v790 = vadd.f32 0.0, %v789
        %v791 = vpop.f32.mrf.mxu0
        %v792 = vadd.f32 0.0, %v791
        %793 = vmatmul.bf16.gmra.mxu0 %v693
        %v794 = vpop.f32.mrf.mxu0
        %v795 = vadd.f32 0.0, %v794
        %v796 = vpop.f32.mrf.mxu0
        %v797 = vadd.f32 0.0, %v796
        %798 = vdwg.mxu0
        %v799 = vld [vmem:[#allocation2] sm:$0xff]
        %v800 = vld [vmem:[#allocation2 + $0x8] sm:$0xff]
        %v801 = vld [vmem:[#allocation2 + $0x10] sm:$0xff]
        %v802 = vld [vmem:[#allocation2 + $0x18] sm:$0xff]
        %v803 = vld [vmem:[#allocation2 + $0x20] sm:$0xff]
        %v804 = vld [vmem:[#allocation2 + $0x28] sm:$0xff]
        %v805 = vld [vmem:[#allocation2 + $0x30] sm:$0xff]
        %v806 = vld [vmem:[#allocation2 + $0x38] sm:$0xff]
        %v807 = vld [vmem:[#allocation2 + $0x40] sm:$0xff]
        %v808 = vld [vmem:[#allocation2 + $0x48] sm:$0xff]
        %v809 = vld [vmem:[#allocation2 + $0x50] sm:$0xff]
        %v810 = vld [vmem:[#allocation2 + $0x58] sm:$0xff]
        %v811 = vld [vmem:[#allocation2 + $0x60] sm:$0xff]
        %v812 = vld [vmem:[#allocation2 + $0x68] sm:$0xff]
        %v813 = vld [vmem:[#allocation2 + $0x70] sm:$0xff]
        %v814 = vld [vmem:[#allocation2 + $0x78] sm:$0xff]
        %v815 = vadd.f32 %v799, %v760
        %v816 = vadd.f32 %v800, %v762
        %v817 = vadd.f32 %v801, %v765
        %v818 = vadd.f32 %v802, %v767
        %v819 = vadd.f32 %v803, %v770
        %v820 = vadd.f32 %v804, %v772
        %v821 = vadd.f32 %v805, %v775
        %v822 = vadd.f32 %v806, %v777
        %v823 = vadd.f32 %v807, %v780
        %v824 = vadd.f32 %v808, %v782
        %v825 = vadd.f32 %v809, %v785
        %v826 = vadd.f32 %v810, %v787
        %v827 = vadd.f32 %v811, %v790
        %v828 = vadd.f32 %v812, %v792
        %v829 = vadd.f32 %v813, %v795
        %v830 = vadd.f32 %v814, %v797
        %vm831 = vcmask 15360
        %832 = vst.msk [vmem:[#allocation2] sm:$0xff] %vm831, %v815
        %833 = vst.msk [vmem:[#allocation2 + $0x8] sm:$0xff] %vm831, %v816
        %834 = vst.msk [vmem:[#allocation2 + $0x10] sm:$0xff] %vm831, %v817
        %835 = vst.msk [vmem:[#allocation2 + $0x18] sm:$0xff] %vm831, %v818
        %836 = vst.msk [vmem:[#allocation2 + $0x20] sm:$0xff] %vm831, %v819
        %837 = vst.msk [vmem:[#allocation2 + $0x28] sm:$0xff] %vm831, %v820
        %838 = vst.msk [vmem:[#allocation2 + $0x30] sm:$0xff] %vm831, %v821
        %839 = vst.msk [vmem:[#allocation2 + $0x38] sm:$0xff] %vm831, %v822
        %840 = vst.msk [vmem:[#allocation2 + $0x40] sm:$0xff] %vm831, %v823
        %841 = vst.msk [vmem:[#allocation2 + $0x48] sm:$0xff] %vm831, %v824
        %842 = vst.msk [vmem:[#allocation2 + $0x50] sm:$0xff] %vm831, %v825
        %843 = vst.msk [vmem:[#allocation2 + $0x58] sm:$0xff] %vm831, %v826
        %844 = vst.msk [vmem:[#allocation2 + $0x60] sm:$0xff] %vm831, %v827
        %845 = vst.msk [vmem:[#allocation2 + $0x68] sm:$0xff] %vm831, %v828
        %846 = vst.msk [vmem:[#allocation2 + $0x70] sm:$0xff] %vm831, %v829
        %847 = vst.msk [vmem:[#allocation2 + $0x78] sm:$0xff] %vm831, %v830
        %p848 = scmp.eq.s32.totalorder %s31, 1
        // Predicated region
        $region114: #{tpu_custom_call.1} parent=104 // pred_check
          %p849 = pneg %p848
        $region115: #{tpu_custom_call.1} parent=104 // pred_check_branch
          %851 = sbr.rel (%p849) target = $region117
        $region116: #{tpu_custom_call.1} parent=104 // pred_region
          %v852 = vld [vmem:[#allocation2] sm:$0xff]
          %v853 = vld [vmem:[#allocation2 + $0x8] sm:$0xff]
          %v854 = vld [vmem:[#allocation2 + $0x10] sm:$0xff]
          %v855 = vld [vmem:[#allocation2 + $0x18] sm:$0xff]
          %v856 = vld [vmem:[#allocation2 + $0x20] sm:$0xff]
          %v857 = vld [vmem:[#allocation2 + $0x28] sm:$0xff]
          %v858 = vld [vmem:[#allocation2 + $0x30] sm:$0xff]
          %v859 = vld [vmem:[#allocation2 + $0x38] sm:$0xff]
          %v860 = vld [vmem:[#allocation2 + $0x40] sm:$0xff]
          %v861 = vld [vmem:[#allocation2 + $0x48] sm:$0xff]
          %v862 = vld [vmem:[#allocation2 + $0x50] sm:$0xff]
          %v863 = vld [vmem:[#allocation2 + $0x58] sm:$0xff]
          %v864 = vld [vmem:[#allocation2 + $0x60] sm:$0xff]
          %v865 = vld [vmem:[#allocation2 + $0x68] sm:$0xff]
          %v866 = vld [vmem:[#allocation2 + $0x70] sm:$0xff]
          %v867 = vld [vmem:[#allocation2 + $0x78] sm:$0xff]
          %884 = vrot.lane.b32.xlu0 %v852, 127
          %v885 = vpop.permute.xlu0 %884
          %886 = vrot.lane.b32.xlu0 %v853, 127
          %v887 = vpop.permute.xlu0 %886
          %888 = vrot.lane.b32.xlu0 %v854, 127
          %v889 = vpop.permute.xlu0 %888
          %890 = vrot.lane.b32.xlu0 %v855, 127
          %v891 = vpop.permute.xlu0 %890
          %892 = vrot.lane.b32.xlu0 %v856, 127
          %v893 = vpop.permute.xlu0 %892
          %894 = vrot.lane.b32.xlu0 %v857, 127
          %v895 = vpop.permute.xlu0 %894
          %896 = vrot.lane.b32.xlu0 %v858, 127
          %v897 = vpop.permute.xlu0 %896
          %898 = vrot.lane.b32.xlu0 %v859, 127
          %v899 = vpop.permute.xlu0 %898
          %900 = vrot.lane.b32.xlu0 %v860, 127
          %v901 = vpop.permute.xlu0 %900
          %902 = vrot.lane.b32.xlu0 %v861, 127
          %v903 = vpop.permute.xlu0 %902
          %904 = vrot.lane.b32.xlu0 %v862, 127
          %v905 = vpop.permute.xlu0 %904
          %906 = vrot.lane.b32.xlu0 %v863, 127
          %v907 = vpop.permute.xlu0 %906
          %908 = vrot.lane.b32.xlu0 %v864, 127
          %v909 = vpop.permute.xlu0 %908
          %910 = vrot.lane.b32.xlu0 %v865, 127
          %v911 = vpop.permute.xlu0 %910
          %912 = vrot.lane.b32.xlu0 %v866, 127
          %v913 = vpop.permute.xlu0 %912
          %914 = vrot.lane.b32.xlu0 %v867, 127
          %v915 = vpop.permute.xlu0 %914
          %v932 = vrcp.pop %v885
          %v933 = vmul.f32 %v885, %v932
          %v934 = vsub.f32 1.0, %v933
          %v935 = vmul.f32 %v932, %v934
          %v936 = vadd.f32 %v932, %v935
          %vm937 = vweird.f32 %v885
          %vm938 = vweird.f32 %v932
          %vm939 = vmor %vm937, %vm938
          %v940 = vsel %vm939, %v932, %v936
          %v941 = vand.u32 2147483647, %v885
          %vm942 = vcmp.eq.f32.partialorder %v941, 8.507059e+37
          %v943 = vand.u32 %v885, 2147483648
          %v944 = vor.u32 1.1754944e-38, %v943
          %v945 = vsel %vm942, %v944, %v940
          %v946 = vmul.f32 %v852, %v945
          %v947 = vrcp.pop %v887
          %v948 = vmul.f32 %v887, %v947
          %v949 = vsub.f32 1.0, %v948
          %v950 = vmul.f32 %v947, %v949
          %v951 = vadd.f32 %v947, %v950
          %vm952 = vweird.f32 %v887
          %vm953 = vweird.f32 %v947
          %vm954 = vmor %vm952, %vm953
          %v955 = vsel %vm954, %v947, %v951
          %v956 = vand.u32 2147483647, %v887
          %vm957 = vcmp.eq.f32.partialorder %v956, 8.507059e+37
          %v958 = vand.u32 %v887, 2147483648
          %v959 = vor.u32 1.1754944e-38, %v958
          %v960 = vsel %vm957, %v959, %v955
          %v961 = vmul.f32 %v853, %v960
          %v962 = vrcp.pop %v889
          %v963 = vmul.f32 %v889, %v962
          %v964 = vsub.f32 1.0, %v963
          %v965 = vmul.f32 %v962, %v964
          %v966 = vadd.f32 %v962, %v965
          %vm967 = vweird.f32 %v889
          %vm968 = vweird.f32 %v962
          %vm969 = vmor %vm967, %vm968
          %v970 = vsel %vm969, %v962, %v966
          %v971 = vand.u32 2147483647, %v889
          %vm972 = vcmp.eq.f32.partialorder %v971, 8.507059e+37
          %v973 = vand.u32 %v889, 2147483648
          %v974 = vor.u32 1.1754944e-38, %v973
          %v975 = vsel %vm972, %v974, %v970
          %v976 = vmul.f32 %v854, %v975
          %v977 = vrcp.pop %v891
          %v978 = vmul.f32 %v891, %v977
          %v979 = vsub.f32 1.0, %v978
          %v980 = vmul.f32 %v977, %v979
          %v981 = vadd.f32 %v977, %v980
          %vm982 = vweird.f32 %v891
          %vm983 = vweird.f32 %v977
          %vm984 = vmor %vm982, %vm983
          %v985 = vsel %vm984, %v977, %v981
          %v986 = vand.u32 2147483647, %v891
          %vm987 = vcmp.eq.f32.partialorder %v986, 8.507059e+37
          %v988 = vand.u32 %v891, 2147483648
          %v989 = vor.u32 1.1754944e-38, %v988
          %v990 = vsel %vm987, %v989, %v985
          %v991 = vmul.f32 %v855, %v990
          %v992 = vrcp.pop %v893
          %v993 = vmul.f32 %v893, %v992
          %v994 = vsub.f32 1.0, %v993
          %v995 = vmul.f32 %v992, %v994
          %v996 = vadd.f32 %v992, %v995
          %vm997 = vweird.f32 %v893
          %vm998 = vweird.f32 %v992
          %vm999 = vmor %vm997, %vm998
          %v1000 = vsel %vm999, %v992, %v996
          %v1001 = vand.u32 2147483647, %v893
          %vm1002 = vcmp.eq.f32.partialorder %v1001, 8.507059e+37
          %v1003 = vand.u32 %v893, 2147483648
          %v1004 = vor.u32 1.1754944e-38, %v1003
          %v1005 = vsel %vm1002, %v1004, %v1000
          %v1006 = vmul.f32 %v856, %v1005
          %v1007 = vrcp.pop %v895
          %v1008 = vmul.f32 %v895, %v1007
          %v1009 = vsub.f32 1.0, %v1008
          %v1010 = vmul.f32 %v1007, %v1009
          %v1011 = vadd.f32 %v1007, %v1010
          %vm1012 = vweird.f32 %v895
          %vm1013 = vweird.f32 %v1007
          %vm1014 = vmor %vm1012, %vm1013
          %v1015 = vsel %vm1014, %v1007, %v1011
          %v1016 = vand.u32 2147483647, %v895
          %vm1017 = vcmp.eq.f32.partialorder %v1016, 8.507059e+37
          %v1018 = vand.u32 %v895, 2147483648
          %v1019 = vor.u32 1.1754944e-38, %v1018
          %v1020 = vsel %vm1017, %v1019, %v1015
          %v1021 = vmul.f32 %v857, %v1020
          %v1022 = vrcp.pop %v897
          %v1023 = vmul.f32 %v897, %v1022
          %v1024 = vsub.f32 1.0, %v1023
          %v1025 = vmul.f32 %v1022, %v1024
          %v1026 = vadd.f32 %v1022, %v1025
          %vm1027 = vweird.f32 %v897
          %vm1028 = vweird.f32 %v1022
          %vm1029 = vmor %vm1027, %vm1028
          %v1030 = vsel %vm1029, %v1022, %v1026
          %v1031 = vand.u32 2147483647, %v897
          %vm1032 = vcmp.eq.f32.partialorder %v1031, 8.507059e+37
          %v1033 = vand.u32 %v897, 2147483648
          %v1034 = vor.u32 1.1754944e-38, %v1033
          %v1035 = vsel %vm1032, %v1034, %v1030
          %v1036 = vmul.f32 %v858, %v1035
          %v1037 = vrcp.pop %v899
          %v1038 = vmul.f32 %v899, %v1037
          %v1039 = vsub.f32 1.0, %v1038
          %v1040 = vmul.f32 %v1037, %v1039
          %v1041 = vadd.f32 %v1037, %v1040
          %vm1042 = vweird.f32 %v899
          %vm1043 = vweird.f32 %v1037
          %vm1044 = vmor %vm1042, %vm1043
          %v1045 = vsel %vm1044, %v1037, %v1041
          %v1046 = vand.u32 2147483647, %v899
          %vm1047 = vcmp.eq.f32.partialorder %v1046, 8.507059e+37
          %v1048 = vand.u32 %v899, 2147483648
          %v1049 = vor.u32 1.1754944e-38, %v1048
          %v1050 = vsel %vm1047, %v1049, %v1045
          %v1051 = vmul.f32 %v859, %v1050
          %v1052 = vrcp.pop %v901
          %v1053 = vmul.f32 %v901, %v1052
          %v1054 = vsub.f32 1.0, %v1053
          %v1055 = vmul.f32 %v1052, %v1054
          %v1056 = vadd.f32 %v1052, %v1055
          %vm1057 = vweird.f32 %v901
          %vm1058 = vweird.f32 %v1052
          %vm1059 = vmor %vm1057, %vm1058
          %v1060 = vsel %vm1059, %v1052, %v1056
          %v1061 = vand.u32 2147483647, %v901
          %vm1062 = vcmp.eq.f32.partialorder %v1061, 8.507059e+37
          %v1063 = vand.u32 %v901, 2147483648
          %v1064 = vor.u32 1.1754944e-38, %v1063
          %v1065 = vsel %vm1062, %v1064, %v1060
          %v1066 = vmul.f32 %v860, %v1065
          %v1067 = vrcp.pop %v903
          %v1068 = vmul.f32 %v903, %v1067
          %v1069 = vsub.f32 1.0, %v1068
          %v1070 = vmul.f32 %v1067, %v1069
          %v1071 = vadd.f32 %v1067, %v1070
          %vm1072 = vweird.f32 %v903
          %vm1073 = vweird.f32 %v1067
          %vm1074 = vmor %vm1072, %vm1073
          %v1075 = vsel %vm1074, %v1067, %v1071
          %v1076 = vand.u32 2147483647, %v903
          %vm1077 = vcmp.eq.f32.partialorder %v1076, 8.507059e+37
          %v1078 = vand.u32 %v903, 2147483648
          %v1079 = vor.u32 1.1754944e-38, %v1078
          %v1080 = vsel %vm1077, %v1079, %v1075
          %v1081 = vmul.f32 %v861, %v1080
          %v1082 = vrcp.pop %v905
          %v1083 = vmul.f32 %v905, %v1082
          %v1084 = vsub.f32 1.0, %v1083
          %v1085 = vmul.f32 %v1082, %v1084
          %v1086 = vadd.f32 %v1082, %v1085
          %vm1087 = vweird.f32 %v905
          %vm1088 = vweird.f32 %v1082
          %vm1089 = vmor %vm1087, %vm1088
          %v1090 = vsel %vm1089, %v1082, %v1086
          %v1091 = vand.u32 2147483647, %v905
          %vm1092 = vcmp.eq.f32.partialorder %v1091, 8.507059e+37
          %v1093 = vand.u32 %v905, 2147483648
          %v1094 = vor.u32 1.1754944e-38, %v1093
          %v1095 = vsel %vm1092, %v1094, %v1090
          %v1096 = vmul.f32 %v862, %v1095
          %v1097 = vrcp.pop %v907
          %v1098 = vmul.f32 %v907, %v1097
          %v1099 = vsub.f32 1.0, %v1098
          %v1100 = vmul.f32 %v1097, %v1099
          %v1101 = vadd.f32 %v1097, %v1100
          %vm1102 = vweird.f32 %v907
          %vm1103 = vweird.f32 %v1097
          %vm1104 = vmor %vm1102, %vm1103
          %v1105 = vsel %vm1104, %v1097, %v1101
          %v1106 = vand.u32 2147483647, %v907
          %vm1107 = vcmp.eq.f32.partialorder %v1106, 8.507059e+37
          %v1108 = vand.u32 %v907, 2147483648
          %v1109 = vor.u32 1.1754944e-38, %v1108
          %v1110 = vsel %vm1107, %v1109, %v1105
          %v1111 = vmul.f32 %v863, %v1110
          %v1112 = vrcp.pop %v909
          %v1113 = vmul.f32 %v909, %v1112
          %v1114 = vsub.f32 1.0, %v1113
          %v1115 = vmul.f32 %v1112, %v1114
          %v1116 = vadd.f32 %v1112, %v1115
          %vm1117 = vweird.f32 %v909
          %vm1118 = vweird.f32 %v1112
          %vm1119 = vmor %vm1117, %vm1118
          %v1120 = vsel %vm1119, %v1112, %v1116
          %v1121 = vand.u32 2147483647, %v909
          %vm1122 = vcmp.eq.f32.partialorder %v1121, 8.507059e+37
          %v1123 = vand.u32 %v909, 2147483648
          %v1124 = vor.u32 1.1754944e-38, %v1123
          %v1125 = vsel %vm1122, %v1124, %v1120
          %v1126 = vmul.f32 %v864, %v1125
          %v1127 = vrcp.pop %v911
          %v1128 = vmul.f32 %v911, %v1127
          %v1129 = vsub.f32 1.0, %v1128
          %v1130 = vmul.f32 %v1127, %v1129
          %v1131 = vadd.f32 %v1127, %v1130
          %vm1132 = vweird.f32 %v911
          %vm1133 = vweird.f32 %v1127
          %vm1134 = vmor %vm1132, %vm1133
          %v1135 = vsel %vm1134, %v1127, %v1131
          %v1136 = vand.u32 2147483647, %v911
          %vm1137 = vcmp.eq.f32.partialorder %v1136, 8.507059e+37
          %v1138 = vand.u32 %v911, 2147483648
          %v1139 = vor.u32 1.1754944e-38, %v1138
          %v1140 = vsel %vm1137, %v1139, %v1135
          %v1141 = vmul.f32 %v865, %v1140
          %v1142 = vrcp.pop %v913
          %v1143 = vmul.f32 %v913, %v1142
          %v1144 = vsub.f32 1.0, %v1143
          %v1145 = vmul.f32 %v1142, %v1144
          %v1146 = vadd.f32 %v1142, %v1145
          %vm1147 = vweird.f32 %v913
          %vm1148 = vweird.f32 %v1142
          %vm1149 = vmor %vm1147, %vm1148
          %v1150 = vsel %vm1149, %v1142, %v1146
          %v1151 = vand.u32 2147483647, %v913
          %vm1152 = vcmp.eq.f32.partialorder %v1151, 8.507059e+37
          %v1153 = vand.u32 %v913, 2147483648
          %v1154 = vor.u32 1.1754944e-38, %v1153
          %v1155 = vsel %vm1152, %v1154, %v1150
          %v1156 = vmul.f32 %v866, %v1155
          %v1157 = vrcp.pop %v915
          %v1158 = vmul.f32 %v915, %v1157
          %v1159 = vsub.f32 1.0, %v1158
          %v1160 = vmul.f32 %v1157, %v1159
          %v1161 = vadd.f32 %v1157, %v1160
          %vm1162 = vweird.f32 %v915
          %vm1163 = vweird.f32 %v1157
          %vm1164 = vmor %vm1162, %vm1163
          %v1165 = vsel %vm1164, %v1157, %v1161
          %v1166 = vand.u32 2147483647, %v915
          %vm1167 = vcmp.eq.f32.partialorder %v1166, 8.507059e+37
          %v1168 = vand.u32 %v915, 2147483648
          %v1169 = vor.u32 1.1754944e-38, %v1168
          %v1170 = vsel %vm1167, %v1169, %v1165
          %v1171 = vmul.f32 %v867, %v1170
          %v1172 = vld [vmem:[%s591] sm:$0xf]
          %v1173 = vld [vmem:[%s591 + $0x4] sm:$0xf]
          %v1174 = vld [vmem:[%s591 + $0x8] sm:$0xf]
          %v1175 = vld [vmem:[%s591 + $0xc] sm:$0xf]
          %v1176 = vld [vmem:[%s591 + $0x10] sm:$0xf]
          %v1177 = vld [vmem:[%s591 + $0x14] sm:$0xf]
          %v1178 = vld [vmem:[%s591 + $0x18] sm:$0xf]
          %v1179 = vld [vmem:[%s591 + $0x1c] sm:$0xf]
          %v1180 = vld [vmem:[%s591 + $0x20] sm:$0xf]
          %v1181 = vld [vmem:[%s591 + $0x24] sm:$0xf]
          %v1182 = vld [vmem:[%s591 + $0x28] sm:$0xf]
          %v1183 = vld [vmem:[%s591 + $0x2c] sm:$0xf]
          %v1184 = vld [vmem:[%s591 + $0x30] sm:$0xf]
          %v1185 = vld [vmem:[%s591 + $0x34] sm:$0xf]
          %v1186 = vld [vmem:[%s591 + $0x38] sm:$0xf]
          %v1187 = vld [vmem:[%s591 + $0x3c] sm:$0xf]
          %v1188 = vld [vmem:[%s4] sm:$0xf]
          %v1189 = vld [vmem:[%s4 + $0x4] sm:$0xf]
          %v1190 = vld [vmem:[%s5] sm:$0x1]
          %v1192 = vperm.slane %v1190, 0
          %v1210 = vunpack.c.l.b16 %v1172
          %v1211 = vunpack.c.l.b16 %v1173
          %v1212 = vunpack.c.l.b16 %v1174
          %v1213 = vunpack.c.l.b16 %v1175
          %v1214 = vunpack.c.l.b16 %v1176
          %v1215 = vunpack.c.l.b16 %v1177
          %v1216 = vunpack.c.l.b16 %v1178
          %v1217 = vunpack.c.l.b16 %v1179
          %v1218 = vunpack.c.l.b16 %v1180
          %v1219 = vunpack.c.l.b16 %v1181
          %v1220 = vunpack.c.l.b16 %v1182
          %v1221 = vunpack.c.l.b16 %v1183
          %v1222 = vunpack.c.l.b16 %v1184
          %v1223 = vunpack.c.l.b16 %v1185
          %v1224 = vunpack.c.l.b16 %v1186
          %v1225 = vunpack.c.l.b16 %v1187
          %v1226 = vpack.c.b16 %v1211, %v1210
          %v1227 = vpack.c.b16 %v1213, %v1212
          %v1228 = vpack.c.b16 %v1215, %v1214
          %v1229 = vpack.c.b16 %v1217, %v1216
          %v1230 = vpack.c.b16 %v1219, %v1218
          %v1231 = vpack.c.b16 %v1221, %v1220
          %v1232 = vpack.c.b16 %v1223, %v1222
          %v1233 = vpack.c.b16 %v1225, %v1224
          %v1236 = vunpack.c.l.b16 %v1188
          %v1237 = vunpack.c.l.b16 %v1189
          %v1238 = vpack.c.b16 %v1237, %v1236
          %vm1240 = vcmask 130048
          %v1242 = vsel %vm1240, %v1226, 0
          %v1245 = vsel %vm1240, %v1227, 0
          %v1248 = vsel %vm1240, %v1228, 0
          %v1251 = vsel %vm1240, %v1229, 0
          %v1254 = vsel %vm1240, %v1230, 0
          %v1257 = vsel %vm1240, %v1231, 0
          %v1260 = vsel %vm1240, %v1232, 0
          %v1263 = vsel %vm1240, %v1233, 0
          %1265 = vmatpush.bf16.msra.mxu0 0
          %1266 = vmatpush.bf16.msra.mxu0 0
          %1267 = vmatpush.bf16.msra.mxu0 0
          %1268 = vmatpush.bf16.msra.mxu0 0
          %1269 = vmatpush.bf16.msra.mxu0 0
          %1270 = vmatpush.bf16.msra.mxu0 0
          %1271 = vmatpush.bf16.msra.mxu0 0
          %1272 = vmatpush.bf16.msra.mxu0 %v1238
          %1273 = vmatmul.bf16.gmra.mxu0 %v1242
          %v1274 = vpop.f32.mrf.mxu0
          %v1275 = vadd.f32 %v1192, %v1274
          %v1276 = vpop.f32.mrf.mxu0
          %v1277 = vadd.f32 %v1192, %v1276
          %1278 = vmatmul.bf16.gmra.mxu0 %v1245
          %v1279 = vpop.f32.mrf.mxu0
          %v1280 = vadd.f32 %v1192, %v1279
          %v1281 = vpop.f32.mrf.mxu0
          %v1282 = vadd.f32 %v1192, %v1281
          %1283 = vmatmul.bf16.gmra.mxu0 %v1248
          %v1284 = vpop.f32.mrf.mxu0
          %v1285 = vadd.f32 %v1192, %v1284
          %v1286 = vpop.f32.mrf.mxu0
          %v1287 = vadd.f32 %v1192, %v1286
          %1288 = vmatmul.bf16.gmra.mxu0 %v1251
          %v1289 = vpop.f32.mrf.mxu0
          %v1290 = vadd.f32 %v1192, %v1289
          %v1291 = vpop.f32.mrf.mxu0
          %v1292 = vadd.f32 %v1192, %v1291
          %1293 = vmatmul.bf16.gmra.mxu0 %v1254
          %v1294 = vpop.f32.mrf.mxu0
          %v1295 = vadd.f32 %v1192, %v1294
          %v1296 = vpop.f32.mrf.mxu0
          %v1297 = vadd.f32 %v1192, %v1296
          %1298 = vmatmul.bf16.gmra.mxu0 %v1257
          %v1299 = vpop.f32.mrf.mxu0
          %v1300 = vadd.f32 %v1192, %v1299
          %v1301 = vpop.f32.mrf.mxu0
          %v1302 = vadd.f32 %v1192, %v1301
          %1303 = vmatmul.bf16.gmra.mxu0 %v1260
          %v1304 = vpop.f32.mrf.mxu0
          %v1305 = vadd.f32 %v1192, %v1304
          %v1306 = vpop.f32.mrf.mxu0
          %v1307 = vadd.f32 %v1192, %v1306
          %1308 = vmatmul.bf16.gmra.mxu0 %v1263
          %v1309 = vpop.f32.mrf.mxu0
          %v1310 = vadd.f32 %v1192, %v1309
          %v1311 = vpop.f32.mrf.mxu0
          %v1312 = vadd.f32 %v1192, %v1311
          %1313 = vdwg.mxu0
          %v1314 = vmax.f32 %v1275, 0.0
          %v1315 = vmax.f32 %v1277, 0.0
          %v1316 = vmax.f32 %v1280, 0.0
          %v1317 = vmax.f32 %v1282, 0.0
          %v1318 = vmax.f32 %v1285, 0.0
          %v1319 = vmax.f32 %v1287, 0.0
          %v1320 = vmax.f32 %v1290, 0.0
          %v1321 = vmax.f32 %v1292, 0.0
          %v1322 = vmax.f32 %v1295, 0.0
          %v1323 = vmax.f32 %v1297, 0.0
          %v1324 = vmax.f32 %v1300, 0.0
          %v1325 = vmax.f32 %v1302, 0.0
          %v1326 = vmax.f32 %v1305, 0.0
          %v1327 = vmax.f32 %v1307, 0.0
          %v1328 = vmax.f32 %v1310, 0.0
          %v1329 = vmax.f32 %v1312, 0.0
          %v1330 = vpack.c.bf16 %v1315, %v1314
          %v1331 = vpack.c.bf16 %v1317, %v1316
          %v1332 = vpack.c.bf16 %v1319, %v1318
          %v1333 = vpack.c.bf16 %v1321, %v1320
          %v1334 = vpack.c.bf16 %v1323, %v1322
          %v1335 = vpack.c.bf16 %v1325, %v1324
          %v1336 = vpack.c.bf16 %v1327, %v1326
          %v1337 = vpack.c.bf16 %v1329, %v1328
          %v1338 = vld [vmem:[%s6] sm:$0xf]
          %v1339 = vld [vmem:[%s6 + $0x4] sm:$0xf]
          %v1340 = vld [vmem:[%s6 + $0x8] sm:$0xf]
          %v1341 = vld [vmem:[%s6 + $0xc] sm:$0xf]
          %v1342 = vld [vmem:[%s7] sm:$0x1]
          %v1344 = vperm.slane %v1342, 0
          %v1350 = vunpack.c.l.b16 %v1338
          %v1351 = vunpack.c.l.b16 %v1339
          %v1352 = vunpack.c.l.b16 %v1340
          %v1353 = vunpack.c.l.b16 %v1341
          %v1354 = vpack.c.b16 %v1351, %v1350
          %v1355 = vpack.c.b16 %v1353, %v1352
          %vm1358 = vcmask 261120
          %v1360 = vsel %vm1358, %v1330, 0
          %v1363 = vsel %vm1358, %v1331, 0
          %v1366 = vsel %vm1358, %v1332, 0
          %v1369 = vsel %vm1358, %v1333, 0
          %v1372 = vsel %vm1358, %v1334, 0
          %v1375 = vsel %vm1358, %v1335, 0
          %v1378 = vsel %vm1358, %v1336, 0
          %v1381 = vsel %vm1358, %v1337, 0
          %1383 = vmatpush.bf16.msra.mxu0 0
          %1384 = vmatpush.bf16.msra.mxu0 0
          %1385 = vmatpush.bf16.msra.mxu0 0
          %1386 = vmatpush.bf16.msra.mxu0 0
          %1387 = vmatpush.bf16.msra.mxu0 0
          %1388 = vmatpush.bf16.msra.mxu0 0
          %1389 = vmatpush.bf16.msra.mxu0 %v1355
          %1390 = vmatpush.bf16.msra.mxu0 %v1354
          %1391 = vmatmul.bf16.gmra.mxu0 %v1360
          %v1392 = vpop.f32.mrf.mxu0
          %v1393 = vadd.f32 %v1344, %v1392
          %v1394 = vpop.f32.mrf.mxu0
          %v1395 = vadd.f32 %v1344, %v1394
          %1396 = vmatmul.bf16.gmra.mxu0 %v1363
          %v1397 = vpop.f32.mrf.mxu0
          %v1398 = vadd.f32 %v1344, %v1397
          %v1399 = vpop.f32.mrf.mxu0
          %v1400 = vadd.f32 %v1344, %v1399
          %1401 = vmatmul.bf16.gmra.mxu0 %v1366
          %v1402 = vpop.f32.mrf.mxu0
          %v1403 = vadd.f32 %v1344, %v1402
          %v1404 = vpop.f32.mrf.mxu0
          %v1405 = vadd.f32 %v1344, %v1404
          %1406 = vmatmul.bf16.gmra.mxu0 %v1369
          %v1407 = vpop.f32.mrf.mxu0
          %v1408 = vadd.f32 %v1344, %v1407
          %v1409 = vpop.f32.mrf.mxu0
          %v1410 = vadd.f32 %v1344, %v1409
          %1411 = vmatmul.bf16.gmra.mxu0 %v1372
          %v1412 = vpop.f32.mrf.mxu0
          %v1413 = vadd.f32 %v1344, %v1412
          %v1414 = vpop.f32.mrf.mxu0
          %v1415 = vadd.f32 %v1344, %v1414
          %1416 = vmatmul.bf16.gmra.mxu0 %v1375
          %v1417 = vpop.f32.mrf.mxu0
          %v1418 = vadd.f32 %v1344, %v1417
          %v1419 = vpop.f32.mrf.mxu0
          %v1420 = vadd.f32 %v1344, %v1419
          %1421 = vmatmul.bf16.gmra.mxu0 %v1378
          %v1422 = vpop.f32.mrf.mxu0
          %v1423 = vadd.f32 %v1344, %v1422
          %v1424 = vpop.f32.mrf.mxu0
          %v1425 = vadd.f32 %v1344, %v1424
          %1426 = vmatmul.bf16.gmra.mxu0 %v1381
          %v1427 = vpop.f32.mrf.mxu0
          %v1428 = vadd.f32 %v1344, %v1427
          %v1429 = vpop.f32.mrf.mxu0
          %v1430 = vadd.f32 %v1344, %v1429
          %1431 = vdwg.mxu0
          %v1432 = vmax.f32 %v1393, 0.0
          %v1433 = vmax.f32 %v1395, 0.0
          %v1434 = vmax.f32 %v1398, 0.0
          %v1435 = vmax.f32 %v1400, 0.0
          %v1436 = vmax.f32 %v1403, 0.0
          %v1437 = vmax.f32 %v1405, 0.0
          %v1438 = vmax.f32 %v1408, 0.0
          %v1439 = vmax.f32 %v1410, 0.0
          %v1440 = vmax.f32 %v1413, 0.0
          %v1441 = vmax.f32 %v1415, 0.0
          %v1442 = vmax.f32 %v1418, 0.0
          %v1443 = vmax.f32 %v1420, 0.0
          %v1444 = vmax.f32 %v1423, 0.0
          %v1445 = vmax.f32 %v1425, 0.0
          %v1446 = vmax.f32 %v1428, 0.0
          %v1447 = vmax.f32 %v1430, 0.0
          %v1448 = vpack.c.bf16 %v1433, %v1432
          %v1449 = vpack.c.bf16 %v1435, %v1434
          %v1450 = vpack.c.bf16 %v1437, %v1436
          %v1451 = vpack.c.bf16 %v1439, %v1438
          %v1452 = vpack.c.bf16 %v1441, %v1440
          %v1453 = vpack.c.bf16 %v1443, %v1442
          %v1454 = vpack.c.bf16 %v1445, %v1444
          %v1455 = vpack.c.bf16 %v1447, %v1446
          %v1456 = vld [vmem:[%s8] sm:$0xf]
          %v1457 = vld [vmem:[%s8 + $0x4] sm:$0xf]
          %v1458 = vld [vmem:[%s8 + $0x8] sm:$0xf]
          %v1459 = vld [vmem:[%s8 + $0xc] sm:$0xf]
          %v1460 = vld [vmem:[%s9] sm:$0x1]
          %v1462 = vperm.slane %v1460, 0
          %v1468 = vunpack.c.l.b16 %v1456
          %v1469 = vunpack.c.l.b16 %v1457
          %v1470 = vunpack.c.l.b16 %v1458
          %v1471 = vunpack.c.l.b16 %v1459
          %v1472 = vpack.c.b16 %v1469, %v1468
          %v1473 = vpack.c.b16 %v1471, %v1470
          %v1477 = vsel %vm1358, %v1448, 0
          %v1480 = vsel %vm1358, %v1449, 0
          %v1483 = vsel %vm1358, %v1450, 0
          %v1486 = vsel %vm1358, %v1451, 0
          %v1489 = vsel %vm1358, %v1452, 0
          %v1492 = vsel %vm1358, %v1453, 0
          %v1495 = vsel %vm1358, %v1454, 0
          %v1498 = vsel %vm1358, %v1455, 0
          %1500 = vmatpush.bf16.msra.mxu0 0
          %1501 = vmatpush.bf16.msra.mxu0 0
          %1502 = vmatpush.bf16.msra.mxu0 0
          %1503 = vmatpush.bf16.msra.mxu0 0
          %1504 = vmatpush.bf16.msra.mxu0 0
          %1505 = vmatpush.bf16.msra.mxu0 0
          %1506 = vmatpush.bf16.msra.mxu0 %v1473
          %1507 = vmatpush.bf16.msra.mxu0 %v1472
          %1508 = vmatmul.bf16.gmra.mxu0 %v1477
          %v1509 = vpop.f32.mrf.mxu0
          %v1510 = vadd.f32 %v1462, %v1509
          %v1511 = vpop.f32.mrf.mxu0
          %v1512 = vadd.f32 %v1462, %v1511
          %1513 = vmatmul.bf16.gmra.mxu0 %v1480
          %v1514 = vpop.f32.mrf.mxu0
          %v1515 = vadd.f32 %v1462, %v1514
          %v1516 = vpop.f32.mrf.mxu0
          %v1517 = vadd.f32 %v1462, %v1516
          %1518 = vmatmul.bf16.gmra.mxu0 %v1483
          %v1519 = vpop.f32.mrf.mxu0
          %v1520 = vadd.f32 %v1462, %v1519
          %v1521 = vpop.f32.mrf.mxu0
          %v1522 = vadd.f32 %v1462, %v1521
          %1523 = vmatmul.bf16.gmra.mxu0 %v1486
          %v1524 = vpop.f32.mrf.mxu0
          %v1525 = vadd.f32 %v1462, %v1524
          %v1526 = vpop.f32.mrf.mxu0
          %v1527 = vadd.f32 %v1462, %v1526
          %1528 = vmatmul.bf16.gmra.mxu0 %v1489
          %v1529 = vpop.f32.mrf.mxu0
          %v1530 = vadd.f32 %v1462, %v1529
          %v1531 = vpop.f32.mrf.mxu0
          %v1532 = vadd.f32 %v1462, %v1531
          %1533 = vmatmul.bf16.gmra.mxu0 %v1492
          %v1534 = vpop.f32.mrf.mxu0
          %v1535 = vadd.f32 %v1462, %v1534
          %v1536 = vpop.f32.mrf.mxu0
          %v1537 = vadd.f32 %v1462, %v1536
          %1538 = vmatmul.bf16.gmra.mxu0 %v1495
          %v1539 = vpop.f32.mrf.mxu0
          %v1540 = vadd.f32 %v1462, %v1539
          %v1541 = vpop.f32.mrf.mxu0
          %v1542 = vadd.f32 %v1462, %v1541
          %1543 = vmatmul.bf16.gmra.mxu0 %v1498
          %v1544 = vpop.f32.mrf.mxu0
          %v1545 = vadd.f32 %v1462, %v1544
          %v1546 = vpop.f32.mrf.mxu0
          %v1547 = vadd.f32 %v1462, %v1546
          %1548 = vdwg.mxu0
          %v1549 = vmax.f32 %v1510, 0.0
          %v1550 = vmax.f32 %v1512, 0.0
          %v1551 = vmax.f32 %v1515, 0.0
          %v1552 = vmax.f32 %v1517, 0.0
          %v1553 = vmax.f32 %v1520, 0.0
          %v1554 = vmax.f32 %v1522, 0.0
          %v1555 = vmax.f32 %v1525, 0.0
          %v1556 = vmax.f32 %v1527, 0.0
          %v1557 = vmax.f32 %v1530, 0.0
          %v1558 = vmax.f32 %v1532, 0.0
          %v1559 = vmax.f32 %v1535, 0.0
          %v1560 = vmax.f32 %v1537, 0.0
          %v1561 = vmax.f32 %v1540, 0.0
          %v1562 = vmax.f32 %v1542, 0.0
          %v1563 = vmax.f32 %v1545, 0.0
          %v1564 = vmax.f32 %v1547, 0.0
          %v1565 = vxor.u32 %v1510, 2147483648
          %v1566 = vxor.u32 %v1512, 2147483648
          %v1567 = vxor.u32 %v1515, 2147483648
          %v1568 = vxor.u32 %v1517, 2147483648
          %v1569 = vxor.u32 %v1520, 2147483648
          %v1570 = vxor.u32 %v1522, 2147483648
          %v1571 = vxor.u32 %v1525, 2147483648
          %v1572 = vxor.u32 %v1527, 2147483648
          %v1573 = vxor.u32 %v1530, 2147483648
          %v1574 = vxor.u32 %v1532, 2147483648
          %v1575 = vxor.u32 %v1535, 2147483648
          %v1576 = vxor.u32 %v1537, 2147483648
          %v1577 = vxor.u32 %v1540, 2147483648
          %v1578 = vxor.u32 %v1542, 2147483648
          %v1579 = vxor.u32 %v1545, 2147483648
          %v1580 = vxor.u32 %v1547, 2147483648
          %v1581 = vmul.f32 %v1565, 1.442695
          %v1582 = vpow.pop %v1581
          %v1583 = vmul.f32 %v1566, 1.442695
          %v1584 = vpow.pop %v1583
          %v1585 = vmul.f32 %v1567, 1.442695
          %v1586 = vpow.pop %v1585
          %v1587 = vmul.f32 %v1568, 1.442695
          %v1588 = vpow.pop %v1587
          %v1589 = vmul.f32 %v1569, 1.442695
          %v1590 = vpow.pop %v1589
          %v1591 = vmul.f32 %v1570, 1.442695
          %v1592 = vpow.pop %v1591
          %v1593 = vmul.f32 %v1571, 1.442695
          %v1594 = vpow.pop %v1593
          %v1595 = vmul.f32 %v1572, 1.442695
          %v1596 = vpow.pop %v1595
          %v1597 = vmul.f32 %v1573, 1.442695
          %v1598 = vpow.pop %v1597
          %v1599 = vmul.f32 %v1574, 1.442695
          %v1600 = vpow.pop %v1599
          %v1601 = vmul.f32 %v1575, 1.442695
          %v1602 = vpow.pop %v1601
          %v1603 = vmul.f32 %v1576, 1.442695
          %v1604 = vpow.pop %v1603
          %v1605 = vmul.f32 %v1577, 1.442695
          %v1606 = vpow.pop %v1605
          %v1607 = vmul.f32 %v1578, 1.442695
          %v1608 = vpow.pop %v1607
          %v1609 = vmul.f32 %v1579, 1.442695
          %v1610 = vpow.pop %v1609
          %v1611 = vmul.f32 %v1580, 1.442695
          %v1612 = vpow.pop %v1611
          %v1613 = vadd.f32 %v1582, 1.0
          %v1614 = vadd.f32 %v1584, 1.0
          %v1615 = vadd.f32 %v1586, 1.0
          %v1616 = vadd.f32 %v1588, 1.0
          %v1617 = vadd.f32 %v1590, 1.0
          %v1618 = vadd.f32 %v1592, 1.0
          %v1619 = vadd.f32 %v1594, 1.0
          %v1620 = vadd.f32 %v1596, 1.0
          %v1621 = vadd.f32 %v1598, 1.0
          %v1622 = vadd.f32 %v1600, 1.0
          %v1623 = vadd.f32 %v1602, 1.0
          %v1624 = vadd.f32 %v1604, 1.0
          %v1625 = vadd.f32 %v1606, 1.0
          %v1626 = vadd.f32 %v1608, 1.0
          %v1627 = vadd.f32 %v1610, 1.0
          %v1628 = vadd.f32 %v1612, 1.0
          %v1629 = vrcp.pop %v1613
          %v1630 = vmul.f32 %v1613, %v1629
          %v1631 = vsub.f32 1.0, %v1630
          %v1632 = vmul.f32 %v1629, %v1631
          %v1633 = vadd.f32 %v1629, %v1632
          %vm1634 = vweird.f32 %v1613
          %vm1635 = vweird.f32 %v1629
          %vm1636 = vmor %vm1634, %vm1635
          %v1637 = vsel %vm1636, %v1629, %v1633
          %v1638 = vand.u32 2147483647, %v1613
          %vm1639 = vcmp.eq.f32.partialorder %v1638, 8.507059e+37
          %v1640 = vand.u32 %v1613, 2147483648
          %v1641 = vor.u32 1.1754944e-38, %v1640
          %v1642 = vsel %vm1639, %v1641, %v1637
          %v1643 = vmul.f32 1.0, %v1642
          %v1644 = vrcp.pop %v1614
          %v1645 = vmul.f32 %v1614, %v1644
          %v1646 = vsub.f32 1.0, %v1645
          %v1647 = vmul.f32 %v1644, %v1646
          %v1648 = vadd.f32 %v1644, %v1647
          %vm1649 = vweird.f32 %v1614
          %vm1650 = vweird.f32 %v1644
          %vm1651 = vmor %vm1649, %vm1650
          %v1652 = vsel %vm1651, %v1644, %v1648
          %v1653 = vand.u32 2147483647, %v1614
          %vm1654 = vcmp.eq.f32.partialorder %v1653, 8.507059e+37
          %v1655 = vand.u32 %v1614, 2147483648
          %v1656 = vor.u32 1.1754944e-38, %v1655
          %v1657 = vsel %vm1654, %v1656, %v1652
          %v1658 = vmul.f32 1.0, %v1657
          %v1659 = vrcp.pop %v1615
          %v1660 = vmul.f32 %v1615, %v1659
          %v1661 = vsub.f32 1.0, %v1660
          %v1662 = vmul.f32 %v1659, %v1661
          %v1663 = vadd.f32 %v1659, %v1662
          %vm1664 = vweird.f32 %v1615
          %vm1665 = vweird.f32 %v1659
          %vm1666 = vmor %vm1664, %vm1665
          %v1667 = vsel %vm1666, %v1659, %v1663
          %v1668 = vand.u32 2147483647, %v1615
          %vm1669 = vcmp.eq.f32.partialorder %v1668, 8.507059e+37
          %v1670 = vand.u32 %v1615, 2147483648
          %v1671 = vor.u32 1.1754944e-38, %v1670
          %v1672 = vsel %vm1669, %v1671, %v1667
          %v1673 = vmul.f32 1.0, %v1672
          %v1674 = vrcp.pop %v1616
          %v1675 = vmul.f32 %v1616, %v1674
          %v1676 = vsub.f32 1.0, %v1675
          %v1677 = vmul.f32 %v1674, %v1676
          %v1678 = vadd.f32 %v1674, %v1677
          %vm1679 = vweird.f32 %v1616
          %vm1680 = vweird.f32 %v1674
          %vm1681 = vmor %vm1679, %vm1680
          %v1682 = vsel %vm1681, %v1674, %v1678
          %v1683 = vand.u32 2147483647, %v1616
          %vm1684 = vcmp.eq.f32.partialorder %v1683, 8.507059e+37
          %v1685 = vand.u32 %v1616, 2147483648
          %v1686 = vor.u32 1.1754944e-38, %v1685
          %v1687 = vsel %vm1684, %v1686, %v1682
          %v1688 = vmul.f32 1.0, %v1687
          %v1689 = vrcp.pop %v1617
          %v1690 = vmul.f32 %v1617, %v1689
          %v1691 = vsub.f32 1.0, %v1690
          %v1692 = vmul.f32 %v1689, %v1691
          %v1693 = vadd.f32 %v1689, %v1692
          %vm1694 = vweird.f32 %v1617
          %vm1695 = vweird.f32 %v1689
          %vm1696 = vmor %vm1694, %vm1695
          %v1697 = vsel %vm1696, %v1689, %v1693
          %v1698 = vand.u32 2147483647, %v1617
          %vm1699 = vcmp.eq.f32.partialorder %v1698, 8.507059e+37
          %v1700 = vand.u32 %v1617, 2147483648
          %v1701 = vor.u32 1.1754944e-38, %v1700
          %v1702 = vsel %vm1699, %v1701, %v1697
          %v1703 = vmul.f32 1.0, %v1702
          %v1704 = vrcp.pop %v1618
          %v1705 = vmul.f32 %v1618, %v1704
          %v1706 = vsub.f32 1.0, %v1705
          %v1707 = vmul.f32 %v1704, %v1706
          %v1708 = vadd.f32 %v1704, %v1707
          %vm1709 = vweird.f32 %v1618
          %vm1710 = vweird.f32 %v1704
          %vm1711 = vmor %vm1709, %vm1710
          %v1712 = vsel %vm1711, %v1704, %v1708
          %v1713 = vand.u32 2147483647, %v1618
          %vm1714 = vcmp.eq.f32.partialorder %v1713, 8.507059e+37
          %v1715 = vand.u32 %v1618, 2147483648
          %v1716 = vor.u32 1.1754944e-38, %v1715
          %v1717 = vsel %vm1714, %v1716, %v1712
          %v1718 = vmul.f32 1.0, %v1717
          %v1719 = vrcp.pop %v1619
          %v1720 = vmul.f32 %v1619, %v1719
          %v1721 = vsub.f32 1.0, %v1720
          %v1722 = vmul.f32 %v1719, %v1721
          %v1723 = vadd.f32 %v1719, %v1722
          %vm1724 = vweird.f32 %v1619
          %vm1725 = vweird.f32 %v1719
          %vm1726 = vmor %vm1724, %vm1725
          %v1727 = vsel %vm1726, %v1719, %v1723
          %v1728 = vand.u32 2147483647, %v1619
          %vm1729 = vcmp.eq.f32.partialorder %v1728, 8.507059e+37
          %v1730 = vand.u32 %v1619, 2147483648
          %v1731 = vor.u32 1.1754944e-38, %v1730
          %v1732 = vsel %vm1729, %v1731, %v1727
          %v1733 = vmul.f32 1.0, %v1732
          %v1734 = vrcp.pop %v1620
          %v1735 = vmul.f32 %v1620, %v1734
          %v1736 = vsub.f32 1.0, %v1735
          %v1737 = vmul.f32 %v1734, %v1736
          %v1738 = vadd.f32 %v1734, %v1737
          %vm1739 = vweird.f32 %v1620
          %vm1740 = vweird.f32 %v1734
          %vm1741 = vmor %vm1739, %vm1740
          %v1742 = vsel %vm1741, %v1734, %v1738
          %v1743 = vand.u32 2147483647, %v1620
          %vm1744 = vcmp.eq.f32.partialorder %v1743, 8.507059e+37
          %v1745 = vand.u32 %v1620, 2147483648
          %v1746 = vor.u32 1.1754944e-38, %v1745
          %v1747 = vsel %vm1744, %v1746, %v1742
          %v1748 = vmul.f32 1.0, %v1747
          %v1749 = vrcp.pop %v1621
          %v1750 = vmul.f32 %v1621, %v1749
          %v1751 = vsub.f32 1.0, %v1750
          %v1752 = vmul.f32 %v1749, %v1751
          %v1753 = vadd.f32 %v1749, %v1752
          %vm1754 = vweird.f32 %v1621
          %vm1755 = vweird.f32 %v1749
          %vm1756 = vmor %vm1754, %vm1755
          %v1757 = vsel %vm1756, %v1749, %v1753
          %v1758 = vand.u32 2147483647, %v1621
          %vm1759 = vcmp.eq.f32.partialorder %v1758, 8.507059e+37
          %v1760 = vand.u32 %v1621, 2147483648
          %v1761 = vor.u32 1.1754944e-38, %v1760
          %v1762 = vsel %vm1759, %v1761, %v1757
          %v1763 = vmul.f32 1.0, %v1762
          %v1764 = vrcp.pop %v1622
          %v1765 = vmul.f32 %v1622, %v1764
          %v1766 = vsub.f32 1.0, %v1765
          %v1767 = vmul.f32 %v1764, %v1766
          %v1768 = vadd.f32 %v1764, %v1767
          %vm1769 = vweird.f32 %v1622
          %vm1770 = vweird.f32 %v1764
          %vm1771 = vmor %vm1769, %vm1770
          %v1772 = vsel %vm1771, %v1764, %v1768
          %v1773 = vand.u32 2147483647, %v1622
          %vm1774 = vcmp.eq.f32.partialorder %v1773, 8.507059e+37
          %v1775 = vand.u32 %v1622, 2147483648
          %v1776 = vor.u32 1.1754944e-38, %v1775
          %v1777 = vsel %vm1774, %v1776, %v1772
          %v1778 = vmul.f32 1.0, %v1777
          %v1779 = vrcp.pop %v1623
          %v1780 = vmul.f32 %v1623, %v1779
          %v1781 = vsub.f32 1.0, %v1780
          %v1782 = vmul.f32 %v1779, %v1781
          %v1783 = vadd.f32 %v1779, %v1782
          %vm1784 = vweird.f32 %v1623
          %vm1785 = vweird.f32 %v1779
          %vm1786 = vmor %vm1784, %vm1785
          %v1787 = vsel %vm1786, %v1779, %v1783
          %v1788 = vand.u32 2147483647, %v1623
          %vm1789 = vcmp.eq.f32.partialorder %v1788, 8.507059e+37
          %v1790 = vand.u32 %v1623, 2147483648
          %v1791 = vor.u32 1.1754944e-38, %v1790
          %v1792 = vsel %vm1789, %v1791, %v1787
          %v1793 = vmul.f32 1.0, %v1792
          %v1794 = vrcp.pop %v1624
          %v1795 = vmul.f32 %v1624, %v1794
          %v1796 = vsub.f32 1.0, %v1795
          %v1797 = vmul.f32 %v1794, %v1796
          %v1798 = vadd.f32 %v1794, %v1797
          %vm1799 = vweird.f32 %v1624
          %vm1800 = vweird.f32 %v1794
          %vm1801 = vmor %vm1799, %vm1800
          %v1802 = vsel %vm1801, %v1794, %v1798
          %v1803 = vand.u32 2147483647, %v1624
          %vm1804 = vcmp.eq.f32.partialorder %v1803, 8.507059e+37
          %v1805 = vand.u32 %v1624, 2147483648
          %v1806 = vor.u32 1.1754944e-38, %v1805
          %v1807 = vsel %vm1804, %v1806, %v1802
          %v1808 = vmul.f32 1.0, %v1807
          %v1809 = vrcp.pop %v1625
          %v1810 = vmul.f32 %v1625, %v1809
          %v1811 = vsub.f32 1.0, %v1810
          %v1812 = vmul.f32 %v1809, %v1811
          %v1813 = vadd.f32 %v1809, %v1812
          %vm1814 = vweird.f32 %v1625
          %vm1815 = vweird.f32 %v1809
          %vm1816 = vmor %vm1814, %vm1815
          %v1817 = vsel %vm1816, %v1809, %v1813
          %v1818 = vand.u32 2147483647, %v1625
          %vm1819 = vcmp.eq.f32.partialorder %v1818, 8.507059e+37
          %v1820 = vand.u32 %v1625, 2147483648
          %v1821 = vor.u32 1.1754944e-38, %v1820
          %v1822 = vsel %vm1819, %v1821, %v1817
          %v1823 = vmul.f32 1.0, %v1822
          %v1824 = vrcp.pop %v1626
          %v1825 = vmul.f32 %v1626, %v1824
          %v1826 = vsub.f32 1.0, %v1825
          %v1827 = vmul.f32 %v1824, %v1826
          %v1828 = vadd.f32 %v1824, %v1827
          %vm1829 = vweird.f32 %v1626
          %vm1830 = vweird.f32 %v1824
          %vm1831 = vmor %vm1829, %vm1830
          %v1832 = vsel %vm1831, %v1824, %v1828
          %v1833 = vand.u32 2147483647, %v1626
          %vm1834 = vcmp.eq.f32.partialorder %v1833, 8.507059e+37
          %v1835 = vand.u32 %v1626, 2147483648
          %v1836 = vor.u32 1.1754944e-38, %v1835
          %v1837 = vsel %vm1834, %v1836, %v1832
          %v1838 = vmul.f32 1.0, %v1837
          %v1839 = vrcp.pop %v1627
          %v1840 = vmul.f32 %v1627, %v1839
          %v1841 = vsub.f32 1.0, %v1840
          %v1842 = vmul.f32 %v1839, %v1841
          %v1843 = vadd.f32 %v1839, %v1842
          %vm1844 = vweird.f32 %v1627
          %vm1845 = vweird.f32 %v1839
          %vm1846 = vmor %vm1844, %vm1845
          %v1847 = vsel %vm1846, %v1839, %v1843
          %v1848 = vand.u32 2147483647, %v1627
          %vm1849 = vcmp.eq.f32.partialorder %v1848, 8.507059e+37
          %v1850 = vand.u32 %v1627, 2147483648
          %v1851 = vor.u32 1.1754944e-38, %v1850
          %v1852 = vsel %vm1849, %v1851, %v1847
          %v1853 = vmul.f32 1.0, %v1852
          %v1854 = vrcp.pop %v1628
          %v1855 = vmul.f32 %v1628, %v1854
          %v1856 = vsub.f32 1.0, %v1855
          %v1857 = vmul.f32 %v1854, %v1856
          %v1858 = vadd.f32 %v1854, %v1857
          %vm1859 = vweird.f32 %v1628
          %vm1860 = vweird.f32 %v1854
          %vm1861 = vmor %vm1859, %vm1860
          %v1862 = vsel %vm1861, %v1854, %v1858
          %v1863 = vand.u32 2147483647, %v1628
          %vm1864 = vcmp.eq.f32.partialorder %v1863, 8.507059e+37
          %v1865 = vand.u32 %v1628, 2147483648
          %v1866 = vor.u32 1.1754944e-38, %v1865
          %v1867 = vsel %vm1864, %v1866, %v1862
          %v1868 = vmul.f32 1.0, %v1867
          %v1869 = vld [vmem:[%s10] sm:$0xff]
          %v1870 = vld [vmem:[%s10 + $0x8] sm:$0xff]
          %v1871 = vld [vmem:[%s10 + $0x10] sm:$0xff]
          %v1872 = vld [vmem:[%s10 + $0x18] sm:$0xff]
          %v1873 = vld [vmem:[%s10 + $0x20] sm:$0xff]
          %v1874 = vld [vmem:[%s10 + $0x28] sm:$0xff]
          %v1875 = vld [vmem:[%s10 + $0x30] sm:$0xff]
          %v1876 = vld [vmem:[%s10 + $0x38] sm:$0xff]
          %v1877 = vld [vmem:[%s11] sm:$0x1]
          %v1879 = vperm.slane %v1877, 0
          %vm1881 = vcmask 523264
          %v1883 = vsel %vm1881, %v1549, 0
          %v1886 = vsel %vm1881, %v1550, 0
          %v1889 = vsel %vm1881, %v1551, 0
          %v1892 = vsel %vm1881, %v1552, 0
          %v1895 = vsel %vm1881, %v1553, 0
          %v1898 = vsel %vm1881, %v1554, 0
          %v1901 = vsel %vm1881, %v1555, 0
          %v1904 = vsel %vm1881, %v1556, 0
          %v1907 = vsel %vm1881, %v1557, 0
          %v1910 = vsel %vm1881, %v1558, 0
          %v1913 = vsel %vm1881, %v1559, 0
          %v1916 = vsel %vm1881, %v1560, 0
          %v1919 = vsel %vm1881, %v1561, 0
          %v1922 = vsel %vm1881, %v1562, 0
          %v1925 = vsel %vm1881, %v1563, 0
          %v1928 = vsel %vm1881, %v1564, 0
          %1930 = vmatpush.msra.mxu0 0.0
          %1931 = vmatpush.msra.mxu0 0.0
          %1932 = vmatpush.msra.mxu0 0.0
          %1933 = vmatpush.msra.mxu0 0.0
          %1934 = vmatpush.msra.mxu0 0.0
          %1935 = vmatpush.msra.mxu0 0.0
          %1936 = vmatpush.msra.mxu0 0.0
          %1937 = vmatpush.msra.mxu0 0.0
          %1938 = vmatpush.msra.mxu0 %v1876
          %1939 = vmatpush.msra.mxu0 %v1875
          %1940 = vmatpush.msra.mxu0 %v1874
          %1941 = vmatpush.msra.mxu0 %v1873
          %1942 = vmatpush.msra.mxu0 %v1872
          %1943 = vmatpush.msra.mxu0 %v1871
          %1944 = vmatpush.msra.mxu0 %v1870
          %1945 = vmatpush.msra.mxu0 %v1869
          %1946 = vmatmul.f32.gmra.mxu0 %v1883
          %v1947 = vpop.f32.mrf.mxu0
          %v1948 = vadd.f32 %v1879, %v1947
          %1949 = vmatmul.f32.gmra.mxu0 %v1886
          %v1950 = vpop.f32.mrf.mxu0
          %v1951 = vadd.f32 %v1879, %v1950
          %1952 = vmatmul.f32.gmra.mxu0 %v1889
          %v1953 = vpop.f32.mrf.mxu0
          %v1954 = vadd.f32 %v1879, %v1953
          %1955 = vmatmul.f32.gmra.mxu0 %v1892
          %v1956 = vpop.f32.mrf.mxu0
          %v1957 = vadd.f32 %v1879, %v1956
          %1958 = vmatmul.f32.gmra.mxu0 %v1895
          %v1959 = vpop.f32.mrf.mxu0
          %v1960 = vadd.f32 %v1879, %v1959
          %1961 = vmatmul.f32.gmra.mxu0 %v1898
          %v1962 = vpop.f32.mrf.mxu0
          %v1963 = vadd.f32 %v1879, %v1962
          %1964 = vmatmul.f32.gmra.mxu0 %v1901
          %v1965 = vpop.f32.mrf.mxu0
          %v1966 = vadd.f32 %v1879, %v1965
          %1967 = vmatmul.f32.gmra.mxu0 %v1904
          %v1968 = vpop.f32.mrf.mxu0
          %v1969 = vadd.f32 %v1879, %v1968
          %1970 = vmatmul.f32.gmra.mxu0 %v1907
          %v1971 = vpop.f32.mrf.mxu0
          %v1972 = vadd.f32 %v1879, %v1971
          %1973 = vmatmul.f32.gmra.mxu0 %v1910
          %v1974 = vpop.f32.mrf.mxu0
          %v1975 = vadd.f32 %v1879, %v1974
          %1976 = vmatmul.f32.gmra.mxu0 %v1913
          %v1977 = vpop.f32.mrf.mxu0
          %v1978 = vadd.f32 %v1879, %v1977
          %1979 = vmatmul.f32.gmra.mxu0 %v1916
          %v1980 = vpop.f32.mrf.mxu0
          %v1981 = vadd.f32 %v1879, %v1980
          %1982 = vmatmul.f32.gmra.mxu0 %v1919
          %v1983 = vpop.f32.mrf.mxu0
          %v1984 = vadd.f32 %v1879, %v1983
          %1985 = vmatmul.f32.gmra.mxu0 %v1922
          %v1986 = vpop.f32.mrf.mxu0
          %v1987 = vadd.f32 %v1879, %v1986
          %1988 = vmatmul.f32.gmra.mxu0 %v1925
          %v1989 = vpop.f32.mrf.mxu0
          %v1990 = vadd.f32 %v1879, %v1989
          %1991 = vmatmul.f32.gmra.mxu0 %v1928
          %v1992 = vpop.f32.mrf.mxu0
          %v1993 = vadd.f32 %v1879, %v1992
          %1994 = vdwg.mxu0
          %v1995 = vld [vmem:[%s597] sm:$0xff]
          %v1996 = vld [vmem:[%s597 + $0x8] sm:$0xff]
          %v1997 = vld [vmem:[%s597 + $0x10] sm:$0xff]
          %v1998 = vld [vmem:[%s597 + $0x18] sm:$0xff]
          %v1999 = vld [vmem:[%s597 + $0x20] sm:$0xff]
          %v2000 = vld [vmem:[%s597 + $0x28] sm:$0xff]
          %v2001 = vld [vmem:[%s597 + $0x30] sm:$0xff]
          %v2002 = vld [vmem:[%s597 + $0x38] sm:$0xff]
          %v2003 = vld [vmem:[%s597 + $0x40] sm:$0xff]
          %v2004 = vld [vmem:[%s597 + $0x48] sm:$0xff]
          %v2005 = vld [vmem:[%s597 + $0x50] sm:$0xff]
          %v2006 = vld [vmem:[%s597 + $0x58] sm:$0xff]
          %v2007 = vld [vmem:[%s597 + $0x60] sm:$0xff]
          %v2008 = vld [vmem:[%s597 + $0x68] sm:$0xff]
          %v2009 = vld [vmem:[%s597 + $0x70] sm:$0xff]
          %v2010 = vld [vmem:[%s597 + $0x78] sm:$0xff]
          %vm2011 = vcmp.gt.f32.partialorder %v1995, 0.0
          %vm2012 = vcmp.gt.f32.partialorder %v1996, 0.0
          %vm2013 = vcmp.gt.f32.partialorder %v1997, 0.0
          %vm2014 = vcmp.gt.f32.partialorder %v1998, 0.0
          %vm2015 = vcmp.gt.f32.partialorder %v1999, 0.0
          %vm2016 = vcmp.gt.f32.partialorder %v2000, 0.0
          %vm2017 = vcmp.gt.f32.partialorder %v2001, 0.0
          %vm2018 = vcmp.gt.f32.partialorder %v2002, 0.0
          %vm2019 = vcmp.gt.f32.partialorder %v2003, 0.0
          %vm2020 = vcmp.gt.f32.partialorder %v2004, 0.0
          %vm2021 = vcmp.gt.f32.partialorder %v2005, 0.0
          %vm2022 = vcmp.gt.f32.partialorder %v2006, 0.0
          %vm2023 = vcmp.gt.f32.partialorder %v2007, 0.0
          %vm2024 = vcmp.gt.f32.partialorder %v2008, 0.0
          %vm2025 = vcmp.gt.f32.partialorder %v2009, 0.0
          %vm2026 = vcmp.gt.f32.partialorder %v2010, 0.0
          %2043 = vrot.lane.b32.xlu0 %v1948, 127
          %v2044 = vpop.permute.xlu0 %2043
          %2045 = vrot.lane.b32.xlu0 %v1951, 127
          %v2046 = vpop.permute.xlu0 %2045
          %2047 = vrot.lane.b32.xlu0 %v1954, 127
          %v2048 = vpop.permute.xlu0 %2047
          %2049 = vrot.lane.b32.xlu0 %v1957, 127
          %v2050 = vpop.permute.xlu0 %2049
          %2051 = vrot.lane.b32.xlu0 %v1960, 127
          %v2052 = vpop.permute.xlu0 %2051
          %2053 = vrot.lane.b32.xlu0 %v1963, 127
          %v2054 = vpop.permute.xlu0 %2053
          %2055 = vrot.lane.b32.xlu0 %v1966, 127
          %v2056 = vpop.permute.xlu0 %2055
          %2057 = vrot.lane.b32.xlu0 %v1969, 127
          %v2058 = vpop.permute.xlu0 %2057
          %2059 = vrot.lane.b32.xlu0 %v1972, 127
          %v2060 = vpop.permute.xlu0 %2059
          %2061 = vrot.lane.b32.xlu0 %v1975, 127
          %v2062 = vpop.permute.xlu0 %2061
          %2063 = vrot.lane.b32.xlu0 %v1978, 127
          %v2064 = vpop.permute.xlu0 %2063
          %2065 = vrot.lane.b32.xlu0 %v1981, 127
          %v2066 = vpop.permute.xlu0 %2065
          %2067 = vrot.lane.b32.xlu0 %v1984, 127
          %v2068 = vpop.permute.xlu0 %2067
          %2069 = vrot.lane.b32.xlu0 %v1987, 127
          %v2070 = vpop.permute.xlu0 %2069
          %2071 = vrot.lane.b32.xlu0 %v1990, 127
          %v2072 = vpop.permute.xlu0 %2071
          %2073 = vrot.lane.b32.xlu0 %v1993, 127
          %v2074 = vpop.permute.xlu0 %2073
          %v2091 = vsel %vm2011, %v2044, %v1948
          %v2092 = vsel %vm2012, %v2046, %v1951
          %v2093 = vsel %vm2013, %v2048, %v1954
          %v2094 = vsel %vm2014, %v2050, %v1957
          %v2095 = vsel %vm2015, %v2052, %v1960
          %v2096 = vsel %vm2016, %v2054, %v1963
          %v2097 = vsel %vm2017, %v2056, %v1966
          %v2098 = vsel %vm2018, %v2058, %v1969
          %v2099 = vsel %vm2019, %v2060, %v1972
          %v2100 = vsel %vm2020, %v2062, %v1975
          %v2101 = vsel %vm2021, %v2064, %v1978
          %v2102 = vsel %vm2022, %v2066, %v1981
          %v2103 = vsel %vm2023, %v2068, %v1984
          %v2104 = vsel %vm2024, %v2070, %v1987
          %v2105 = vsel %vm2025, %v2072, %v1990
          %v2106 = vsel %vm2026, %v2074, %v1993
          %v2107 = vxor.u32 %v2091, 2147483648
          %v2108 = vxor.u32 %v2092, 2147483648
          %v2109 = vxor.u32 %v2093, 2147483648
          %v2110 = vxor.u32 %v2094, 2147483648
          %v2111 = vxor.u32 %v2095, 2147483648
          %v2112 = vxor.u32 %v2096, 2147483648
          %v2113 = vxor.u32 %v2097, 2147483648
          %v2114 = vxor.u32 %v2098, 2147483648
          %v2115 = vxor.u32 %v2099, 2147483648
          %v2116 = vxor.u32 %v2100, 2147483648
          %v2117 = vxor.u32 %v2101, 2147483648
          %v2118 = vxor.u32 %v2102, 2147483648
          %v2119 = vxor.u32 %v2103, 2147483648
          %v2120 = vxor.u32 %v2104, 2147483648
          %v2121 = vxor.u32 %v2105, 2147483648
          %v2122 = vxor.u32 %v2106, 2147483648
          %v2123 = vmul.f32 %v2107, 1.442695
          %v2124 = vpow.pop %v2123
          %v2125 = vmul.f32 %v2108, 1.442695
          %v2126 = vpow.pop %v2125
          %v2127 = vmul.f32 %v2109, 1.442695
          %v2128 = vpow.pop %v2127
          %v2129 = vmul.f32 %v2110, 1.442695
          %v2130 = vpow.pop %v2129
          %v2131 = vmul.f32 %v2111, 1.442695
          %v2132 = vpow.pop %v2131
          %v2133 = vmul.f32 %v2112, 1.442695
          %v2134 = vpow.pop %v2133
          %v2135 = vmul.f32 %v2113, 1.442695
          %v2136 = vpow.pop %v2135
          %v2137 = vmul.f32 %v2114, 1.442695
          %v2138 = vpow.pop %v2137
          %v2139 = vmul.f32 %v2115, 1.442695
          %v2140 = vpow.pop %v2139
          %v2141 = vmul.f32 %v2116, 1.442695
          %v2142 = vpow.pop %v2141
          %v2143 = vmul.f32 %v2117, 1.442695
          %v2144 = vpow.pop %v2143
          %v2145 = vmul.f32 %v2118, 1.442695
          %v2146 = vpow.pop %v2145
          %v2147 = vmul.f32 %v2119, 1.442695
          %v2148 = vpow.pop %v2147
          %v2149 = vmul.f32 %v2120, 1.442695
          %v2150 = vpow.pop %v2149
          %v2151 = vmul.f32 %v2121, 1.442695
          %v2152 = vpow.pop %v2151
          %v2153 = vmul.f32 %v2122, 1.442695
          %v2154 = vpow.pop %v2153
          %v2155 = vadd.f32 %v2124, 1.0
          %v2156 = vadd.f32 %v2126, 1.0
          %v2157 = vadd.f32 %v2128, 1.0
          %v2158 = vadd.f32 %v2130, 1.0
          %v2159 = vadd.f32 %v2132, 1.0
          %v2160 = vadd.f32 %v2134, 1.0
          %v2161 = vadd.f32 %v2136, 1.0
          %v2162 = vadd.f32 %v2138, 1.0
          %v2163 = vadd.f32 %v2140, 1.0
          %v2164 = vadd.f32 %v2142, 1.0
          %v2165 = vadd.f32 %v2144, 1.0
          %v2166 = vadd.f32 %v2146, 1.0
          %v2167 = vadd.f32 %v2148, 1.0
          %v2168 = vadd.f32 %v2150, 1.0
          %v2169 = vadd.f32 %v2152, 1.0
          %v2170 = vadd.f32 %v2154, 1.0
          %v2171 = vrcp.pop %v2155
          %v2172 = vmul.f32 %v2155, %v2171
          %v2173 = vsub.f32 1.0, %v2172
          %v2174 = vmul.f32 %v2171, %v2173
          %v2175 = vadd.f32 %v2171, %v2174
          %vm2176 = vweird.f32 %v2155
          %vm2177 = vweird.f32 %v2171
          %vm2178 = vmor %vm2176, %vm2177
          %v2179 = vsel %vm2178, %v2171, %v2175
          %v2180 = vand.u32 2147483647, %v2155
          %vm2181 = vcmp.eq.f32.partialorder %v2180, 8.507059e+37
          %v2182 = vand.u32 %v2155, 2147483648
          %v2183 = vor.u32 1.1754944e-38, %v2182
          %v2184 = vsel %vm2181, %v2183, %v2179
          %v2185 = vmul.f32 1.0, %v2184
          %v2186 = vrcp.pop %v2156
          %v2187 = vmul.f32 %v2156, %v2186
          %v2188 = vsub.f32 1.0, %v2187
          %v2189 = vmul.f32 %v2186, %v2188
          %v2190 = vadd.f32 %v2186, %v2189
          %vm2191 = vweird.f32 %v2156
          %vm2192 = vweird.f32 %v2186
          %vm2193 = vmor %vm2191, %vm2192
          %v2194 = vsel %vm2193, %v2186, %v2190
          %v2195 = vand.u32 2147483647, %v2156
          %vm2196 = vcmp.eq.f32.partialorder %v2195, 8.507059e+37
          %v2197 = vand.u32 %v2156, 2147483648
          %v2198 = vor.u32 1.1754944e-38, %v2197
          %v2199 = vsel %vm2196, %v2198, %v2194
          %v2200 = vmul.f32 1.0, %v2199
          %v2201 = vrcp.pop %v2157
          %v2202 = vmul.f32 %v2157, %v2201
          %v2203 = vsub.f32 1.0, %v2202
          %v2204 = vmul.f32 %v2201, %v2203
          %v2205 = vadd.f32 %v2201, %v2204
          %vm2206 = vweird.f32 %v2157
          %vm2207 = vweird.f32 %v2201
          %vm2208 = vmor %vm2206, %vm2207
          %v2209 = vsel %vm2208, %v2201, %v2205
          %v2210 = vand.u32 2147483647, %v2157
          %vm2211 = vcmp.eq.f32.partialorder %v2210, 8.507059e+37
          %v2212 = vand.u32 %v2157, 2147483648
          %v2213 = vor.u32 1.1754944e-38, %v2212
          %v2214 = vsel %vm2211, %v2213, %v2209
          %v2215 = vmul.f32 1.0, %v2214
          %v2216 = vrcp.pop %v2158
          %v2217 = vmul.f32 %v2158, %v2216
          %v2218 = vsub.f32 1.0, %v2217
          %v2219 = vmul.f32 %v2216, %v2218
          %v2220 = vadd.f32 %v2216, %v2219
          %vm2221 = vweird.f32 %v2158
          %vm2222 = vweird.f32 %v2216
          %vm2223 = vmor %vm2221, %vm2222
          %v2224 = vsel %vm2223, %v2216, %v2220
          %v2225 = vand.u32 2147483647, %v2158
          %vm2226 = vcmp.eq.f32.partialorder %v2225, 8.507059e+37
          %v2227 = vand.u32 %v2158, 2147483648
          %v2228 = vor.u32 1.1754944e-38, %v2227
          %v2229 = vsel %vm2226, %v2228, %v2224
          %v2230 = vmul.f32 1.0, %v2229
          %v2231 = vrcp.pop %v2159
          %v2232 = vmul.f32 %v2159, %v2231
          %v2233 = vsub.f32 1.0, %v2232
          %v2234 = vmul.f32 %v2231, %v2233
          %v2235 = vadd.f32 %v2231, %v2234
          %vm2236 = vweird.f32 %v2159
          %vm2237 = vweird.f32 %v2231
          %vm2238 = vmor %vm2236, %vm2237
          %v2239 = vsel %vm2238, %v2231, %v2235
          %v2240 = vand.u32 2147483647, %v2159
          %vm2241 = vcmp.eq.f32.partialorder %v2240, 8.507059e+37
          %v2242 = vand.u32 %v2159, 2147483648
          %v2243 = vor.u32 1.1754944e-38, %v2242
          %v2244 = vsel %vm2241, %v2243, %v2239
          %v2245 = vmul.f32 1.0, %v2244
          %v2246 = vrcp.pop %v2160
          %v2247 = vmul.f32 %v2160, %v2246
          %v2248 = vsub.f32 1.0, %v2247
          %v2249 = vmul.f32 %v2246, %v2248
          %v2250 = vadd.f32 %v2246, %v2249
          %vm2251 = vweird.f32 %v2160
          %vm2252 = vweird.f32 %v2246
          %vm2253 = vmor %vm2251, %vm2252
          %v2254 = vsel %vm2253, %v2246, %v2250
          %v2255 = vand.u32 2147483647, %v2160
          %vm2256 = vcmp.eq.f32.partialorder %v2255, 8.507059e+37
          %v2257 = vand.u32 %v2160, 2147483648
          %v2258 = vor.u32 1.1754944e-38, %v2257
          %v2259 = vsel %vm2256, %v2258, %v2254
          %v2260 = vmul.f32 1.0, %v2259
          %v2261 = vrcp.pop %v2161
          %v2262 = vmul.f32 %v2161, %v2261
          %v2263 = vsub.f32 1.0, %v2262
          %v2264 = vmul.f32 %v2261, %v2263
          %v2265 = vadd.f32 %v2261, %v2264
          %vm2266 = vweird.f32 %v2161
          %vm2267 = vweird.f32 %v2261
          %vm2268 = vmor %vm2266, %vm2267
          %v2269 = vsel %vm2268, %v2261, %v2265
          %v2270 = vand.u32 2147483647, %v2161
          %vm2271 = vcmp.eq.f32.partialorder %v2270, 8.507059e+37
          %v2272 = vand.u32 %v2161, 2147483648
          %v2273 = vor.u32 1.1754944e-38, %v2272
          %v2274 = vsel %vm2271, %v2273, %v2269
          %v2275 = vmul.f32 1.0, %v2274
          %v2276 = vrcp.pop %v2162
          %v2277 = vmul.f32 %v2162, %v2276
          %v2278 = vsub.f32 1.0, %v2277
          %v2279 = vmul.f32 %v2276, %v2278
          %v2280 = vadd.f32 %v2276, %v2279
          %vm2281 = vweird.f32 %v2162
          %vm2282 = vweird.f32 %v2276
          %vm2283 = vmor %vm2281, %vm2282
          %v2284 = vsel %vm2283, %v2276, %v2280
          %v2285 = vand.u32 2147483647, %v2162
          %vm2286 = vcmp.eq.f32.partialorder %v2285, 8.507059e+37
          %v2287 = vand.u32 %v2162, 2147483648
          %v2288 = vor.u32 1.1754944e-38, %v2287
          %v2289 = vsel %vm2286, %v2288, %v2284
          %v2290 = vmul.f32 1.0, %v2289
          %v2291 = vrcp.pop %v2163
          %v2292 = vmul.f32 %v2163, %v2291
          %v2293 = vsub.f32 1.0, %v2292
          %v2294 = vmul.f32 %v2291, %v2293
          %v2295 = vadd.f32 %v2291, %v2294
          %vm2296 = vweird.f32 %v2163
          %vm2297 = vweird.f32 %v2291
          %vm2298 = vmor %vm2296, %vm2297
          %v2299 = vsel %vm2298, %v2291, %v2295
          %v2300 = vand.u32 2147483647, %v2163
          %vm2301 = vcmp.eq.f32.partialorder %v2300, 8.507059e+37
          %v2302 = vand.u32 %v2163, 2147483648
          %v2303 = vor.u32 1.1754944e-38, %v2302
          %v2304 = vsel %vm2301, %v2303, %v2299
          %v2305 = vmul.f32 1.0, %v2304
          %v2306 = vrcp.pop %v2164
          %v2307 = vmul.f32 %v2164, %v2306
          %v2308 = vsub.f32 1.0, %v2307
          %v2309 = vmul.f32 %v2306, %v2308
          %v2310 = vadd.f32 %v2306, %v2309
          %vm2311 = vweird.f32 %v2164
          %vm2312 = vweird.f32 %v2306
          %vm2313 = vmor %vm2311, %vm2312
          %v2314 = vsel %vm2313, %v2306, %v2310
          %v2315 = vand.u32 2147483647, %v2164
          %vm2316 = vcmp.eq.f32.partialorder %v2315, 8.507059e+37
          %v2317 = vand.u32 %v2164, 2147483648
          %v2318 = vor.u32 1.1754944e-38, %v2317
          %v2319 = vsel %vm2316, %v2318, %v2314
          %v2320 = vmul.f32 1.0, %v2319
          %v2321 = vrcp.pop %v2165
          %v2322 = vmul.f32 %v2165, %v2321
          %v2323 = vsub.f32 1.0, %v2322
          %v2324 = vmul.f32 %v2321, %v2323
          %v2325 = vadd.f32 %v2321, %v2324
          %vm2326 = vweird.f32 %v2165
          %vm2327 = vweird.f32 %v2321
          %vm2328 = vmor %vm2326, %vm2327
          %v2329 = vsel %vm2328, %v2321, %v2325
          %v2330 = vand.u32 2147483647, %v2165
          %vm2331 = vcmp.eq.f32.partialorder %v2330, 8.507059e+37
          %v2332 = vand.u32 %v2165, 2147483648
          %v2333 = vor.u32 1.1754944e-38, %v2332
          %v2334 = vsel %vm2331, %v2333, %v2329
          %v2335 = vmul.f32 1.0, %v2334
          %v2336 = vrcp.pop %v2166
          %v2337 = vmul.f32 %v2166, %v2336
          %v2338 = vsub.f32 1.0, %v2337
          %v2339 = vmul.f32 %v2336, %v2338
          %v2340 = vadd.f32 %v2336, %v2339
          %vm2341 = vweird.f32 %v2166
          %vm2342 = vweird.f32 %v2336
          %vm2343 = vmor %vm2341, %vm2342
          %v2344 = vsel %vm2343, %v2336, %v2340
          %v2345 = vand.u32 2147483647, %v2166
          %vm2346 = vcmp.eq.f32.partialorder %v2345, 8.507059e+37
          %v2347 = vand.u32 %v2166, 2147483648
          %v2348 = vor.u32 1.1754944e-38, %v2347
          %v2349 = vsel %vm2346, %v2348, %v2344
          %v2350 = vmul.f32 1.0, %v2349
          %v2351 = vrcp.pop %v2167
          %v2352 = vmul.f32 %v2167, %v2351
          %v2353 = vsub.f32 1.0, %v2352
          %v2354 = vmul.f32 %v2351, %v2353
          %v2355 = vadd.f32 %v2351, %v2354
          %vm2356 = vweird.f32 %v2167
          %vm2357 = vweird.f32 %v2351
          %vm2358 = vmor %vm2356, %vm2357
          %v2359 = vsel %vm2358, %v2351, %v2355
          %v2360 = vand.u32 2147483647, %v2167
          %vm2361 = vcmp.eq.f32.partialorder %v2360, 8.507059e+37
          %v2362 = vand.u32 %v2167, 2147483648
          %v2363 = vor.u32 1.1754944e-38, %v2362
          %v2364 = vsel %vm2361, %v2363, %v2359
          %v2365 = vmul.f32 1.0, %v2364
          %v2366 = vrcp.pop %v2168
          %v2367 = vmul.f32 %v2168, %v2366
          %v2368 = vsub.f32 1.0, %v2367
          %v2369 = vmul.f32 %v2366, %v2368
          %v2370 = vadd.f32 %v2366, %v2369
          %vm2371 = vweird.f32 %v2168
          %vm2372 = vweird.f32 %v2366
          %vm2373 = vmor %vm2371, %vm2372
          %v2374 = vsel %vm2373, %v2366, %v2370
          %v2375 = vand.u32 2147483647, %v2168
          %vm2376 = vcmp.eq.f32.partialorder %v2375, 8.507059e+37
          %v2377 = vand.u32 %v2168, 2147483648
          %v2378 = vor.u32 1.1754944e-38, %v2377
          %v2379 = vsel %vm2376, %v2378, %v2374
          %v2380 = vmul.f32 1.0, %v2379
          %v2381 = vrcp.pop %v2169
          %v2382 = vmul.f32 %v2169, %v2381
          %v2383 = vsub.f32 1.0, %v2382
          %v2384 = vmul.f32 %v2381, %v2383
          %v2385 = vadd.f32 %v2381, %v2384
          %vm2386 = vweird.f32 %v2169
          %vm2387 = vweird.f32 %v2381
          %vm2388 = vmor %vm2386, %vm2387
          %v2389 = vsel %vm2388, %v2381, %v2385
          %v2390 = vand.u32 2147483647, %v2169
          %vm2391 = vcmp.eq.f32.partialorder %v2390, 8.507059e+37
          %v2392 = vand.u32 %v2169, 2147483648
          %v2393 = vor.u32 1.1754944e-38, %v2392
          %v2394 = vsel %vm2391, %v2393, %v2389
          %v2395 = vmul.f32 1.0, %v2394
          %v2396 = vrcp.pop %v2170
          %v2397 = vmul.f32 %v2170, %v2396
          %v2398 = vsub.f32 1.0, %v2397
          %v2399 = vmul.f32 %v2396, %v2398
          %v2400 = vadd.f32 %v2396, %v2399
          %vm2401 = vweird.f32 %v2170
          %vm2402 = vweird.f32 %v2396
          %vm2403 = vmor %vm2401, %vm2402
          %v2404 = vsel %vm2403, %v2396, %v2400
          %v2405 = vand.u32 2147483647, %v2170
          %vm2406 = vcmp.eq.f32.partialorder %v2405, 8.507059e+37
          %v2407 = vand.u32 %v2170, 2147483648
          %v2408 = vor.u32 1.1754944e-38, %v2407
          %v2409 = vsel %vm2406, %v2408, %v2404
          %v2410 = vmul.f32 1.0, %v2409
          %2427 = vrot.lane.b32.xlu0 %v1643, 96
          %v2428 = vpop.permute.xlu0 %2427
          %2429 = vrot.lane.b32.xlu0 %v1658, 96
          %v2430 = vpop.permute.xlu0 %2429
          %2431 = vrot.lane.b32.xlu0 %v1673, 96
          %v2432 = vpop.permute.xlu0 %2431
          %2433 = vrot.lane.b32.xlu0 %v1688, 96
          %v2434 = vpop.permute.xlu0 %2433
          %2435 = vrot.lane.b32.xlu0 %v1703, 96
          %v2436 = vpop.permute.xlu0 %2435
          %2437 = vrot.lane.b32.xlu0 %v1718, 96
          %v2438 = vpop.permute.xlu0 %2437
          %2439 = vrot.lane.b32.xlu0 %v1733, 96
          %v2440 = vpop.permute.xlu0 %2439
          %2441 = vrot.lane.b32.xlu0 %v1748, 96
          %v2442 = vpop.permute.xlu0 %2441
          %2443 = vrot.lane.b32.xlu0 %v1763, 96
          %v2444 = vpop.permute.xlu0 %2443
          %2445 = vrot.lane.b32.xlu0 %v1778, 96
          %v2446 = vpop.permute.xlu0 %2445
          %2447 = vrot.lane.b32.xlu0 %v1793, 96
          %v2448 = vpop.permute.xlu0 %2447
          %2449 = vrot.lane.b32.xlu0 %v1808, 96
          %v2450 = vpop.permute.xlu0 %2449
          %2451 = vrot.lane.b32.xlu0 %v1823, 96
          %v2452 = vpop.permute.xlu0 %2451
          %2453 = vrot.lane.b32.xlu0 %v1838, 96
          %v2454 = vpop.permute.xlu0 %2453
          %2455 = vrot.lane.b32.xlu0 %v1853, 96
          %v2456 = vpop.permute.xlu0 %2455
          %2457 = vrot.lane.b32.xlu0 %v1868, 96
          %v2458 = vpop.permute.xlu0 %2457
          %2491 = vrot.lane.b32.xlu0 %v2185, 33
          %v2492 = vpop.permute.xlu0 %2491
          %2493 = vrot.lane.b32.xlu0 %v2200, 33
          %v2494 = vpop.permute.xlu0 %2493
          %2495 = vrot.lane.b32.xlu0 %v2215, 33
          %v2496 = vpop.permute.xlu0 %2495
          %2497 = vrot.lane.b32.xlu0 %v2230, 33
          %v2498 = vpop.permute.xlu0 %2497
          %2499 = vrot.lane.b32.xlu0 %v2245, 33
          %v2500 = vpop.permute.xlu0 %2499
          %2501 = vrot.lane.b32.xlu0 %v2260, 33
          %v2502 = vpop.permute.xlu0 %2501
          %2503 = vrot.lane.b32.xlu0 %v2275, 33
          %v2504 = vpop.permute.xlu0 %2503
          %2505 = vrot.lane.b32.xlu0 %v2290, 33
          %v2506 = vpop.permute.xlu0 %2505
          %2507 = vrot.lane.b32.xlu0 %v2305, 33
          %v2508 = vpop.permute.xlu0 %2507
          %2509 = vrot.lane.b32.xlu0 %v2320, 33
          %v2510 = vpop.permute.xlu0 %2509
          %2511 = vrot.lane.b32.xlu0 %v2335, 33
          %v2512 = vpop.permute.xlu0 %2511
          %2513 = vrot.lane.b32.xlu0 %v2350, 33
          %v2514 = vpop.permute.xlu0 %2513
          %2515 = vrot.lane.b32.xlu0 %v2365, 33
          %v2516 = vpop.permute.xlu0 %2515
          %2517 = vrot.lane.b32.xlu0 %v2380, 33
          %v2518 = vpop.permute.xlu0 %2517
          %2519 = vrot.lane.b32.xlu0 %v2395, 33
          %v2520 = vpop.permute.xlu0 %2519
          %2521 = vrot.lane.b32.xlu0 %v2410, 33
          %v2522 = vpop.permute.xlu0 %2521
          %2555 = vrot.lane.b32.xlu0 %v946, 34
          %v2556 = vpop.permute.xlu0 %2555
          %2557 = vrot.lane.b32.xlu0 %v961, 34
          %v2558 = vpop.permute.xlu0 %2557
          %2559 = vrot.lane.b32.xlu0 %v976, 34
          %v2560 = vpop.permute.xlu0 %2559
          %2561 = vrot.lane.b32.xlu0 %v991, 34
          %v2562 = vpop.permute.xlu0 %2561
          %2563 = vrot.lane.b32.xlu0 %v1006, 34
          %v2564 = vpop.permute.xlu0 %2563
          %2565 = vrot.lane.b32.xlu0 %v1021, 34
          %v2566 = vpop.permute.xlu0 %2565
          %2567 = vrot.lane.b32.xlu0 %v1036, 34
          %v2568 = vpop.permute.xlu0 %2567
          %2569 = vrot.lane.b32.xlu0 %v1051, 34
          %v2570 = vpop.permute.xlu0 %2569
          %2571 = vrot.lane.b32.xlu0 %v1066, 34
          %v2572 = vpop.permute.xlu0 %2571
          %2573 = vrot.lane.b32.xlu0 %v1081, 34
          %v2574 = vpop.permute.xlu0 %2573
          %2575 = vrot.lane.b32.xlu0 %v1096, 34
          %v2576 = vpop.permute.xlu0 %2575
          %2577 = vrot.lane.b32.xlu0 %v1111, 34
          %v2578 = vpop.permute.xlu0 %2577
          %2579 = vrot.lane.b32.xlu0 %v1126, 34
          %v2580 = vpop.permute.xlu0 %2579
          %2581 = vrot.lane.b32.xlu0 %v1141, 34
          %v2582 = vpop.permute.xlu0 %2581
          %2583 = vrot.lane.b32.xlu0 %v1156, 34
          %v2584 = vpop.permute.xlu0 %2583
          %2585 = vrot.lane.b32.xlu0 %v1171, 34
          %v2586 = vpop.permute.xlu0 %2585
          %v2603 = vsel %vm1358, %v1432, %v2428
          %v2604 = vsel %vm1358, %v1433, %v2430
          %v2605 = vsel %vm1358, %v1434, %v2432
          %v2606 = vsel %vm1358, %v1435, %v2434
          %v2607 = vsel %vm1358, %v1436, %v2436
          %v2608 = vsel %vm1358, %v1437, %v2438
          %v2609 = vsel %vm1358, %v1438, %v2440
          %v2610 = vsel %vm1358, %v1439, %v2442
          %v2611 = vsel %vm1358, %v1440, %v2444
          %v2612 = vsel %vm1358, %v1441, %v2446
          %v2613 = vsel %vm1358, %v1442, %v2448
          %v2614 = vsel %vm1358, %v1443, %v2450
          %v2615 = vsel %vm1358, %v1444, %v2452
          %v2616 = vsel %vm1358, %v1445, %v2454
          %v2617 = vsel %vm1358, %v1446, %v2456
          %v2618 = vsel %vm1358, %v1447, %v2458
          %vm2619 = vcmask 269312
          %v2620 = vsel %vm2619, %v2603, %v2492
          %v2621 = vsel %vm2619, %v2604, %v2494
          %v2622 = vsel %vm2619, %v2605, %v2496
          %v2623 = vsel %vm2619, %v2606, %v2498
          %v2624 = vsel %vm2619, %v2607, %v2500
          %v2625 = vsel %vm2619, %v2608, %v2502
          %v2626 = vsel %vm2619, %v2609, %v2504
          %v2627 = vsel %vm2619, %v2610, %v2506
          %v2628 = vsel %vm2619, %v2611, %v2508
          %v2629 = vsel %vm2619, %v2612, %v2510
          %v2630 = vsel %vm2619, %v2613, %v2512
          %v2631 = vsel %vm2619, %v2614, %v2514
          %v2632 = vsel %vm2619, %v2615, %v2516
          %v2633 = vsel %vm2619, %v2616, %v2518
          %v2634 = vsel %vm2619, %v2617, %v2520
          %v2635 = vsel %vm2619, %v2618, %v2522
          %vm2636 = vcmask 277504
          %v2637 = vsel %vm2636, %v2620, %v2556
          %v2638 = vsel %vm2636, %v2621, %v2558
          %v2639 = vsel %vm2636, %v2622, %v2560
          %v2640 = vsel %vm2636, %v2623, %v2562
          %v2641 = vsel %vm2636, %v2624, %v2564
          %v2642 = vsel %vm2636, %v2625, %v2566
          %v2643 = vsel %vm2636, %v2626, %v2568
          %v2644 = vsel %vm2636, %v2627, %v2570
          %v2645 = vsel %vm2636, %v2628, %v2572
          %v2646 = vsel %vm2636, %v2629, %v2574
          %v2647 = vsel %vm2636, %v2630, %v2576
          %v2648 = vsel %vm2636, %v2631, %v2578
          %v2649 = vsel %vm2636, %v2632, %v2580
          %v2650 = vsel %vm2636, %v2633, %v2582
          %v2651 = vsel %vm2636, %v2634, %v2584
          %v2652 = vsel %vm2636, %v2635, %v2586
          %vm2653 = vcmask 285696
          %v2654 = vsel %vm2653, %v2637, 0.0
          %v2655 = vsel %vm2653, %v2638, 0.0
          %v2656 = vsel %vm2653, %v2639, 0.0
          %v2657 = vsel %vm2653, %v2640, 0.0
          %v2658 = vsel %vm2653, %v2641, 0.0
          %v2659 = vsel %vm2653, %v2642, 0.0
          %v2660 = vsel %vm2653, %v2643, 0.0
          %v2661 = vsel %vm2653, %v2644, 0.0
          %v2662 = vsel %vm2653, %v2645, 0.0
          %v2663 = vsel %vm2653, %v2646, 0.0
          %v2664 = vsel %vm2653, %v2647, 0.0
          %v2665 = vsel %vm2653, %v2648, 0.0
          %v2666 = vsel %vm2653, %v2649, 0.0
          %v2667 = vsel %vm2653, %v2650, 0.0
          %v2668 = vsel %vm2653, %v2651, 0.0
          %v2669 = vsel %vm2653, %v2652, 0.0
          %2670 = vst [vmem:[%s579] sm:$0xff] %v2654
          %2671 = vst [vmem:[%s579 + $0x8] sm:$0xff] %v2655
          %2672 = vst [vmem:[%s579 + $0x10] sm:$0xff] %v2656
          %2673 = vst [vmem:[%s579 + $0x18] sm:$0xff] %v2657
          %2674 = vst [vmem:[%s579 + $0x20] sm:$0xff] %v2658
          %2675 = vst [vmem:[%s579 + $0x28] sm:$0xff] %v2659
          %2676 = vst [vmem:[%s579 + $0x30] sm:$0xff] %v2660
          %2677 = vst [vmem:[%s579 + $0x38] sm:$0xff] %v2661
          %2678 = vst [vmem:[%s579 + $0x40] sm:$0xff] %v2662
          %2679 = vst [vmem:[%s579 + $0x48] sm:$0xff] %v2663
          %2680 = vst [vmem:[%s579 + $0x50] sm:$0xff] %v2664
          %2681 = vst [vmem:[%s579 + $0x58] sm:$0xff] %v2665
          %2682 = vst [vmem:[%s579 + $0x60] sm:$0xff] %v2666
          %2683 = vst [vmem:[%s579 + $0x68] sm:$0xff] %v2667
          %2684 = vst [vmem:[%s579 + $0x70] sm:$0xff] %v2668
          %2685 = vst [vmem:[%s579 + $0x78] sm:$0xff] %v2669
        $region117: #{tpu_custom_call.1} parent=104 // pred_fallthru
          _
        %s2686 = sand.u32 %s320, 1
        %s2687 = scalar_lea.sflag [#allocation5], %s2686
        %s2688 = sand.u32 %s320, 1
        %s2689 = smul.addr %s2688, 128
        %s2690 = scalar_lea.vmem [#allocation4], %s2689
        // Predicated region
        $region118: #{tpu_custom_call.1} parent=104 // pred_check
          %p2691 = pneg %p330
        $region119: #{tpu_custom_call.1} parent=104 // pred_check_branch
          %2693 = sbr.rel (%p2691) target = $region121
        $region120: #{tpu_custom_call.1} parent=104 // pred_region
          %s2694 = smul.u32 16, %s30
          %2696 = vsyncadd %s2687, 0
          %s2697 = smul.addr %s2694, 8
          %s2698 = scalar_lea.hbm %s12, %s2697
          %s2699 = sshll.u32 %s2690, 4
          %s2700 = int_to_ptr.vmem [resolvable:$true] %s2699
          %s2701 = sshll.u32 %s2698, 4
          %s2702 = int_to_ptr.hbm [resolvable:$true] %s2701
          %2707 = dma.vmem_to_hbm [thread:$0]  %s2700, 2048, %s2702, %s2687, 128, 128, 8
        $region121: #{tpu_custom_call.1} parent=104 // pred_fallthru
          _
      $region105: #{tpu_custom_call.1} parent=5 // pred_fallthru
        _
      %p2708 = scmp.le.s32.totalorder 2, %s21
      // Predicated region
      $region122: #{tpu_custom_call.1} parent=5 // pred_check
        %p2709 = pneg %p2708
      $region123: #{tpu_custom_call.1} parent=5 // pred_check_branch
        %2711 = sbr.rel (%p2709) target = $region125
      $region124: #{tpu_custom_call.1} parent=5 // pred_region
        %s2712 = ssub.s32 %s21, 2
        // Predicated region
        $region126: #{tpu_custom_call.1} parent=124 // pred_check
          %p2713 = pneg %p336
        $region127: #{tpu_custom_call.1} parent=124 // pred_check_branch
          %2715 = sbr.rel (%p2713) target = $region129
        $region128: #{tpu_custom_call.1} parent=124 // pred_region
          %s2716 = sand.u32 %s321, 1
          %s2717 = scalar_lea.sflag [#allocation5], %s2716
          %s2718 = sand.u32 %s321, 1
          %s2719 = smul.addr %s2718, 128
          %s2720 = scalar_lea.vmem [#allocation4], %s2719
          %2722 = dma.done %s2717, 2048
        $region129: #{tpu_custom_call.1} parent=124 // pred_fallthru
          _
      $region125: #{tpu_custom_call.1} parent=5 // pred_fallthru
        _
    $region6: #{tpu_custom_call.1} parent=1 // loop_footer
      %s25 = sadd.s32 1, %s21
    $region7: #{tpu_custom_call.1} parent=1 // loop_footer_branch
      %20 = sbr.rel target = $region3
    $region8: #{tpu_custom_call.1} parent=1 // loop_exit
      _
    %2723 = vsyncpa [#allocation5], 1
    %s2724 = scalar_lea.sflag [#allocation5], 1
    %2725 = vsyncpa %s2724, 1

</llo_original>
